<compile_context>
chip_gen: v5e
topology: v5e:2x2
jax: 0.10.0
libtpu: 0.0.40
codegen_flags: <defaults>
</compile_context>

<pallas_src>
import jax
import jax.numpy as jnp
from jax.experimental import pallas as pl
from jax.experimental.pallas import tpu as pltpu


def _make_lstm_fc_kernel(T, BP, H):
    def kernel(x_ref, wih_ref, b_ref, whh_hbm, wfc_ref, bfc_ref, out_ref,
               gates_ref, whh_vmem, dma_sem):
        # ---- Overlap: start W_hh HBM -> VMEM copy, hide it behind Phase 1.
        whh_cp = pltpu.make_async_copy(whh_hbm, whh_vmem, dma_sem)
        whh_cp.start()

        # ---- Phase 1: batched input projection for ALL timesteps, staged to VMEM.
        # (T*8, D)bf16 @ (D, 4H)bf16 -> (T*8, 4H)f32, bias folded.
        gates_ref[...] = (jnp.dot(x_ref[...], wih_ref[...],
                                  preferred_element_type=jnp.float32)
                          + b_ref[...])

        whh_cp.wait()
        whh = whh_vmem[...]                               # (H, 4H) bf16, loaded once

        h = jnp.zeros((BP, H), jnp.float32)
        c = jnp.zeros((BP, H), jnp.float32)

        # ---- Phase 2: recurrence, fully unrolled (T is small & static).
        for t in range(T):
            gx_t = gates_ref[t * BP:(t + 1) * BP, :]      # aligned (8, 4H) view load
            gates = gx_t + jnp.dot(h.astype(whh.dtype), whh,
                                   preferred_element_type=jnp.float32)
            # PyTorch gate order: i, f, g, o ; 256-wide lane-aligned slices.
            i_g = jax.nn.sigmoid(gates[:, 0 * H:1 * H])
            f_g = jax.nn.sigmoid(gates[:, 1 * H:2 * H])
            g_g = jnp.tanh(gates[:, 2 * H:3 * H])
            o_g = jax.nn.sigmoid(gates[:, 3 * H:4 * H])
            c = f_g * c + i_g * g_g
            h = o_g * jnp.tanh(c)
            # Padded rows (b >= real B) carry garbage (sigmoid(0)=0.5 etc.); they are
            # row-independent and get discarded by the [:B, :C] slice outside.

        # ---- Phase 3: FC on h_T into a lane-dense (8, 128) f32 tile.
        out_ref[...] = (jnp.dot(h, wfc_ref[...],
                                preferred_element_type=jnp.float32)
                        + bfc_ref[...]).astype(out_ref.dtype)

    return kernel


def lstm_network_forward(x, params):
    """x: (B, T, D) float32 (batch_first, like PyTorch). Returns (B, num_classes)."""
    B, T, D = x.shape
    H = params["w_hh"].shape[1]
    C = params["w_fc"].shape[0]
    BP = ((B + 7) // 8) * 8          # batch rows padded to f32 sublane tile
    CP = ((C + 127) // 128) * 128    # FC output padded to full lanes

    # Layout / dtype prep in plain JAX (glue only).  Time-major padded rows:
    # row t*BP + b <-> (time t, batch b); rows with b >= B are zero.
    x_tm = jnp.transpose(x, (1, 0, 2))                               # (T, B, D)
    x_pad = jnp.zeros((T, BP, D), jnp.float32).at[:, :B, :].set(x_tm)
    x_flat = x_pad.reshape(T * BP, D).astype(jnp.bfloat16)           # (T*BP, D)

    wih_t = jnp.transpose(params["w_ih"]).astype(jnp.bfloat16)       # (D, 4H)
    whh_t = jnp.transpose(params["w_hh"]).astype(jnp.bfloat16)       # (H, 4H)
    bias = (params["b_ih"] + params["b_hh"]).reshape(1, 4 * H).astype(jnp.float32)
    wfc_pad = jnp.zeros((H, CP), jnp.float32).at[:, :C].set(
        jnp.transpose(params["w_fc"]).astype(jnp.float32))           # (H, CP)
    bfc_pad = jnp.zeros((1, CP), jnp.float32).at[0, :C].set(
        params["b_fc"].astype(jnp.float32))                          # (1, CP)

    vmem = pl.BlockSpec(memory_space=pltpu.MemorySpace.VMEM)
    hbm = pl.BlockSpec(memory_space=pl.ANY)

    out_full = pl.pallas_call(
        _make_lstm_fc_kernel(T, BP, H),
        out_shape=jax.ShapeDtypeStruct((BP, CP), jnp.float32),
        in_specs=[vmem, vmem, vmem, hbm, vmem, vmem],
        out_specs=vmem,
        scratch_shapes=[
            pltpu.VMEM((T * BP, 4 * H), jnp.float32),   # staged gate projection
            pltpu.VMEM((H, 4 * H), jnp.bfloat16),       # W_hh landing buffer
            pltpu.SemaphoreType.DMA(()),
        ],
    )(x_flat, wih_t, bias, whh_t, wfc_pad, bfc_pad)

    return out_full[:B, :C]


def _reference_forward(x, params):
    """Pure-JAX f32 reference mirroring PyTorch semantics."""
    B, T, D = x.shape
    H = params["w_hh"].shape[1]
    wih_t = params["w_ih"].T
    whh_t = params["w_hh"].T
    bias = params["b_ih"] + params["b_hh"]

    def step(carry, x_t):
        h, c = carry
        gates = x_t @ wih_t + h @ whh_t + bias
        i = jax.nn.sigmoid(gates[:, 0 * H:1 * H])
        f = jax.nn.sigmoid(gates[:, 1 * H:2 * H])
        g = jnp.tanh(gates[:, 2 * H:3 * H])
        o = jax.nn.sigmoid(gates[:, 3 * H:4 * H])
        c = f * c + i * g
        h = o * jnp.tanh(c)
        return (h, c), None

    h0 = jnp.zeros((B, H), jnp.float32)
    c0 = jnp.zeros((B, H), jnp.float32)
    (h_T, _), _ = jax.lax.scan(step, (h0, c0), jnp.transpose(x, (1, 0, 2)))
    return h_T @ params["w_fc"].T + params["b_fc"]


def init_params(key, input_size=512, hidden_size=256, num_classes=4):
    """Deterministic synthetic init (PyTorch-style uniform(-1/sqrt(H), 1/sqrt(H)))."""
    ks = jax.random.split(key, 6)
    k_lstm = 1.0 / jnp.sqrt(hidden_size)
    k_fc = 1.0 / jnp.sqrt(hidden_size)
    u = lambda k, shape, s: jax.random.uniform(k, shape, jnp.float32, -s, s)
    return {
        "w_ih": u(ks[0], (4 * hidden_size, input_size), k_lstm),
        "w_hh": u(ks[1], (4 * hidden_size, hidden_size), k_lstm),
        "b_ih": u(ks[2], (4 * hidden_size,), k_lstm),
        "b_hh": u(ks[3], (4 * hidden_size,), k_lstm),
        "w_fc": u(ks[4], (num_classes, hidden_size), k_fc),
        "b_fc": u(ks[5], (num_classes,), k_fc),
    }


if __name__ == "__main__":
    B, T, D, H, C = 2, 8, 512, 256, 4
    key = jax.random.PRNGKey(0)
    k_x, k_p = jax.random.split(key)
    x = jax.random.normal(k_x, (B, T, D), jnp.float32)
    params = init_params(k_p, input_size=D, hidden_size=H, num_classes=C)

    out = lstm_network_forward(x, params)
    out = jax.block_until_ready(out)

    ref = _reference_forward(x, params)
    assert out.shape == (B, C), out.shape
    # bf16 matmul operands (f32 accumulation) drift slightly from the f32 reference.
    assert jnp.allclose(out, ref, atol=2e-2, rtol=2e-2), (out, ref)

    print("KERNEL_OK")
</pallas_src>

<mosaic_0001>
module attributes {stable_mosaic.version = 11 : i64} {
  func.func @kernel(%arg0: memref<64x512xbf16, #tpu.memory_space<vmem>>, %arg1: memref<512x1024xbf16, #tpu.memory_space<vmem>>, %arg2: memref<1x1024xf32, #tpu.memory_space<vmem>>, %arg3: memref<256x1024xbf16, #tpu.memory_space<any>>, %arg4: memref<256x128xf32, #tpu.memory_space<vmem>>, %arg5: memref<1x128xf32, #tpu.memory_space<vmem>>, %arg6: memref<8x128xf32, #tpu.memory_space<vmem>>, %arg7: memref<64x1024xf32, #tpu.memory_space<vmem>>, %arg8: memref<256x1024xbf16, #tpu.memory_space<vmem>>, %arg9: memref<!tpu.dma_semaphore, #tpu.memory_space<semaphore_mem>>) attributes {dimension_semantics = [], scalar_prefetch = 0 : i64, scratch_operands = 3 : i64, tpu.core_type = #tpu.core_type<tc>} {
    tpu.enqueue_dma source(%arg3 : memref<256x1024xbf16, #tpu.memory_space<any>>) target(%arg8 : memref<256x1024xbf16, #tpu.memory_space<vmem>>) target_semaphore(%arg9 : memref<!tpu.dma_semaphore, #tpu.memory_space<semaphore_mem>>)
    %c0 = arith.constant 0 : index
    %c0_0 = arith.constant 0 : index
    %0 = vector.load %arg0[%c0, %c0_0] : memref<64x512xbf16, #tpu.memory_space<vmem>>, vector<64x512xbf16>
    %c0_1 = arith.constant 0 : index
    %c0_2 = arith.constant 0 : index
    %1 = vector.load %arg1[%c0_1, %c0_2] : memref<512x1024xbf16, #tpu.memory_space<vmem>>, vector<512x1024xbf16>
    %cst = arith.constant dense<0.000000e+00> : vector<64x1024xf32>
    %2 = tpu.matmul %0, %1, %cst {dimension_numbers = #tpu.dot_dimension_numbers<[1], [0], [0], [1], [0, 0, 1, 1], [], []>} : vector<64x512xbf16>, vector<512x1024xbf16>, vector<64x1024xf32> -> vector<64x1024xf32>
    %c0_3 = arith.constant 0 : index
    %c0_4 = arith.constant 0 : index
    %3 = vector.load %arg2[%c0_3, %c0_4] : memref<1x1024xf32, #tpu.memory_space<vmem>>, vector<1x1024xf32>
    %4 = vector.broadcast %3 : vector<1x1024xf32> to vector<64x1024xf32>
    %5 = arith.addf %2, %4 : vector<64x1024xf32>
    %c0_5 = arith.constant 0 : index
    %c0_6 = arith.constant 0 : index
    %6 = vector.load %arg7[%c0_5, %c0_6] : memref<64x1024xf32, #tpu.memory_space<vmem>>, vector<64x1024xf32>
    tpu.vector_store %arg7[%c0_5, %c0_6], %5 {strides = array<i32>} : memref<64x1024xf32, #tpu.memory_space<vmem>>, vector<64x1024xf32>,
    tpu.wait_dma2 semaphore(%arg9 : memref<!tpu.dma_semaphore, #tpu.memory_space<semaphore_mem>>) src(%arg3 : memref<256x1024xbf16, #tpu.memory_space<any>>) dst(%arg8 : memref<256x1024xbf16, #tpu.memory_space<vmem>>)
    %c0_7 = arith.constant 0 : index
    %c0_8 = arith.constant 0 : index
    %7 = vector.load %arg8[%c0_7, %c0_8] : memref<256x1024xbf16, #tpu.memory_space<vmem>>, vector<256x1024xbf16>
    %cst_9 = arith.constant 0.000000e+00 : f32
    %8 = vector.broadcast %cst_9 : f32 to vector<8x256xf32>
    %cst_10 = arith.constant 0.000000e+00 : f32
    %9 = vector.broadcast %cst_10 : f32 to vector<8x256xf32>
    %c0_11 = arith.constant 0 : index
    %c0_12 = arith.constant 0 : index
    %10 = vector.load %arg7[%c0_11, %c0_12] : memref<64x1024xf32, #tpu.memory_space<vmem>>, vector<8x1024xf32>
    %11 = arith.truncf %8 : vector<8x256xf32> to vector<8x256xbf16>
    %cst_13 = arith.constant dense<0.000000e+00> : vector<8x1024xf32>
    %12 = tpu.matmul %11, %7, %cst_13 {dimension_numbers = #tpu.dot_dimension_numbers<[1], [0], [0], [1], [0, 0, 1, 1], [], []>} : vector<8x256xbf16>, vector<256x1024xbf16>, vector<8x1024xf32> -> vector<8x1024xf32>
    %13 = arith.addf %10, %12 : vector<8x1024xf32>
    %14 = vector.extract_strided_slice %13 {offsets = [0, 0], sizes = [8, 256], strides = [1, 1]} : vector<8x1024xf32> to vector<8x256xf32>
    %15 = arith.negf %14 : vector<8x256xf32>
    %16 = math.exp %15 : vector<8x256xf32>
    %cst_14 = arith.constant 1.000000e+00 : f32
    %17 = vector.broadcast %cst_14 : f32 to vector<8x256xf32>
    %18 = arith.addf %17, %16 : vector<8x256xf32>
    %19 = arith.divf %17, %18 : vector<8x256xf32>
    %20 = vector.extract_strided_slice %13 {offsets = [0, 256], sizes = [8, 256], strides = [1, 1]} : vector<8x1024xf32> to vector<8x256xf32>
    %21 = arith.negf %20 : vector<8x256xf32>
    %22 = math.exp %21 : vector<8x256xf32>
    %cst_15 = arith.constant 1.000000e+00 : f32
    %23 = vector.broadcast %cst_15 : f32 to vector<8x256xf32>
    %24 = arith.addf %23, %22 : vector<8x256xf32>
    %25 = arith.divf %23, %24 : vector<8x256xf32>
    %26 = vector.extract_strided_slice %13 {offsets = [0, 512], sizes = [8, 256], strides = [1, 1]} : vector<8x1024xf32> to vector<8x256xf32>
    %27 = math.tanh %26 : vector<8x256xf32>
    %28 = vector.extract_strided_slice %13 {offsets = [0, 768], sizes = [8, 256], strides = [1, 1]} : vector<8x1024xf32> to vector<8x256xf32>
    %29 = arith.negf %28 : vector<8x256xf32>
    %30 = math.exp %29 : vector<8x256xf32>
    %cst_16 = arith.constant 1.000000e+00 : f32
    %31 = vector.broadcast %cst_16 : f32 to vector<8x256xf32>
    %32 = arith.addf %31, %30 : vector<8x256xf32>
    %33 = arith.divf %31, %32 : vector<8x256xf32>
    %34 = arith.mulf %25, %9 : vector<8x256xf32>
    %35 = arith.mulf %19, %27 : vector<8x256xf32>
    %36 = arith.addf %34, %35 : vector<8x256xf32>
    %37 = math.tanh %36 : vector<8x256xf32>
    %38 = arith.mulf %33, %37 : vector<8x256xf32>
    %c8 = arith.constant 8 : index
    %c0_17 = arith.constant 0 : index
    %39 = vector.load %arg7[%c8, %c0_17] : memref<64x1024xf32, #tpu.memory_space<vmem>>, vector<8x1024xf32>
    %40 = arith.truncf %38 : vector<8x256xf32> to vector<8x256xbf16>
    %cst_18 = arith.constant dense<0.000000e+00> : vector<8x1024xf32>
    %41 = tpu.matmul %40, %7, %cst_18 {dimension_numbers = #tpu.dot_dimension_numbers<[1], [0], [0], [1], [0, 0, 1, 1], [], []>} : vector<8x256xbf16>, vector<256x1024xbf16>, vector<8x1024xf32> -> vector<8x1024xf32>
    %42 = arith.addf %39, %41 : vector<8x1024xf32>
    %43 = vector.extract_strided_slice %42 {offsets = [0, 0], sizes = [8, 256], strides = [1, 1]} : vector<8x1024xf32> to vector<8x256xf32>
    %44 = arith.negf %43 : vector<8x256xf32>
    %45 = math.exp %44 : vector<8x256xf32>
    %cst_19 = arith.constant 1.000000e+00 : f32
    %46 = vector.broadcast %cst_19 : f32 to vector<8x256xf32>
    %47 = arith.addf %46, %45 : vector<8x256xf32>
    %48 = arith.divf %46, %47 : vector<8x256xf32>
    %49 = vector.extract_strided_slice %42 {offsets = [0, 256], sizes = [8, 256], strides = [1, 1]} : vector<8x1024xf32> to vector<8x256xf32>
    %50 = arith.negf %49 : vector<8x256xf32>
    %51 = math.exp %50 : vector<8x256xf32>
    %cst_20 = arith.constant 1.000000e+00 : f32
    %52 = vector.broadcast %cst_20 : f32 to vector<8x256xf32>
    %53 = arith.addf %52, %51 : vector<8x256xf32>
    %54 = arith.divf %52, %53 : vector<8x256xf32>
    %55 = vector.extract_strided_slice %42 {offsets = [0, 512], sizes = [8, 256], strides = [1, 1]} : vector<8x1024xf32> to vector<8x256xf32>
    %56 = math.tanh %55 : vector<8x256xf32>
    %57 = vector.extract_strided_slice %42 {offsets = [0, 768], sizes = [8, 256], strides = [1, 1]} : vector<8x1024xf32> to vector<8x256xf32>
    %58 = arith.negf %57 : vector<8x256xf32>
    %59 = math.exp %58 : vector<8x256xf32>
    %cst_21 = arith.constant 1.000000e+00 : f32
    %60 = vector.broadcast %cst_21 : f32 to vector<8x256xf32>
    %61 = arith.addf %60, %59 : vector<8x256xf32>
    %62 = arith.divf %60, %61 : vector<8x256xf32>
    %63 = arith.mulf %54, %36 : vector<8x256xf32>
    %64 = arith.mulf %48, %56 : vector<8x256xf32>
    %65 = arith.addf %63, %64 : vector<8x256xf32>
    %66 = math.tanh %65 : vector<8x256xf32>
    %67 = arith.mulf %62, %66 : vector<8x256xf32>
    %c16 = arith.constant 16 : index
    %c0_22 = arith.constant 0 : index
    %68 = vector.load %arg7[%c16, %c0_22] : memref<64x1024xf32, #tpu.memory_space<vmem>>, vector<8x1024xf32>
    %69 = arith.truncf %67 : vector<8x256xf32> to vector<8x256xbf16>
    %cst_23 = arith.constant dense<0.000000e+00> : vector<8x1024xf32>
    %70 = tpu.matmul %69, %7, %cst_23 {dimension_numbers = #tpu.dot_dimension_numbers<[1], [0], [0], [1], [0, 0, 1, 1], [], []>} : vector<8x256xbf16>, vector<256x1024xbf16>, vector<8x1024xf32> -> vector<8x1024xf32>
    %71 = arith.addf %68, %70 : vector<8x1024xf32>
    %72 = vector.extract_strided_slice %71 {offsets = [0, 0], sizes = [8, 256], strides = [1, 1]} : vector<8x1024xf32> to vector<8x256xf32>
    %73 = arith.negf %72 : vector<8x256xf32>
    %74 = math.exp %73 : vector<8x256xf32>
    %cst_24 = arith.constant 1.000000e+00 : f32
    %75 = vector.broadcast %cst_24 : f32 to vector<8x256xf32>
    %76 = arith.addf %75, %74 : vector<8x256xf32>
    %77 = arith.divf %75, %76 : vector<8x256xf32>
    %78 = vector.extract_strided_slice %71 {offsets = [0, 256], sizes = [8, 256], strides = [1, 1]} : vector<8x1024xf32> to vector<8x256xf32>
    %79 = arith.negf %78 : vector<8x256xf32>
    %80 = math.exp %79 : vector<8x256xf32>
    %cst_25 = arith.constant 1.000000e+00 : f32
    %81 = vector.broadcast %cst_25 : f32 to vector<8x256xf32>
    %82 = arith.addf %81, %80 : vector<8x256xf32>
    %83 = arith.divf %81, %82 : vector<8x256xf32>
    %84 = vector.extract_strided_slice %71 {offsets = [0, 512], sizes = [8, 256], strides = [1, 1]} : vector<8x1024xf32> to vector<8x256xf32>
    %85 = math.tanh %84 : vector<8x256xf32>
    %86 = vector.extract_strided_slice %71 {offsets = [0, 768], sizes = [8, 256], strides = [1, 1]} : vector<8x1024xf32> to vector<8x256xf32>
    %87 = arith.negf %86 : vector<8x256xf32>
    %88 = math.exp %87 : vector<8x256xf32>
    %cst_26 = arith.constant 1.000000e+00 : f32
    %89 = vector.broadcast %cst_26 : f32 to vector<8x256xf32>
    %90 = arith.addf %89, %88 : vector<8x256xf32>
    %91 = arith.divf %89, %90 : vector<8x256xf32>
    %92 = arith.mulf %83, %65 : vector<8x256xf32>
    %93 = arith.mulf %77, %85 : vector<8x256xf32>
    %94 = arith.addf %92, %93 : vector<8x256xf32>
    %95 = math.tanh %94 : vector<8x256xf32>
    %96 = arith.mulf %91, %95 : vector<8x256xf32>
    %c24 = arith.constant 24 : index
    %c0_27 = arith.constant 0 : index
    %97 = vector.load %arg7[%c24, %c0_27] : memref<64x1024xf32, #tpu.memory_space<vmem>>, vector<8x1024xf32>
    %98 = arith.truncf %96 : vector<8x256xf32> to vector<8x256xbf16>
    %cst_28 = arith.constant dense<0.000000e+00> : vector<8x1024xf32>
    %99 = tpu.matmul %98, %7, %cst_28 {dimension_numbers = #tpu.dot_dimension_numbers<[1], [0], [0], [1], [0, 0, 1, 1], [], []>} : vector<8x256xbf16>, vector<256x1024xbf16>, vector<8x1024xf32> -> vector<8x1024xf32>
    %100 = arith.addf %97, %99 : vector<8x1024xf32>
    %101 = vector.extract_strided_slice %100 {offsets = [0, 0], sizes = [8, 256], strides = [1, 1]} : vector<8x1024xf32> to vector<8x256xf32>
    %102 = arith.negf %101 : vector<8x256xf32>
    %103 = math.exp %102 : vector<8x256xf32>
    %cst_29 = arith.constant 1.000000e+00 : f32
    %104 = vector.broadcast %cst_29 : f32 to vector<8x256xf32>
    %105 = arith.addf %104, %103 : vector<8x256xf32>
    %106 = arith.divf %104, %105 : vector<8x256xf32>
    %107 = vector.extract_strided_slice %100 {offsets = [0, 256], sizes = [8, 256], strides = [1, 1]} : vector<8x1024xf32> to vector<8x256xf32>
    %108 = arith.negf %107 : vector<8x256xf32>
    %109 = math.exp %108 : vector<8x256xf32>
    %cst_30 = arith.constant 1.000000e+00 : f32
    %110 = vector.broadcast %cst_30 : f32 to vector<8x256xf32>
    %111 = arith.addf %110, %109 : vector<8x256xf32>
    %112 = arith.divf %110, %111 : vector<8x256xf32>
    %113 = vector.extract_strided_slice %100 {offsets = [0, 512], sizes = [8, 256], strides = [1, 1]} : vector<8x1024xf32> to vector<8x256xf32>
    %114 = math.tanh %113 : vector<8x256xf32>
    %115 = vector.extract_strided_slice %100 {offsets = [0, 768], sizes = [8, 256], strides = [1, 1]} : vector<8x1024xf32> to vector<8x256xf32>
    %116 = arith.negf %115 : vector<8x256xf32>
    %117 = math.exp %116 : vector<8x256xf32>
    %cst_31 = arith.constant 1.000000e+00 : f32
    %118 = vector.broadcast %cst_31 : f32 to vector<8x256xf32>
    %119 = arith.addf %118, %117 : vector<8x256xf32>
    %120 = arith.divf %118, %119 : vector<8x256xf32>
    %121 = arith.mulf %112, %94 : vector<8x256xf32>
    %122 = arith.mulf %106, %114 : vector<8x256xf32>
    %123 = arith.addf %121, %122 : vector<8x256xf32>
    %124 = math.tanh %123 : vector<8x256xf32>
    %125 = arith.mulf %120, %124 : vector<8x256xf32>
    %c32 = arith.constant 32 : index
    %c0_32 = arith.constant 0 : index
    %126 = vector.load %arg7[%c32, %c0_32] : memref<64x1024xf32, #tpu.memory_space<vmem>>, vector<8x1024xf32>
    %127 = arith.truncf %125 : vector<8x256xf32> to vector<8x256xbf16>
    %cst_33 = arith.constant dense<0.000000e+00> : vector<8x1024xf32>
    %128 = tpu.matmul %127, %7, %cst_33 {dimension_numbers = #tpu.dot_dimension_numbers<[1], [0], [0], [1], [0, 0, 1, 1], [], []>} : vector<8x256xbf16>, vector<256x1024xbf16>, vector<8x1024xf32> -> vector<8x1024xf32>
    %129 = arith.addf %126, %128 : vector<8x1024xf32>
    %130 = vector.extract_strided_slice %129 {offsets = [0, 0], sizes = [8, 256], strides = [1, 1]} : vector<8x1024xf32> to vector<8x256xf32>
    %131 = arith.negf %130 : vector<8x256xf32>
    %132 = math.exp %131 : vector<8x256xf32>
    %cst_34 = arith.constant 1.000000e+00 : f32
    %133 = vector.broadcast %cst_34 : f32 to vector<8x256xf32>
    %134 = arith.addf %133, %132 : vector<8x256xf32>
    %135 = arith.divf %133, %134 : vector<8x256xf32>
    %136 = vector.extract_strided_slice %129 {offsets = [0, 256], sizes = [8, 256], strides = [1, 1]} : vector<8x1024xf32> to vector<8x256xf32>
    %137 = arith.negf %136 : vector<8x256xf32>
    %138 = math.exp %137 : vector<8x256xf32>
    %cst_35 = arith.constant 1.000000e+00 : f32
    %139 = vector.broadcast %cst_35 : f32 to vector<8x256xf32>
    %140 = arith.addf %139, %138 : vector<8x256xf32>
    %141 = arith.divf %139, %140 : vector<8x256xf32>
    %142 = vector.extract_strided_slice %129 {offsets = [0, 512], sizes = [8, 256], strides = [1, 1]} : vector<8x1024xf32> to vector<8x256xf32>
    %143 = math.tanh %142 : vector<8x256xf32>
    %144 = vector.extract_strided_slice %129 {offsets = [0, 768], sizes = [8, 256], strides = [1, 1]} : vector<8x1024xf32> to vector<8x256xf32>
    %145 = arith.negf %144 : vector<8x256xf32>
    %146 = math.exp %145 : vector<8x256xf32>
    %cst_36 = arith.constant 1.000000e+00 : f32
    %147 = vector.broadcast %cst_36 : f32 to vector<8x256xf32>
    %148 = arith.addf %147, %146 : vector<8x256xf32>
    %149 = arith.divf %147, %148 : vector<8x256xf32>
    %150 = arith.mulf %141, %123 : vector<8x256xf32>
    %151 = arith.mulf %135, %143 : vector<8x256xf32>
    %152 = arith.addf %150, %151 : vector<8x256xf32>
    %153 = math.tanh %152 : vector<8x256xf32>
    %154 = arith.mulf %149, %153 : vector<8x256xf32>
    %c40 = arith.constant 40 : index
    %c0_37 = arith.constant 0 : index
    %155 = vector.load %arg7[%c40, %c0_37] : memref<64x1024xf32, #tpu.memory_space<vmem>>, vector<8x1024xf32>
    %156 = arith.truncf %154 : vector<8x256xf32> to vector<8x256xbf16>
    %cst_38 = arith.constant dense<0.000000e+00> : vector<8x1024xf32>
    %157 = tpu.matmul %156, %7, %cst_38 {dimension_numbers = #tpu.dot_dimension_numbers<[1], [0], [0], [1], [0, 0, 1, 1], [], []>} : vector<8x256xbf16>, vector<256x1024xbf16>, vector<8x1024xf32> -> vector<8x1024xf32>
    %158 = arith.addf %155, %157 : vector<8x1024xf32>
    %159 = vector.extract_strided_slice %158 {offsets = [0, 0], sizes = [8, 256], strides = [1, 1]} : vector<8x1024xf32> to vector<8x256xf32>
    %160 = arith.negf %159 : vector<8x256xf32>
    %161 = math.exp %160 : vector<8x256xf32>
    %cst_39 = arith.constant 1.000000e+00 : f32
    %162 = vector.broadcast %cst_39 : f32 to vector<8x256xf32>
    %163 = arith.addf %162, %161 : vector<8x256xf32>
    %164 = arith.divf %162, %163 : vector<8x256xf32>
    %165 = vector.extract_strided_slice %158 {offsets = [0, 256], sizes = [8, 256], strides = [1, 1]} : vector<8x1024xf32> to vector<8x256xf32>
    %166 = arith.negf %165 : vector<8x256xf32>
    %167 = math.exp %166 : vector<8x256xf32>
    %cst_40 = arith.constant 1.000000e+00 : f32
    %168 = vector.broadcast %cst_40 : f32 to vector<8x256xf32>
    %169 = arith.addf %168, %167 : vector<8x256xf32>
    %170 = arith.divf %168, %169 : vector<8x256xf32>
    %171 = vector.extract_strided_slice %158 {offsets = [0, 512], sizes = [8, 256], strides = [1, 1]} : vector<8x1024xf32> to vector<8x256xf32>
    %172 = math.tanh %171 : vector<8x256xf32>
    %173 = vector.extract_strided_slice %158 {offsets = [0, 768], sizes = [8, 256], strides = [1, 1]} : vector<8x1024xf32> to vector<8x256xf32>
    %174 = arith.negf %173 : vector<8x256xf32>
    %175 = math.exp %174 : vector<8x256xf32>
    %cst_41 = arith.constant 1.000000e+00 : f32
    %176 = vector.broadcast %cst_41 : f32 to vector<8x256xf32>
    %177 = arith.addf %176, %175 : vector<8x256xf32>
    %178 = arith.divf %176, %177 : vector<8x256xf32>
    %179 = arith.mulf %170, %152 : vector<8x256xf32>
    %180 = arith.mulf %164, %172 : vector<8x256xf32>
    %181 = arith.addf %179, %180 : vector<8x256xf32>
    %182 = math.tanh %181 : vector<8x256xf32>
    %183 = arith.mulf %178, %182 : vector<8x256xf32>
    %c48 = arith.constant 48 : index
    %c0_42 = arith.constant 0 : index
    %184 = vector.load %arg7[%c48, %c0_42] : memref<64x1024xf32, #tpu.memory_space<vmem>>, vector<8x1024xf32>
    %185 = arith.truncf %183 : vector<8x256xf32> to vector<8x256xbf16>
    %cst_43 = arith.constant dense<0.000000e+00> : vector<8x1024xf32>
    %186 = tpu.matmul %185, %7, %cst_43 {dimension_numbers = #tpu.dot_dimension_numbers<[1], [0], [0], [1], [0, 0, 1, 1], [], []>} : vector<8x256xbf16>, vector<256x1024xbf16>, vector<8x1024xf32> -> vector<8x1024xf32>
    %187 = arith.addf %184, %186 : vector<8x1024xf32>
    %188 = vector.extract_strided_slice %187 {offsets = [0, 0], sizes = [8, 256], strides = [1, 1]} : vector<8x1024xf32> to vector<8x256xf32>
    %189 = arith.negf %188 : vector<8x256xf32>
    %190 = math.exp %189 : vector<8x256xf32>
    %cst_44 = arith.constant 1.000000e+00 : f32
    %191 = vector.broadcast %cst_44 : f32 to vector<8x256xf32>
    %192 = arith.addf %191, %190 : vector<8x256xf32>
    %193 = arith.divf %191, %192 : vector<8x256xf32>
    %194 = vector.extract_strided_slice %187 {offsets = [0, 256], sizes = [8, 256], strides = [1, 1]} : vector<8x1024xf32> to vector<8x256xf32>
    %195 = arith.negf %194 : vector<8x256xf32>
    %196 = math.exp %195 : vector<8x256xf32>
    %cst_45 = arith.constant 1.000000e+00 : f32
    %197 = vector.broadcast %cst_45 : f32 to vector<8x256xf32>
    %198 = arith.addf %197, %196 : vector<8x256xf32>
    %199 = arith.divf %197, %198 : vector<8x256xf32>
    %200 = vector.extract_strided_slice %187 {offsets = [0, 512], sizes = [8, 256], strides = [1, 1]} : vector<8x1024xf32> to vector<8x256xf32>
    %201 = math.tanh %200 : vector<8x256xf32>
    %202 = vector.extract_strided_slice %187 {offsets = [0, 768], sizes = [8, 256], strides = [1, 1]} : vector<8x1024xf32> to vector<8x256xf32>
    %203 = arith.negf %202 : vector<8x256xf32>
    %204 = math.exp %203 : vector<8x256xf32>
    %cst_46 = arith.constant 1.000000e+00 : f32
    %205 = vector.broadcast %cst_46 : f32 to vector<8x256xf32>
    %206 = arith.addf %205, %204 : vector<8x256xf32>
    %207 = arith.divf %205, %206 : vector<8x256xf32>
    %208 = arith.mulf %199, %181 : vector<8x256xf32>
    %209 = arith.mulf %193, %201 : vector<8x256xf32>
    %210 = arith.addf %208, %209 : vector<8x256xf32>
    %211 = math.tanh %210 : vector<8x256xf32>
    %212 = arith.mulf %207, %211 : vector<8x256xf32>
    %c56 = arith.constant 56 : index
    %c0_47 = arith.constant 0 : index
    %213 = vector.load %arg7[%c56, %c0_47] : memref<64x1024xf32, #tpu.memory_space<vmem>>, vector<8x1024xf32>
    %214 = arith.truncf %212 : vector<8x256xf32> to vector<8x256xbf16>
    %cst_48 = arith.constant dense<0.000000e+00> : vector<8x1024xf32>
    %215 = tpu.matmul %214, %7, %cst_48 {dimension_numbers = #tpu.dot_dimension_numbers<[1], [0], [0], [1], [0, 0, 1, 1], [], []>} : vector<8x256xbf16>, vector<256x1024xbf16>, vector<8x1024xf32> -> vector<8x1024xf32>
    %216 = arith.addf %213, %215 : vector<8x1024xf32>
    %217 = vector.extract_strided_slice %216 {offsets = [0, 0], sizes = [8, 256], strides = [1, 1]} : vector<8x1024xf32> to vector<8x256xf32>
    %218 = arith.negf %217 : vector<8x256xf32>
    %219 = math.exp %218 : vector<8x256xf32>
    %cst_49 = arith.constant 1.000000e+00 : f32
    %220 = vector.broadcast %cst_49 : f32 to vector<8x256xf32>
    %221 = arith.addf %220, %219 : vector<8x256xf32>
    %222 = arith.divf %220, %221 : vector<8x256xf32>
    %223 = vector.extract_strided_slice %216 {offsets = [0, 256], sizes = [8, 256], strides = [1, 1]} : vector<8x1024xf32> to vector<8x256xf32>
    %224 = arith.negf %223 : vector<8x256xf32>
    %225 = math.exp %224 : vector<8x256xf32>
    %cst_50 = arith.constant 1.000000e+00 : f32
    %226 = vector.broadcast %cst_50 : f32 to vector<8x256xf32>
    %227 = arith.addf %226, %225 : vector<8x256xf32>
    %228 = arith.divf %226, %227 : vector<8x256xf32>
    %229 = vector.extract_strided_slice %216 {offsets = [0, 512], sizes = [8, 256], strides = [1, 1]} : vector<8x1024xf32> to vector<8x256xf32>
    %230 = math.tanh %229 : vector<8x256xf32>
    %231 = vector.extract_strided_slice %216 {offsets = [0, 768], sizes = [8, 256], strides = [1, 1]} : vector<8x1024xf32> to vector<8x256xf32>
    %232 = arith.negf %231 : vector<8x256xf32>
    %233 = math.exp %232 : vector<8x256xf32>
    %cst_51 = arith.constant 1.000000e+00 : f32
    %234 = vector.broadcast %cst_51 : f32 to vector<8x256xf32>
    %235 = arith.addf %234, %233 : vector<8x256xf32>
    %236 = arith.divf %234, %235 : vector<8x256xf32>
    %237 = arith.mulf %228, %210 : vector<8x256xf32>
    %238 = arith.mulf %222, %230 : vector<8x256xf32>
    %239 = arith.addf %237, %238 : vector<8x256xf32>
    %240 = math.tanh %239 : vector<8x256xf32>
    %241 = arith.mulf %236, %240 : vector<8x256xf32>
    %c0_52 = arith.constant 0 : index
    %c0_53 = arith.constant 0 : index
    %242 = vector.load %arg4[%c0_52, %c0_53] : memref<256x128xf32, #tpu.memory_space<vmem>>, vector<256x128xf32>
    %cst_54 = arith.constant dense<0.000000e+00> : vector<8x128xf32>
    %243 = tpu.matmul %241, %242, %cst_54 {dimension_numbers = #tpu.dot_dimension_numbers<[1], [0], [0], [1], [0, 0, 1, 1], [], []>} : vector<8x256xf32>, vector<256x128xf32>, vector<8x128xf32> -> vector<8x128xf32>
    %c0_55 = arith.constant 0 : index
    %c0_56 = arith.constant 0 : index
    %244 = vector.load %arg5[%c0_55, %c0_56] : memref<1x128xf32, #tpu.memory_space<vmem>>, vector<1x128xf32>
    %245 = vector.broadcast %244 : vector<1x128xf32> to vector<8x128xf32>
    %246 = arith.addf %243, %245 : vector<8x128xf32>
    %c0_57 = arith.constant 0 : index
    %c0_58 = arith.constant 0 : index
    %247 = vector.load %arg6[%c0_57, %c0_58] : memref<8x128xf32, #tpu.memory_space<vmem>>, vector<8x128xf32>
    tpu.vector_store %arg6[%c0_57, %c0_58], %246 {strides = array<i32>} : memref<8x128xf32, #tpu.memory_space<vmem>>, vector<8x128xf32>,
    return
  }
}

</mosaic_0001>

<llo_original>
// kernel: tpu_custom_call.1
$region0: #{tpu_custom_call.1}
  #allocation0 [shape = 'u32[]', space=smem, size = 0x4, offset = 0x4, fixed_abs, tag = 'smem constant byte address 0x4 - core index']
  #allocation1 [shape = 'u32[72,128]{1,0:T(1,128)}', space=vmem, size = 0x9000, scoped, tag = 'internal scratch']
  #allocation2 [shape = 'f32[64,1024]{1,0:T(8,128)}', space=vmem, size = 0x40000, scoped, tag = 'scratch operand']
  #allocation3 [shape = 'bf16[256,1024]{1,0:T(8,128)(2,1)}', space=vmem, size = 0x80000, scoped, tag = 'scratch operand']
  #allocation4 [shape = 's32[1]{0}', space=sflag, size = 0x4, scoped, tag = 'scratch operand']
  #allocation14 [shape = 's32[]', space=sflag, size = 0x4, offset = 0, fixed_abs, tag = 'sflag constant byte address 0x0 - dummy sync flag']
  #allocation15 [shape = 's32[]', space=sflag, size = 0x4, offset = 0, fixed_abs, tag = 'sflag constant byte address 0x0 - dummy sync flag']
  #allocation16 [shape = 'u32[]', space=smem, size = 0x4, offset = 0x44, fixed_abs, tag = 'smem constant byte address 0x44 - assertion arg 0']
  #allocation17 [shape = 'u32[]', space=smem, size = 0x4, offset = 0x48, fixed_abs, tag = 'smem constant byte address 0x48 - assertion arg 1']
  %s0 = inlined_call_operand.hbm [shape: bf16[64,512], index: 0, kind: input, shape index: {}]
  %s1 = inlined_call_operand.hbm [shape: bf16[512,1024], index: 1, kind: input, shape index: {}]
  %s2 = inlined_call_operand.hbm [shape: f32[1,1024], index: 2, kind: input, shape index: {}]
  %s3 = inlined_call_operand.hbm [shape: bf16[256,1024], index: 3, kind: input, shape index: {}]
  %s4 = inlined_call_operand.hbm [shape: f32[256,128], index: 4, kind: input, shape index: {}]
  %s5 = inlined_call_operand.vmem [shape: f32[1,128], index: 5, kind: input, shape index: {}]
  %s6 = inlined_call_operand.hbm [shape: f32[8,128], index: 6, kind: output, shape index: {}]
  %s7 = sld [smem:[#allocation0]]
  $region50: #{tpu_custom_call.1} parent=0
    _
  %s9 = ssub.s32 1, %s7
  %s10 = scalar_select 0, %s9, %s7
  $region1: #{tpu_custom_call.1} parent=0
    #allocation5 [shape = 'u8[65536]{0}', space=vmem, size = 0x10000, scoped, tag = 'input window, operand 0, single buffered']
    #allocation6 [shape = 's32[1]{0}', space=sflag, size = 0x4, scoped, tag = 'scoped memory for tpu_custom_call.1']
    #allocation7 [shape = 's32[1]{0}', space=sflag, size = 0x4, scoped, tag = 'scoped memory for tpu_custom_call.1']
    #allocation8 [shape = 'u8[1048576]{0}', space=vmem, size = 0x100000, scoped, tag = 'input window, operand 1, single buffered']
    #allocation9 [shape = 's32[1]{0}', space=sflag, size = 0x4, scoped, tag = 'scoped memory for tpu_custom_call.1']
    #allocation10 [shape = 'u8[4096]{0}', space=vmem, size = 0x1000, scoped, tag = 'input window, operand 2, single buffered']
    #allocation11 [shape = 'u8[131072]{0}', space=vmem, size = 0x20000, scoped, tag = 'input window, operand 4, single buffered']
    #allocation12 [shape = 's32[1]{0}', space=sflag, size = 0x4, scoped, tag = 'scoped memory for tpu_custom_call.1']
    #allocation13 [shape = 'u8[4096]{0}', space=vmem, size = 0x1000, scoped, tag = 'output window, operand 0, single buffered']
    %11 = vsyncpa [#allocation6], 0
    %12 = vsyncpa [#allocation9], 0
    %13 = vsyncpa [#allocation12], 0
    %14 = vsyncpa [#allocation7], 0
    // Predicated region
    $region2: #{tpu_custom_call.1} parent=1 // pred_check
      _
    $region3: #{tpu_custom_call.1} parent=1 // pred_check_branch
      %16 = sbr.rel (0) target = $region5
    $region4: #{tpu_custom_call.1} parent=1 // pred_region
      %18 = vsyncadd [#allocation6], 0
      %s19 = sshll.u32 %s0, 4
      %s20 = int_to_ptr.hbm [resolvable:$true] %s19
      %s21 = sshll.u32 [#allocation5], 4
      %s22 = int_to_ptr.vmem [resolvable:$true] %s21
      %27 = dma.hbm_to_vmem [thread:$0]  %s20, 2048, %s22, [#allocation6], 256, 256, 16
    $region5: #{tpu_custom_call.1} parent=1 // pred_fallthru
      _
    // Predicated region
    $region6: #{tpu_custom_call.1} parent=1 // pred_check
      _
    $region7: #{tpu_custom_call.1} parent=1 // pred_check_branch
      %29 = sbr.rel (0) target = $region9
    $region8: #{tpu_custom_call.1} parent=1 // pred_region
      %31 = vsyncadd [#allocation9], 0
      %s32 = sshll.u32 %s1, 4
      %s33 = int_to_ptr.hbm [resolvable:$true] %s32
      %s34 = sshll.u32 [#allocation8], 4
      %s35 = int_to_ptr.vmem [resolvable:$true] %s34
      %40 = dma.hbm_to_vmem [thread:$0]  %s33, 32768, %s35, [#allocation9], 512, 512, 32
    $region9: #{tpu_custom_call.1} parent=1 // pred_fallthru
      _
    // Predicated region
    $region10: #{tpu_custom_call.1} parent=1 // pred_check
      _
    $region11: #{tpu_custom_call.1} parent=1 // pred_check_branch
      %42 = sbr.rel (0) target = $region13
    $region12: #{tpu_custom_call.1} parent=1 // pred_region
      %44 = vsyncadd [#allocation9], 0
      %s46 = sshll.u32 %s2, 4
      %s47 = int_to_ptr.hbm [resolvable:$true] %s46
      %s48 = sshll.u32 [#allocation10], 4
      %s49 = int_to_ptr.vmem [resolvable:$true] %s48
      %51 = dma.hbm_to_vmem [thread:$0]  %s47, 128, %s49, [#allocation9]
    $region13: #{tpu_custom_call.1} parent=1 // pred_fallthru
      _
    // Predicated region
    $region14: #{tpu_custom_call.1} parent=1 // pred_check
      _
    $region15: #{tpu_custom_call.1} parent=1 // pred_check_branch
      %53 = sbr.rel (0) target = $region17
    $region16: #{tpu_custom_call.1} parent=1 // pred_region
      %55 = vsyncadd [#allocation12], 0
      %s56 = sshll.u32 %s4, 4
      %s57 = int_to_ptr.hbm [resolvable:$true] %s56
      %s58 = sshll.u32 [#allocation11], 4
      %s59 = int_to_ptr.vmem [resolvable:$true] %s58
      %64 = dma.hbm_to_vmem [thread:$0]  %s57, 4096, %s59, [#allocation12], 128, 128, 8
    $region17: #{tpu_custom_call.1} parent=1 // pred_fallthru
      _
    // Predicated region
    $region18: #{tpu_custom_call.1} parent=1 // pred_check
      _
    $region19: #{tpu_custom_call.1} parent=1 // pred_check_branch
      %66 = sbr.rel (0) target = $region21
    $region20: #{tpu_custom_call.1} parent=1 // pred_region
      _
    $region21: #{tpu_custom_call.1} parent=1 // pred_fallthru
      _
    // Predicated region
    $region22: #{tpu_custom_call.1} parent=1 // pred_check
      _
    $region23: #{tpu_custom_call.1} parent=1 // pred_check_branch
      %68 = sbr.rel (0) target = $region25
    $region24: #{tpu_custom_call.1} parent=1 // pred_region
      %70 = dma.done [#allocation6], 2048
    $region25: #{tpu_custom_call.1} parent=1 // pred_fallthru
      _
    // Predicated region
    $region26: #{tpu_custom_call.1} parent=1 // pred_check
      _
    $region27: #{tpu_custom_call.1} parent=1 // pred_check_branch
      %72 = sbr.rel (0) target = $region29
    $region28: #{tpu_custom_call.1} parent=1 // pred_region
      %74 = dma.done [#allocation9], 32768
    $region29: #{tpu_custom_call.1} parent=1 // pred_fallthru
      _
    // Predicated region
    $region30: #{tpu_custom_call.1} parent=1 // pred_check
      _
    $region31: #{tpu_custom_call.1} parent=1 // pred_check_branch
      %76 = sbr.rel (0) target = $region33
    $region32: #{tpu_custom_call.1} parent=1 // pred_region
      %78 = dma.done [#allocation9], 128
    $region33: #{tpu_custom_call.1} parent=1 // pred_fallthru
      _
    // Predicated region
    $region34: #{tpu_custom_call.1} parent=1 // pred_check
      _
    $region35: #{tpu_custom_call.1} parent=1 // pred_check_branch
      %80 = sbr.rel (0) target = $region37
    $region36: #{tpu_custom_call.1} parent=1 // pred_region
      %82 = dma.done [#allocation12], 4096
    $region37: #{tpu_custom_call.1} parent=1 // pred_fallthru
      _
    // Predicated region
    $region38: #{tpu_custom_call.1} parent=1 // pred_check
      _
    $region39: #{tpu_custom_call.1} parent=1 // pred_check_branch
      %85 = sbr.rel target = $region41
    $region40: #{tpu_custom_call.1} parent=1 // pred_region
      %86 = sst [smem:[#allocation16]] [#allocation15]
      %87 = sst [smem:[#allocation17]] [#allocation14]
    $region41: #{tpu_custom_call.1} parent=1 // pred_fallthru
      _
    %89 = shalt.err (0)
    %s91 = sshll.u32 %s3, 4
    %s92 = int_to_ptr.hbm [resolvable:$true] %s91
    %s93 = sshll.u32 [#allocation3], 4
    %s94 = int_to_ptr.vmem [resolvable:$true] %s93
    %96 = dma.hbm_to_vmem [thread:$0]  %s92, 16384, %s94, [#allocation4]
    %v97 = vld [vmem:[#allocation5] sm:$0xff]
    %v98 = vld [vmem:[#allocation5 + $0x8] sm:$0xff]
    %v99 = vld [vmem:[#allocation5 + $0x10] sm:$0xff]
    %v100 = vld [vmem:[#allocation5 + $0x18] sm:$0xff]
    %v101 = vld [vmem:[#allocation5 + $0x20] sm:$0xff]
    %v102 = vld [vmem:[#allocation5 + $0x28] sm:$0xff]
    %v103 = vld [vmem:[#allocation5 + $0x30] sm:$0xff]
    %v104 = vld [vmem:[#allocation5 + $0x38] sm:$0xff]
    %v105 = vld [vmem:[#allocation5 + $0x40] sm:$0xff]
    %v106 = vld [vmem:[#allocation5 + $0x48] sm:$0xff]
    %v107 = vld [vmem:[#allocation5 + $0x50] sm:$0xff]
    %v108 = vld [vmem:[#allocation5 + $0x58] sm:$0xff]
    %v109 = vld [vmem:[#allocation5 + $0x60] sm:$0xff]
    %v110 = vld [vmem:[#allocation5 + $0x68] sm:$0xff]
    %v111 = vld [vmem:[#allocation5 + $0x70] sm:$0xff]
    %v112 = vld [vmem:[#allocation5 + $0x78] sm:$0xff]
    %v113 = vld [vmem:[#allocation8] sm:$0xff]
    %v114 = vld [vmem:[#allocation8 + $0x8] sm:$0xff]
    %v115 = vld [vmem:[#allocation8 + $0x10] sm:$0xff]
    %v116 = vld [vmem:[#allocation8 + $0x18] sm:$0xff]
    %v117 = vld [vmem:[#allocation8 + $0x20] sm:$0xff]
    %v118 = vld [vmem:[#allocation8 + $0x28] sm:$0xff]
    %v119 = vld [vmem:[#allocation8 + $0x30] sm:$0xff]
    %v120 = vld [vmem:[#allocation8 + $0x38] sm:$0xff]
    %v121 = vld [vmem:[#allocation8 + $0x40] sm:$0xff]
    %v122 = vld [vmem:[#allocation8 + $0x48] sm:$0xff]
    %v123 = vld [vmem:[#allocation8 + $0x50] sm:$0xff]
    %v124 = vld [vmem:[#allocation8 + $0x58] sm:$0xff]
    %v125 = vld [vmem:[#allocation8 + $0x60] sm:$0xff]
    %v126 = vld [vmem:[#allocation8 + $0x68] sm:$0xff]
    %v127 = vld [vmem:[#allocation8 + $0x70] sm:$0xff]
    %v128 = vld [vmem:[#allocation8 + $0x78] sm:$0xff]
    %v129 = vld [vmem:[#allocation8 + $0x80] sm:$0xff]
    %v130 = vld [vmem:[#allocation8 + $0x88] sm:$0xff]
    %v131 = vld [vmem:[#allocation8 + $0x90] sm:$0xff]
    %v132 = vld [vmem:[#allocation8 + $0x98] sm:$0xff]
    %v133 = vld [vmem:[#allocation8 + $0xa0] sm:$0xff]
    %v134 = vld [vmem:[#allocation8 + $0xa8] sm:$0xff]
    %v135 = vld [vmem:[#allocation8 + $0xb0] sm:$0xff]
    %v136 = vld [vmem:[#allocation8 + $0xb8] sm:$0xff]
    %v137 = vld [vmem:[#allocation8 + $0xc0] sm:$0xff]
    %v138 = vld [vmem:[#allocation8 + $0xc8] sm:$0xff]
    %v139 = vld [vmem:[#allocation8 + $0xd0] sm:$0xff]
    %v140 = vld [vmem:[#allocation8 + $0xd8] sm:$0xff]
    %v141 = vld [vmem:[#allocation8 + $0xe0] sm:$0xff]
    %v142 = vld [vmem:[#allocation8 + $0xe8] sm:$0xff]
    %v143 = vld [vmem:[#allocation8 + $0xf0] sm:$0xff]
    %v144 = vld [vmem:[#allocation8 + $0xf8] sm:$0xff]
    %v145 = vld [vmem:[#allocation8 + $0x100] sm:$0xff]
    %v146 = vld [vmem:[#allocation8 + $0x108] sm:$0xff]
    %v147 = vld [vmem:[#allocation8 + $0x110] sm:$0xff]
    %v148 = vld [vmem:[#allocation8 + $0x118] sm:$0xff]
    %v149 = vld [vmem:[#allocation8 + $0x120] sm:$0xff]
    %v150 = vld [vmem:[#allocation8 + $0x128] sm:$0xff]
    %v151 = vld [vmem:[#allocation8 + $0x130] sm:$0xff]
    %v152 = vld [vmem:[#allocation8 + $0x138] sm:$0xff]
    %v153 = vld [vmem:[#allocation8 + $0x140] sm:$0xff]
    %v154 = vld [vmem:[#allocation8 + $0x148] sm:$0xff]
    %v155 = vld [vmem:[#allocation8 + $0x150] sm:$0xff]
    %v156 = vld [vmem:[#allocation8 + $0x158] sm:$0xff]
    %v157 = vld [vmem:[#allocation8 + $0x160] sm:$0xff]
    %v158 = vld [vmem:[#allocation8 + $0x168] sm:$0xff]
    %v159 = vld [vmem:[#allocation8 + $0x170] sm:$0xff]
    %v160 = vld [vmem:[#allocation8 + $0x178] sm:$0xff]
    %v161 = vld [vmem:[#allocation8 + $0x180] sm:$0xff]
    %v162 = vld [vmem:[#allocation8 + $0x188] sm:$0xff]
    %v163 = vld [vmem:[#allocation8 + $0x190] sm:$0xff]
    %v164 = vld [vmem:[#allocation8 + $0x198] sm:$0xff]
    %v165 = vld [vmem:[#allocation8 + $0x1a0] sm:$0xff]
    %v166 = vld [vmem:[#allocation8 + $0x1a8] sm:$0xff]
    %v167 = vld [vmem:[#allocation8 + $0x1b0] sm:$0xff]
    %v168 = vld [vmem:[#allocation8 + $0x1b8] sm:$0xff]
    %v169 = vld [vmem:[#allocation8 + $0x1c0] sm:$0xff]
    %v170 = vld [vmem:[#allocation8 + $0x1c8] sm:$0xff]
    %v171 = vld [vmem:[#allocation8 + $0x1d0] sm:$0xff]
    %v172 = vld [vmem:[#allocation8 + $0x1d8] sm:$0xff]
    %v173 = vld [vmem:[#allocation8 + $0x1e0] sm:$0xff]
    %v174 = vld [vmem:[#allocation8 + $0x1e8] sm:$0xff]
    %v175 = vld [vmem:[#allocation8 + $0x1f0] sm:$0xff]
    %v176 = vld [vmem:[#allocation8 + $0x1f8] sm:$0xff]
    %v177 = vld [vmem:[#allocation8 + $0x200] sm:$0xff]
    %v178 = vld [vmem:[#allocation8 + $0x208] sm:$0xff]
    %v179 = vld [vmem:[#allocation8 + $0x210] sm:$0xff]
    %v180 = vld [vmem:[#allocation8 + $0x218] sm:$0xff]
    %v181 = vld [vmem:[#allocation8 + $0x220] sm:$0xff]
    %v182 = vld [vmem:[#allocation8 + $0x228] sm:$0xff]
    %v183 = vld [vmem:[#allocation8 + $0x230] sm:$0xff]
    %v184 = vld [vmem:[#allocation8 + $0x238] sm:$0xff]
    %v185 = vld [vmem:[#allocation8 + $0x240] sm:$0xff]
    %v186 = vld [vmem:[#allocation8 + $0x248] sm:$0xff]
    %v187 = vld [vmem:[#allocation8 + $0x250] sm:$0xff]
    %v188 = vld [vmem:[#allocation8 + $0x258] sm:$0xff]
    %v189 = vld [vmem:[#allocation8 + $0x260] sm:$0xff]
    %v190 = vld [vmem:[#allocation8 + $0x268] sm:$0xff]
    %v191 = vld [vmem:[#allocation8 + $0x270] sm:$0xff]
    %v192 = vld [vmem:[#allocation8 + $0x278] sm:$0xff]
    %v193 = vld [vmem:[#allocation8 + $0x280] sm:$0xff]
    %v194 = vld [vmem:[#allocation8 + $0x288] sm:$0xff]
    %v195 = vld [vmem:[#allocation8 + $0x290] sm:$0xff]
    %v196 = vld [vmem:[#allocation8 + $0x298] sm:$0xff]
    %v197 = vld [vmem:[#allocation8 + $0x2a0] sm:$0xff]
    %v198 = vld [vmem:[#allocation8 + $0x2a8] sm:$0xff]
    %v199 = vld [vmem:[#allocation8 + $0x2b0] sm:$0xff]
    %v200 = vld [vmem:[#allocation8 + $0x2b8] sm:$0xff]
    %v201 = vld [vmem:[#allocation8 + $0x2c0] sm:$0xff]
    %v202 = vld [vmem:[#allocation8 + $0x2c8] sm:$0xff]
    %v203 = vld [vmem:[#allocation8 + $0x2d0] sm:$0xff]
    %v204 = vld [vmem:[#allocation8 + $0x2d8] sm:$0xff]
    %v205 = vld [vmem:[#allocation8 + $0x2e0] sm:$0xff]
    %v206 = vld [vmem:[#allocation8 + $0x2e8] sm:$0xff]
    %v207 = vld [vmem:[#allocation8 + $0x2f0] sm:$0xff]
    %v208 = vld [vmem:[#allocation8 + $0x2f8] sm:$0xff]
    %v209 = vld [vmem:[#allocation8 + $0x300] sm:$0xff]
    %v210 = vld [vmem:[#allocation8 + $0x308] sm:$0xff]
    %v211 = vld [vmem:[#allocation8 + $0x310] sm:$0xff]
    %v212 = vld [vmem:[#allocation8 + $0x318] sm:$0xff]
    %v213 = vld [vmem:[#allocation8 + $0x320] sm:$0xff]
    %v214 = vld [vmem:[#allocation8 + $0x328] sm:$0xff]
    %v215 = vld [vmem:[#allocation8 + $0x330] sm:$0xff]
    %v216 = vld [vmem:[#allocation8 + $0x338] sm:$0xff]
    %v217 = vld [vmem:[#allocation8 + $0x340] sm:$0xff]
    %v218 = vld [vmem:[#allocation8 + $0x348] sm:$0xff]
    %v219 = vld [vmem:[#allocation8 + $0x350] sm:$0xff]
    %v220 = vld [vmem:[#allocation8 + $0x358] sm:$0xff]
    %v221 = vld [vmem:[#allocation8 + $0x360] sm:$0xff]
    %v222 = vld [vmem:[#allocation8 + $0x368] sm:$0xff]
    %v223 = vld [vmem:[#allocation8 + $0x370] sm:$0xff]
    %v224 = vld [vmem:[#allocation8 + $0x378] sm:$0xff]
    %v225 = vld [vmem:[#allocation8 + $0x380] sm:$0xff]
    %v226 = vld [vmem:[#allocation8 + $0x388] sm:$0xff]
    %v227 = vld [vmem:[#allocation8 + $0x390] sm:$0xff]
    %v228 = vld [vmem:[#allocation8 + $0x398] sm:$0xff]
    %v229 = vld [vmem:[#allocation8 + $0x3a0] sm:$0xff]
    %v230 = vld [vmem:[#allocation8 + $0x3a8] sm:$0xff]
    %v231 = vld [vmem:[#allocation8 + $0x3b0] sm:$0xff]
    %v232 = vld [vmem:[#allocation8 + $0x3b8] sm:$0xff]
    %v233 = vld [vmem:[#allocation8 + $0x3c0] sm:$0xff]
    %v234 = vld [vmem:[#allocation8 + $0x3c8] sm:$0xff]
    %v235 = vld [vmem:[#allocation8 + $0x3d0] sm:$0xff]
    %v236 = vld [vmem:[#allocation8 + $0x3d8] sm:$0xff]
    %v237 = vld [vmem:[#allocation8 + $0x3e0] sm:$0xff]
    %v238 = vld [vmem:[#allocation8 + $0x3e8] sm:$0xff]
    %v239 = vld [vmem:[#allocation8 + $0x3f0] sm:$0xff]
    %v240 = vld [vmem:[#allocation8 + $0x3f8] sm:$0xff]
    %v241 = vld [vmem:[#allocation8 + $0x400] sm:$0xff]
    %v242 = vld [vmem:[#allocation8 + $0x408] sm:$0xff]
    %v243 = vld [vmem:[#allocation8 + $0x410] sm:$0xff]
    %v244 = vld [vmem:[#allocation8 + $0x418] sm:$0xff]
    %v245 = vld [vmem:[#allocation8 + $0x420] sm:$0xff]
    %v246 = vld [vmem:[#allocation8 + $0x428] sm:$0xff]
    %v247 = vld [vmem:[#allocation8 + $0x430] sm:$0xff]
    %v248 = vld [vmem:[#allocation8 + $0x438] sm:$0xff]
    %v249 = vld [vmem:[#allocation8 + $0x440] sm:$0xff]
    %v250 = vld [vmem:[#allocation8 + $0x448] sm:$0xff]
    %v251 = vld [vmem:[#allocation8 + $0x450] sm:$0xff]
    %v252 = vld [vmem:[#allocation8 + $0x458] sm:$0xff]
    %v253 = vld [vmem:[#allocation8 + $0x460] sm:$0xff]
    %v254 = vld [vmem:[#allocation8 + $0x468] sm:$0xff]
    %v255 = vld [vmem:[#allocation8 + $0x470] sm:$0xff]
    %v256 = vld [vmem:[#allocation8 + $0x478] sm:$0xff]
    %v257 = vld [vmem:[#allocation8 + $0x480] sm:$0xff]
    %v258 = vld [vmem:[#allocation8 + $0x488] sm:$0xff]
    %v259 = vld [vmem:[#allocation8 + $0x490] sm:$0xff]
    %v260 = vld [vmem:[#allocation8 + $0x498] sm:$0xff]
    %v261 = vld [vmem:[#allocation8 + $0x4a0] sm:$0xff]
    %v262 = vld [vmem:[#allocation8 + $0x4a8] sm:$0xff]
    %v263 = vld [vmem:[#allocation8 + $0x4b0] sm:$0xff]
    %v264 = vld [vmem:[#allocation8 + $0x4b8] sm:$0xff]
    %v265 = vld [vmem:[#allocation8 + $0x4c0] sm:$0xff]
    %v266 = vld [vmem:[#allocation8 + $0x4c8] sm:$0xff]
    %v267 = vld [vmem:[#allocation8 + $0x4d0] sm:$0xff]
    %v268 = vld [vmem:[#allocation8 + $0x4d8] sm:$0xff]
    %v269 = vld [vmem:[#allocation8 + $0x4e0] sm:$0xff]
    %v270 = vld [vmem:[#allocation8 + $0x4e8] sm:$0xff]
    %v271 = vld [vmem:[#allocation8 + $0x4f0] sm:$0xff]
    %v272 = vld [vmem:[#allocation8 + $0x4f8] sm:$0xff]
    %v273 = vld [vmem:[#allocation8 + $0x500] sm:$0xff]
    %v274 = vld [vmem:[#allocation8 + $0x508] sm:$0xff]
    %v275 = vld [vmem:[#allocation8 + $0x510] sm:$0xff]
    %v276 = vld [vmem:[#allocation8 + $0x518] sm:$0xff]
    %v277 = vld [vmem:[#allocation8 + $0x520] sm:$0xff]
    %v278 = vld [vmem:[#allocation8 + $0x528] sm:$0xff]
    %v279 = vld [vmem:[#allocation8 + $0x530] sm:$0xff]
    %v280 = vld [vmem:[#allocation8 + $0x538] sm:$0xff]
    %v281 = vld [vmem:[#allocation8 + $0x540] sm:$0xff]
    %v282 = vld [vmem:[#allocation8 + $0x548] sm:$0xff]
    %v283 = vld [vmem:[#allocation8 + $0x550] sm:$0xff]
    %v284 = vld [vmem:[#allocation8 + $0x558] sm:$0xff]
    %v285 = vld [vmem:[#allocation8 + $0x560] sm:$0xff]
    %v286 = vld [vmem:[#allocation8 + $0x568] sm:$0xff]
    %v287 = vld [vmem:[#allocation8 + $0x570] sm:$0xff]
    %v288 = vld [vmem:[#allocation8 + $0x578] sm:$0xff]
    %v289 = vld [vmem:[#allocation8 + $0x580] sm:$0xff]
    %v290 = vld [vmem:[#allocation8 + $0x588] sm:$0xff]
    %v291 = vld [vmem:[#allocation8 + $0x590] sm:$0xff]
    %v292 = vld [vmem:[#allocation8 + $0x598] sm:$0xff]
    %v293 = vld [vmem:[#allocation8 + $0x5a0] sm:$0xff]
    %v294 = vld [vmem:[#allocation8 + $0x5a8] sm:$0xff]
    %v295 = vld [vmem:[#allocation8 + $0x5b0] sm:$0xff]
    %v296 = vld [vmem:[#allocation8 + $0x5b8] sm:$0xff]
    %v297 = vld [vmem:[#allocation8 + $0x5c0] sm:$0xff]
    %v298 = vld [vmem:[#allocation8 + $0x5c8] sm:$0xff]
    %v299 = vld [vmem:[#allocation8 + $0x5d0] sm:$0xff]
    %v300 = vld [vmem:[#allocation8 + $0x5d8] sm:$0xff]
    %v301 = vld [vmem:[#allocation8 + $0x5e0] sm:$0xff]
    %v302 = vld [vmem:[#allocation8 + $0x5e8] sm:$0xff]
    %v303 = vld [vmem:[#allocation8 + $0x5f0] sm:$0xff]
    %v304 = vld [vmem:[#allocation8 + $0x5f8] sm:$0xff]
    %v305 = vld [vmem:[#allocation8 + $0x600] sm:$0xff]
    %v306 = vld [vmem:[#allocation8 + $0x608] sm:$0xff]
    %v307 = vld [vmem:[#allocation8 + $0x610] sm:$0xff]
    %v308 = vld [vmem:[#allocation8 + $0x618] sm:$0xff]
    %v309 = vld [vmem:[#allocation8 + $0x620] sm:$0xff]
    %v310 = vld [vmem:[#allocation8 + $0x628] sm:$0xff]
    %v311 = vld [vmem:[#allocation8 + $0x630] sm:$0xff]
    %v312 = vld [vmem:[#allocation8 + $0x638] sm:$0xff]
    %v313 = vld [vmem:[#allocation8 + $0x640] sm:$0xff]
    %v314 = vld [vmem:[#allocation8 + $0x648] sm:$0xff]
    %v315 = vld [vmem:[#allocation8 + $0x650] sm:$0xff]
    %v316 = vld [vmem:[#allocation8 + $0x658] sm:$0xff]
    %v317 = vld [vmem:[#allocation8 + $0x660] sm:$0xff]
    %v318 = vld [vmem:[#allocation8 + $0x668] sm:$0xff]
    %v319 = vld [vmem:[#allocation8 + $0x670] sm:$0xff]
    %v320 = vld [vmem:[#allocation8 + $0x678] sm:$0xff]
    %v321 = vld [vmem:[#allocation8 + $0x680] sm:$0xff]
    %v322 = vld [vmem:[#allocation8 + $0x688] sm:$0xff]
    %v323 = vld [vmem:[#allocation8 + $0x690] sm:$0xff]
    %v324 = vld [vmem:[#allocation8 + $0x698] sm:$0xff]
    %v325 = vld [vmem:[#allocation8 + $0x6a0] sm:$0xff]
    %v326 = vld [vmem:[#allocation8 + $0x6a8] sm:$0xff]
    %v327 = vld [vmem:[#allocation8 + $0x6b0] sm:$0xff]
    %v328 = vld [vmem:[#allocation8 + $0x6b8] sm:$0xff]
    %v329 = vld [vmem:[#allocation8 + $0x6c0] sm:$0xff]
    %v330 = vld [vmem:[#allocation8 + $0x6c8] sm:$0xff]
    %v331 = vld [vmem:[#allocation8 + $0x6d0] sm:$0xff]
    %v332 = vld [vmem:[#allocation8 + $0x6d8] sm:$0xff]
    %v333 = vld [vmem:[#allocation8 + $0x6e0] sm:$0xff]
    %v334 = vld [vmem:[#allocation8 + $0x6e8] sm:$0xff]
    %v335 = vld [vmem:[#allocation8 + $0x6f0] sm:$0xff]
    %v336 = vld [vmem:[#allocation8 + $0x6f8] sm:$0xff]
    %v337 = vld [vmem:[#allocation8 + $0x700] sm:$0xff]
    %v338 = vld [vmem:[#allocation8 + $0x708] sm:$0xff]
    %v339 = vld [vmem:[#allocation8 + $0x710] sm:$0xff]
    %v340 = vld [vmem:[#allocation8 + $0x718] sm:$0xff]
    %v341 = vld [vmem:[#allocation8 + $0x720] sm:$0xff]
    %v342 = vld [vmem:[#allocation8 + $0x728] sm:$0xff]
    %v343 = vld [vmem:[#allocation8 + $0x730] sm:$0xff]
    %v344 = vld [vmem:[#allocation8 + $0x738] sm:$0xff]
    %v345 = vld [vmem:[#allocation8 + $0x740] sm:$0xff]
    %v346 = vld [vmem:[#allocation8 + $0x748] sm:$0xff]
    %v347 = vld [vmem:[#allocation8 + $0x750] sm:$0xff]
    %v348 = vld [vmem:[#allocation8 + $0x758] sm:$0xff]
    %v349 = vld [vmem:[#allocation8 + $0x760] sm:$0xff]
    %v350 = vld [vmem:[#allocation8 + $0x768] sm:$0xff]
    %v351 = vld [vmem:[#allocation8 + $0x770] sm:$0xff]
    %v352 = vld [vmem:[#allocation8 + $0x778] sm:$0xff]
    %v353 = vld [vmem:[#allocation8 + $0x780] sm:$0xff]
    %v354 = vld [vmem:[#allocation8 + $0x788] sm:$0xff]
    %v355 = vld [vmem:[#allocation8 + $0x790] sm:$0xff]
    %v356 = vld [vmem:[#allocation8 + $0x798] sm:$0xff]
    %v357 = vld [vmem:[#allocation8 + $0x7a0] sm:$0xff]
    %v358 = vld [vmem:[#allocation8 + $0x7a8] sm:$0xff]
    %v359 = vld [vmem:[#allocation8 + $0x7b0] sm:$0xff]
    %v360 = vld [vmem:[#allocation8 + $0x7b8] sm:$0xff]
    %v361 = vld [vmem:[#allocation8 + $0x7c0] sm:$0xff]
    %v362 = vld [vmem:[#allocation8 + $0x7c8] sm:$0xff]
    %v363 = vld [vmem:[#allocation8 + $0x7d0] sm:$0xff]
    %v364 = vld [vmem:[#allocation8 + $0x7d8] sm:$0xff]
    %v365 = vld [vmem:[#allocation8 + $0x7e0] sm:$0xff]
    %v366 = vld [vmem:[#allocation8 + $0x7e8] sm:$0xff]
    %v367 = vld [vmem:[#allocation8 + $0x7f0] sm:$0xff]
    %v368 = vld [vmem:[#allocation8 + $0x7f8] sm:$0xff]
    %v369 = vld [vmem:[#allocation10] sm:$0xff]
    %v371 = vperm.slane %v369, 0
    %v372 = vperm.slane %v369, 1
    %v373 = vperm.slane %v369, 2
    %v374 = vperm.slane %v369, 3
    %v375 = vperm.slane %v369, 4
    %v376 = vperm.slane %v369, 5
    %v377 = vperm.slane %v369, 6
    %v378 = vperm.slane %v369, 7
    %v403 = vunpack.c.l.b16 %v97
    %v404 = vunpack.c.h.b16 %v97
    %v405 = vunpack.c.l.b16 %v98
    %v406 = vunpack.c.h.b16 %v98
    %v407 = vunpack.c.l.b16 %v99
    %v408 = vunpack.c.h.b16 %v99
    %v409 = vunpack.c.l.b16 %v100
    %v410 = vunpack.c.h.b16 %v100
    %v411 = vunpack.c.l.b16 %v101
    %v412 = vunpack.c.h.b16 %v101
    %v413 = vunpack.c.l.b16 %v102
    %v414 = vunpack.c.h.b16 %v102
    %v415 = vunpack.c.l.b16 %v103
    %v416 = vunpack.c.h.b16 %v103
    %v417 = vunpack.c.l.b16 %v104
    %v418 = vunpack.c.h.b16 %v104
    %v419 = vunpack.c.l.b16 %v105
    %v420 = vunpack.c.h.b16 %v105
    %v421 = vunpack.c.l.b16 %v106
    %v422 = vunpack.c.h.b16 %v106
    %v423 = vunpack.c.l.b16 %v107
    %v424 = vunpack.c.h.b16 %v107
    %v425 = vunpack.c.l.b16 %v108
    %v426 = vunpack.c.h.b16 %v108
    %v427 = vunpack.c.l.b16 %v109
    %v428 = vunpack.c.h.b16 %v109
    %v429 = vunpack.c.l.b16 %v110
    %v430 = vunpack.c.h.b16 %v110
    %v431 = vunpack.c.l.b16 %v111
    %v432 = vunpack.c.h.b16 %v111
    %v433 = vunpack.c.l.b16 %v112
    %v434 = vunpack.c.h.b16 %v112
    %v435 = vpack.c.b16 %v407, %v403
    %v436 = vpack.c.b16 %v408, %v404
    %v437 = vpack.c.b16 %v409, %v405
    %v438 = vpack.c.b16 %v410, %v406
    %v439 = vpack.c.b16 %v415, %v411
    %v440 = vpack.c.b16 %v416, %v412
    %v441 = vpack.c.b16 %v417, %v413
    %v442 = vpack.c.b16 %v418, %v414
    %v443 = vpack.c.b16 %v423, %v419
    %v444 = vpack.c.b16 %v424, %v420
    %v445 = vpack.c.b16 %v425, %v421
    %v446 = vpack.c.b16 %v426, %v422
    %v447 = vpack.c.b16 %v431, %v427
    %v448 = vpack.c.b16 %v432, %v428
    %v449 = vpack.c.b16 %v433, %v429
    %v450 = vpack.c.b16 %v434, %v430
    %v723 = vunpack.c.l.b16 %v113
    %v724 = vunpack.c.h.b16 %v113
    %v725 = vunpack.c.l.b16 %v114
    %v726 = vunpack.c.h.b16 %v114
    %v727 = vunpack.c.l.b16 %v115
    %v728 = vunpack.c.h.b16 %v115
    %v729 = vunpack.c.l.b16 %v116
    %v730 = vunpack.c.h.b16 %v116
    %v731 = vunpack.c.l.b16 %v117
    %v732 = vunpack.c.h.b16 %v117
    %v733 = vunpack.c.l.b16 %v118
    %v734 = vunpack.c.h.b16 %v118
    %v735 = vunpack.c.l.b16 %v119
    %v736 = vunpack.c.h.b16 %v119
    %v737 = vunpack.c.l.b16 %v120
    %v738 = vunpack.c.h.b16 %v120
    %v739 = vunpack.c.l.b16 %v121
    %v740 = vunpack.c.h.b16 %v121
    %v741 = vunpack.c.l.b16 %v122
    %v742 = vunpack.c.h.b16 %v122
    %v743 = vunpack.c.l.b16 %v123
    %v744 = vunpack.c.h.b16 %v123
    %v745 = vunpack.c.l.b16 %v124
    %v746 = vunpack.c.h.b16 %v124
    %v747 = vunpack.c.l.b16 %v125
    %v748 = vunpack.c.h.b16 %v125
    %v749 = vunpack.c.l.b16 %v126
    %v750 = vunpack.c.h.b16 %v126
    %v751 = vunpack.c.l.b16 %v127
    %v752 = vunpack.c.h.b16 %v127
    %v753 = vunpack.c.l.b16 %v128
    %v754 = vunpack.c.h.b16 %v128
    %v755 = vunpack.c.l.b16 %v129
    %v756 = vunpack.c.h.b16 %v129
    %v757 = vunpack.c.l.b16 %v130
    %v758 = vunpack.c.h.b16 %v130
    %v759 = vunpack.c.l.b16 %v131
    %v760 = vunpack.c.h.b16 %v131
    %v761 = vunpack.c.l.b16 %v132
    %v762 = vunpack.c.h.b16 %v132
    %v763 = vunpack.c.l.b16 %v133
    %v764 = vunpack.c.h.b16 %v133
    %v765 = vunpack.c.l.b16 %v134
    %v766 = vunpack.c.h.b16 %v134
    %v767 = vunpack.c.l.b16 %v135
    %v768 = vunpack.c.h.b16 %v135
    %v769 = vunpack.c.l.b16 %v136
    %v770 = vunpack.c.h.b16 %v136
    %v771 = vunpack.c.l.b16 %v137
    %v772 = vunpack.c.h.b16 %v137
    %v773 = vunpack.c.l.b16 %v138
    %v774 = vunpack.c.h.b16 %v138
    %v775 = vunpack.c.l.b16 %v139
    %v776 = vunpack.c.h.b16 %v139
    %v777 = vunpack.c.l.b16 %v140
    %v778 = vunpack.c.h.b16 %v140
    %v779 = vunpack.c.l.b16 %v141
    %v780 = vunpack.c.h.b16 %v141
    %v781 = vunpack.c.l.b16 %v142
    %v782 = vunpack.c.h.b16 %v142
    %v783 = vunpack.c.l.b16 %v143
    %v784 = vunpack.c.h.b16 %v143
    %v785 = vunpack.c.l.b16 %v144
    %v786 = vunpack.c.h.b16 %v144
    %v787 = vunpack.c.l.b16 %v145
    %v788 = vunpack.c.h.b16 %v145
    %v789 = vunpack.c.l.b16 %v146
    %v790 = vunpack.c.h.b16 %v146
    %v791 = vunpack.c.l.b16 %v147
    %v792 = vunpack.c.h.b16 %v147
    %v793 = vunpack.c.l.b16 %v148
    %v794 = vunpack.c.h.b16 %v148
    %v795 = vunpack.c.l.b16 %v149
    %v796 = vunpack.c.h.b16 %v149
    %v797 = vunpack.c.l.b16 %v150
    %v798 = vunpack.c.h.b16 %v150
    %v799 = vunpack.c.l.b16 %v151
    %v800 = vunpack.c.h.b16 %v151
    %v801 = vunpack.c.l.b16 %v152
    %v802 = vunpack.c.h.b16 %v152
    %v803 = vunpack.c.l.b16 %v153
    %v804 = vunpack.c.h.b16 %v153
    %v805 = vunpack.c.l.b16 %v154
    %v806 = vunpack.c.h.b16 %v154
    %v807 = vunpack.c.l.b16 %v155
    %v808 = vunpack.c.h.b16 %v155
    %v809 = vunpack.c.l.b16 %v156
    %v810 = vunpack.c.h.b16 %v156
    %v811 = vunpack.c.l.b16 %v157
    %v812 = vunpack.c.h.b16 %v157
    %v813 = vunpack.c.l.b16 %v158
    %v814 = vunpack.c.h.b16 %v158
    %v815 = vunpack.c.l.b16 %v159
    %v816 = vunpack.c.h.b16 %v159
    %v817 = vunpack.c.l.b16 %v160
    %v818 = vunpack.c.h.b16 %v160
    %v819 = vunpack.c.l.b16 %v161
    %v820 = vunpack.c.h.b16 %v161
    %v821 = vunpack.c.l.b16 %v162
    %v822 = vunpack.c.h.b16 %v162
    %v823 = vunpack.c.l.b16 %v163
    %v824 = vunpack.c.h.b16 %v163
    %v825 = vunpack.c.l.b16 %v164
    %v826 = vunpack.c.h.b16 %v164
    %v827 = vunpack.c.l.b16 %v165
    %v828 = vunpack.c.h.b16 %v165
    %v829 = vunpack.c.l.b16 %v166
    %v830 = vunpack.c.h.b16 %v166
    %v831 = vunpack.c.l.b16 %v167
    %v832 = vunpack.c.h.b16 %v167
    %v833 = vunpack.c.l.b16 %v168
    %v834 = vunpack.c.h.b16 %v168
    %v835 = vunpack.c.l.b16 %v169
    %v836 = vunpack.c.h.b16 %v169
    %v837 = vunpack.c.l.b16 %v170
    %v838 = vunpack.c.h.b16 %v170
    %v839 = vunpack.c.l.b16 %v171
    %v840 = vunpack.c.h.b16 %v171
    %v841 = vunpack.c.l.b16 %v172
    %v842 = vunpack.c.h.b16 %v172
    %v843 = vunpack.c.l.b16 %v173
    %v844 = vunpack.c.h.b16 %v173
    %v845 = vunpack.c.l.b16 %v174
    %v846 = vunpack.c.h.b16 %v174
    %v847 = vunpack.c.l.b16 %v175
    %v848 = vunpack.c.h.b16 %v175
    %v849 = vunpack.c.l.b16 %v176
    %v850 = vunpack.c.h.b16 %v176
    %v851 = vunpack.c.l.b16 %v177
    %v852 = vunpack.c.h.b16 %v177
    %v853 = vunpack.c.l.b16 %v178
    %v854 = vunpack.c.h.b16 %v178
    %v855 = vunpack.c.l.b16 %v179
    %v856 = vunpack.c.h.b16 %v179
    %v857 = vunpack.c.l.b16 %v180
    %v858 = vunpack.c.h.b16 %v180
    %v859 = vunpack.c.l.b16 %v181
    %v860 = vunpack.c.h.b16 %v181
    %v861 = vunpack.c.l.b16 %v182
    %v862 = vunpack.c.h.b16 %v182
    %v863 = vunpack.c.l.b16 %v183
    %v864 = vunpack.c.h.b16 %v183
    %v865 = vunpack.c.l.b16 %v184
    %v866 = vunpack.c.h.b16 %v184
    %v867 = vunpack.c.l.b16 %v185
    %v868 = vunpack.c.h.b16 %v185
    %v869 = vunpack.c.l.b16 %v186
    %v870 = vunpack.c.h.b16 %v186
    %v871 = vunpack.c.l.b16 %v187
    %v872 = vunpack.c.h.b16 %v187
    %v873 = vunpack.c.l.b16 %v188
    %v874 = vunpack.c.h.b16 %v188
    %v875 = vunpack.c.l.b16 %v189
    %v876 = vunpack.c.h.b16 %v189
    %v877 = vunpack.c.l.b16 %v190
    %v878 = vunpack.c.h.b16 %v190
    %v879 = vunpack.c.l.b16 %v191
    %v880 = vunpack.c.h.b16 %v191
    %v881 = vunpack.c.l.b16 %v192
    %v882 = vunpack.c.h.b16 %v192
    %v883 = vunpack.c.l.b16 %v193
    %v884 = vunpack.c.h.b16 %v193
    %v885 = vunpack.c.l.b16 %v194
    %v886 = vunpack.c.h.b16 %v194
    %v887 = vunpack.c.l.b16 %v195
    %v888 = vunpack.c.h.b16 %v195
    %v889 = vunpack.c.l.b16 %v196
    %v890 = vunpack.c.h.b16 %v196
    %v891 = vunpack.c.l.b16 %v197
    %v892 = vunpack.c.h.b16 %v197
    %v893 = vunpack.c.l.b16 %v198
    %v894 = vunpack.c.h.b16 %v198
    %v895 = vunpack.c.l.b16 %v199
    %v896 = vunpack.c.h.b16 %v199
    %v897 = vunpack.c.l.b16 %v200
    %v898 = vunpack.c.h.b16 %v200
    %v899 = vunpack.c.l.b16 %v201
    %v900 = vunpack.c.h.b16 %v201
    %v901 = vunpack.c.l.b16 %v202
    %v902 = vunpack.c.h.b16 %v202
    %v903 = vunpack.c.l.b16 %v203
    %v904 = vunpack.c.h.b16 %v203
    %v905 = vunpack.c.l.b16 %v204
    %v906 = vunpack.c.h.b16 %v204
    %v907 = vunpack.c.l.b16 %v205
    %v908 = vunpack.c.h.b16 %v205
    %v909 = vunpack.c.l.b16 %v206
    %v910 = vunpack.c.h.b16 %v206
    %v911 = vunpack.c.l.b16 %v207
    %v912 = vunpack.c.h.b16 %v207
    %v913 = vunpack.c.l.b16 %v208
    %v914 = vunpack.c.h.b16 %v208
    %v915 = vunpack.c.l.b16 %v209
    %v916 = vunpack.c.h.b16 %v209
    %v917 = vunpack.c.l.b16 %v210
    %v918 = vunpack.c.h.b16 %v210
    %v919 = vunpack.c.l.b16 %v211
    %v920 = vunpack.c.h.b16 %v211
    %v921 = vunpack.c.l.b16 %v212
    %v922 = vunpack.c.h.b16 %v212
    %v923 = vunpack.c.l.b16 %v213
    %v924 = vunpack.c.h.b16 %v213
    %v925 = vunpack.c.l.b16 %v214
    %v926 = vunpack.c.h.b16 %v214
    %v927 = vunpack.c.l.b16 %v215
    %v928 = vunpack.c.h.b16 %v215
    %v929 = vunpack.c.l.b16 %v216
    %v930 = vunpack.c.h.b16 %v216
    %v931 = vunpack.c.l.b16 %v217
    %v932 = vunpack.c.h.b16 %v217
    %v933 = vunpack.c.l.b16 %v218
    %v934 = vunpack.c.h.b16 %v218
    %v935 = vunpack.c.l.b16 %v219
    %v936 = vunpack.c.h.b16 %v219
    %v937 = vunpack.c.l.b16 %v220
    %v938 = vunpack.c.h.b16 %v220
    %v939 = vunpack.c.l.b16 %v221
    %v940 = vunpack.c.h.b16 %v221
    %v941 = vunpack.c.l.b16 %v222
    %v942 = vunpack.c.h.b16 %v222
    %v943 = vunpack.c.l.b16 %v223
    %v944 = vunpack.c.h.b16 %v223
    %v945 = vunpack.c.l.b16 %v224
    %v946 = vunpack.c.h.b16 %v224
    %v947 = vunpack.c.l.b16 %v225
    %v948 = vunpack.c.h.b16 %v225
    %v949 = vunpack.c.l.b16 %v226
    %v950 = vunpack.c.h.b16 %v226
    %v951 = vunpack.c.l.b16 %v227
    %v952 = vunpack.c.h.b16 %v227
    %v953 = vunpack.c.l.b16 %v228
    %v954 = vunpack.c.h.b16 %v228
    %v955 = vunpack.c.l.b16 %v229
    %v956 = vunpack.c.h.b16 %v229
    %v957 = vunpack.c.l.b16 %v230
    %v958 = vunpack.c.h.b16 %v230
    %v959 = vunpack.c.l.b16 %v231
    %v960 = vunpack.c.h.b16 %v231
    %v961 = vunpack.c.l.b16 %v232
    %v962 = vunpack.c.h.b16 %v232
    %v963 = vunpack.c.l.b16 %v233
    %v964 = vunpack.c.h.b16 %v233
    %v965 = vunpack.c.l.b16 %v234
    %v966 = vunpack.c.h.b16 %v234
    %v967 = vunpack.c.l.b16 %v235
    %v968 = vunpack.c.h.b16 %v235
    %v969 = vunpack.c.l.b16 %v236
    %v970 = vunpack.c.h.b16 %v236
    %v971 = vunpack.c.l.b16 %v237
    %v972 = vunpack.c.h.b16 %v237
    %v973 = vunpack.c.l.b16 %v238
    %v974 = vunpack.c.h.b16 %v238
    %v975 = vunpack.c.l.b16 %v239
    %v976 = vunpack.c.h.b16 %v239
    %v977 = vunpack.c.l.b16 %v240
    %v978 = vunpack.c.h.b16 %v240
    %v979 = vunpack.c.l.b16 %v241
    %v980 = vunpack.c.h.b16 %v241
    %v981 = vunpack.c.l.b16 %v242
    %v982 = vunpack.c.h.b16 %v242
    %v983 = vunpack.c.l.b16 %v243
    %v984 = vunpack.c.h.b16 %v243
    %v985 = vunpack.c.l.b16 %v244
    %v986 = vunpack.c.h.b16 %v244
    %v987 = vunpack.c.l.b16 %v245
    %v988 = vunpack.c.h.b16 %v245
    %v989 = vunpack.c.l.b16 %v246
    %v990 = vunpack.c.h.b16 %v246
    %v991 = vunpack.c.l.b16 %v247
    %v992 = vunpack.c.h.b16 %v247
    %v993 = vunpack.c.l.b16 %v248
    %v994 = vunpack.c.h.b16 %v248
    %v995 = vunpack.c.l.b16 %v249
    %v996 = vunpack.c.h.b16 %v249
    %v997 = vunpack.c.l.b16 %v250
    %v998 = vunpack.c.h.b16 %v250
    %v999 = vunpack.c.l.b16 %v251
    %v1000 = vunpack.c.h.b16 %v251
    %v1001 = vunpack.c.l.b16 %v252
    %v1002 = vunpack.c.h.b16 %v252
    %v1003 = vunpack.c.l.b16 %v253
    %v1004 = vunpack.c.h.b16 %v253
    %v1005 = vunpack.c.l.b16 %v254
    %v1006 = vunpack.c.h.b16 %v254
    %v1007 = vunpack.c.l.b16 %v255
    %v1008 = vunpack.c.h.b16 %v255
    %v1009 = vunpack.c.l.b16 %v256
    %v1010 = vunpack.c.h.b16 %v256
    %v1011 = vunpack.c.l.b16 %v257
    %v1012 = vunpack.c.h.b16 %v257
    %v1013 = vunpack.c.l.b16 %v258
    %v1014 = vunpack.c.h.b16 %v258
    %v1015 = vunpack.c.l.b16 %v259
    %v1016 = vunpack.c.h.b16 %v259
    %v1017 = vunpack.c.l.b16 %v260
    %v1018 = vunpack.c.h.b16 %v260
    %v1019 = vunpack.c.l.b16 %v261
    %v1020 = vunpack.c.h.b16 %v261
    %v1021 = vunpack.c.l.b16 %v262
    %v1022 = vunpack.c.h.b16 %v262
    %v1023 = vunpack.c.l.b16 %v263
    %v1024 = vunpack.c.h.b16 %v263
    %v1025 = vunpack.c.l.b16 %v264
    %v1026 = vunpack.c.h.b16 %v264
    %v1027 = vunpack.c.l.b16 %v265
    %v1028 = vunpack.c.h.b16 %v265
    %v1029 = vunpack.c.l.b16 %v266
    %v1030 = vunpack.c.h.b16 %v266
    %v1031 = vunpack.c.l.b16 %v267
    %v1032 = vunpack.c.h.b16 %v267
    %v1033 = vunpack.c.l.b16 %v268
    %v1034 = vunpack.c.h.b16 %v268
    %v1035 = vunpack.c.l.b16 %v269
    %v1036 = vunpack.c.h.b16 %v269
    %v1037 = vunpack.c.l.b16 %v270
    %v1038 = vunpack.c.h.b16 %v270
    %v1039 = vunpack.c.l.b16 %v271
    %v1040 = vunpack.c.h.b16 %v271
    %v1041 = vunpack.c.l.b16 %v272
    %v1042 = vunpack.c.h.b16 %v272
    %v1043 = vunpack.c.l.b16 %v273
    %v1044 = vunpack.c.h.b16 %v273
    %v1045 = vunpack.c.l.b16 %v274
    %v1046 = vunpack.c.h.b16 %v274
    %v1047 = vunpack.c.l.b16 %v275
    %v1048 = vunpack.c.h.b16 %v275
    %v1049 = vunpack.c.l.b16 %v276
    %v1050 = vunpack.c.h.b16 %v276
    %v1051 = vunpack.c.l.b16 %v277
    %v1052 = vunpack.c.h.b16 %v277
    %v1053 = vunpack.c.l.b16 %v278
    %v1054 = vunpack.c.h.b16 %v278
    %v1055 = vunpack.c.l.b16 %v279
    %v1056 = vunpack.c.h.b16 %v279
    %v1057 = vunpack.c.l.b16 %v280
    %v1058 = vunpack.c.h.b16 %v280
    %v1059 = vunpack.c.l.b16 %v281
    %v1060 = vunpack.c.h.b16 %v281
    %v1061 = vunpack.c.l.b16 %v282
    %v1062 = vunpack.c.h.b16 %v282
    %v1063 = vunpack.c.l.b16 %v283
    %v1064 = vunpack.c.h.b16 %v283
    %v1065 = vunpack.c.l.b16 %v284
    %v1066 = vunpack.c.h.b16 %v284
    %v1067 = vunpack.c.l.b16 %v285
    %v1068 = vunpack.c.h.b16 %v285
    %v1069 = vunpack.c.l.b16 %v286
    %v1070 = vunpack.c.h.b16 %v286
    %v1071 = vunpack.c.l.b16 %v287
    %v1072 = vunpack.c.h.b16 %v287
    %v1073 = vunpack.c.l.b16 %v288
    %v1074 = vunpack.c.h.b16 %v288
    %v1075 = vunpack.c.l.b16 %v289
    %v1076 = vunpack.c.h.b16 %v289
    %v1077 = vunpack.c.l.b16 %v290
    %v1078 = vunpack.c.h.b16 %v290
    %v1079 = vunpack.c.l.b16 %v291
    %v1080 = vunpack.c.h.b16 %v291
    %v1081 = vunpack.c.l.b16 %v292
    %v1082 = vunpack.c.h.b16 %v292
    %v1083 = vunpack.c.l.b16 %v293
    %v1084 = vunpack.c.h.b16 %v293
    %v1085 = vunpack.c.l.b16 %v294
    %v1086 = vunpack.c.h.b16 %v294
    %v1087 = vunpack.c.l.b16 %v295
    %v1088 = vunpack.c.h.b16 %v295
    %v1089 = vunpack.c.l.b16 %v296
    %v1090 = vunpack.c.h.b16 %v296
    %v1091 = vunpack.c.l.b16 %v297
    %v1092 = vunpack.c.h.b16 %v297
    %v1093 = vunpack.c.l.b16 %v298
    %v1094 = vunpack.c.h.b16 %v298
    %v1095 = vunpack.c.l.b16 %v299
    %v1096 = vunpack.c.h.b16 %v299
    %v1097 = vunpack.c.l.b16 %v300
    %v1098 = vunpack.c.h.b16 %v300
    %v1099 = vunpack.c.l.b16 %v301
    %v1100 = vunpack.c.h.b16 %v301
    %v1101 = vunpack.c.l.b16 %v302
    %v1102 = vunpack.c.h.b16 %v302
    %v1103 = vunpack.c.l.b16 %v303
    %v1104 = vunpack.c.h.b16 %v303
    %v1105 = vunpack.c.l.b16 %v304
    %v1106 = vunpack.c.h.b16 %v304
    %v1107 = vunpack.c.l.b16 %v305
    %v1108 = vunpack.c.h.b16 %v305
    %v1109 = vunpack.c.l.b16 %v306
    %v1110 = vunpack.c.h.b16 %v306
    %v1111 = vunpack.c.l.b16 %v307
    %v1112 = vunpack.c.h.b16 %v307
    %v1113 = vunpack.c.l.b16 %v308
    %v1114 = vunpack.c.h.b16 %v308
    %v1115 = vunpack.c.l.b16 %v309
    %v1116 = vunpack.c.h.b16 %v309
    %v1117 = vunpack.c.l.b16 %v310
    %v1118 = vunpack.c.h.b16 %v310
    %v1119 = vunpack.c.l.b16 %v311
    %v1120 = vunpack.c.h.b16 %v311
    %v1121 = vunpack.c.l.b16 %v312
    %v1122 = vunpack.c.h.b16 %v312
    %v1123 = vunpack.c.l.b16 %v313
    %v1124 = vunpack.c.h.b16 %v313
    %v1125 = vunpack.c.l.b16 %v314
    %v1126 = vunpack.c.h.b16 %v314
    %v1127 = vunpack.c.l.b16 %v315
    %v1128 = vunpack.c.h.b16 %v315
    %v1129 = vunpack.c.l.b16 %v316
    %v1130 = vunpack.c.h.b16 %v316
    %v1131 = vunpack.c.l.b16 %v317
    %v1132 = vunpack.c.h.b16 %v317
    %v1133 = vunpack.c.l.b16 %v318
    %v1134 = vunpack.c.h.b16 %v318
    %v1135 = vunpack.c.l.b16 %v319
    %v1136 = vunpack.c.h.b16 %v319
    %v1137 = vunpack.c.l.b16 %v320
    %v1138 = vunpack.c.h.b16 %v320
    %v1139 = vunpack.c.l.b16 %v321
    %v1140 = vunpack.c.h.b16 %v321
    %v1141 = vunpack.c.l.b16 %v322
    %v1142 = vunpack.c.h.b16 %v322
    %v1143 = vunpack.c.l.b16 %v323
    %v1144 = vunpack.c.h.b16 %v323
    %v1145 = vunpack.c.l.b16 %v324
    %v1146 = vunpack.c.h.b16 %v324
    %v1147 = vunpack.c.l.b16 %v325
    %v1148 = vunpack.c.h.b16 %v325
    %v1149 = vunpack.c.l.b16 %v326
    %v1150 = vunpack.c.h.b16 %v326
    %v1151 = vunpack.c.l.b16 %v327
    %v1152 = vunpack.c.h.b16 %v327
    %v1153 = vunpack.c.l.b16 %v328
    %v1154 = vunpack.c.h.b16 %v328
    %v1155 = vunpack.c.l.b16 %v329
    %v1156 = vunpack.c.h.b16 %v329
    %v1157 = vunpack.c.l.b16 %v330
    %v1158 = vunpack.c.h.b16 %v330
    %v1159 = vunpack.c.l.b16 %v331
    %v1160 = vunpack.c.h.b16 %v331
    %v1161 = vunpack.c.l.b16 %v332
    %v1162 = vunpack.c.h.b16 %v332
    %v1163 = vunpack.c.l.b16 %v333
    %v1164 = vunpack.c.h.b16 %v333
    %v1165 = vunpack.c.l.b16 %v334
    %v1166 = vunpack.c.h.b16 %v334
    %v1167 = vunpack.c.l.b16 %v335
    %v1168 = vunpack.c.h.b16 %v335
    %v1169 = vunpack.c.l.b16 %v336
    %v1170 = vunpack.c.h.b16 %v336
    %v1171 = vunpack.c.l.b16 %v337
    %v1172 = vunpack.c.h.b16 %v337
    %v1173 = vunpack.c.l.b16 %v338
    %v1174 = vunpack.c.h.b16 %v338
    %v1175 = vunpack.c.l.b16 %v339
    %v1176 = vunpack.c.h.b16 %v339
    %v1177 = vunpack.c.l.b16 %v340
    %v1178 = vunpack.c.h.b16 %v340
    %v1179 = vunpack.c.l.b16 %v341
    %v1180 = vunpack.c.h.b16 %v341
    %v1181 = vunpack.c.l.b16 %v342
    %v1182 = vunpack.c.h.b16 %v342
    %v1183 = vunpack.c.l.b16 %v343
    %v1184 = vunpack.c.h.b16 %v343
    %v1185 = vunpack.c.l.b16 %v344
    %v1186 = vunpack.c.h.b16 %v344
    %v1187 = vunpack.c.l.b16 %v345
    %v1188 = vunpack.c.h.b16 %v345
    %v1189 = vunpack.c.l.b16 %v346
    %v1190 = vunpack.c.h.b16 %v346
    %v1191 = vunpack.c.l.b16 %v347
    %v1192 = vunpack.c.h.b16 %v347
    %v1193 = vunpack.c.l.b16 %v348
    %v1194 = vunpack.c.h.b16 %v348
    %v1195 = vunpack.c.l.b16 %v349
    %v1196 = vunpack.c.h.b16 %v349
    %v1197 = vunpack.c.l.b16 %v350
    %v1198 = vunpack.c.h.b16 %v350
    %v1199 = vunpack.c.l.b16 %v351
    %v1200 = vunpack.c.h.b16 %v351
    %v1201 = vunpack.c.l.b16 %v352
    %v1202 = vunpack.c.h.b16 %v352
    %v1203 = vunpack.c.l.b16 %v353
    %v1204 = vunpack.c.h.b16 %v353
    %v1205 = vunpack.c.l.b16 %v354
    %v1206 = vunpack.c.h.b16 %v354
    %v1207 = vunpack.c.l.b16 %v355
    %v1208 = vunpack.c.h.b16 %v355
    %v1209 = vunpack.c.l.b16 %v356
    %v1210 = vunpack.c.h.b16 %v356
    %v1211 = vunpack.c.l.b16 %v357
    %v1212 = vunpack.c.h.b16 %v357
    %v1213 = vunpack.c.l.b16 %v358
    %v1214 = vunpack.c.h.b16 %v358
    %v1215 = vunpack.c.l.b16 %v359
    %v1216 = vunpack.c.h.b16 %v359
    %v1217 = vunpack.c.l.b16 %v360
    %v1218 = vunpack.c.h.b16 %v360
    %v1219 = vunpack.c.l.b16 %v361
    %v1220 = vunpack.c.h.b16 %v361
    %v1221 = vunpack.c.l.b16 %v362
    %v1222 = vunpack.c.h.b16 %v362
    %v1223 = vunpack.c.l.b16 %v363
    %v1224 = vunpack.c.h.b16 %v363
    %v1225 = vunpack.c.l.b16 %v364
    %v1226 = vunpack.c.h.b16 %v364
    %v1227 = vunpack.c.l.b16 %v365
    %v1228 = vunpack.c.h.b16 %v365
    %v1229 = vunpack.c.l.b16 %v366
    %v1230 = vunpack.c.h.b16 %v366
    %v1231 = vunpack.c.l.b16 %v367
    %v1232 = vunpack.c.h.b16 %v367
    %v1233 = vunpack.c.l.b16 %v368
    %v1234 = vunpack.c.h.b16 %v368
    %v1235 = vpack.c.b16 %v731, %v723
    %v1236 = vpack.c.b16 %v732, %v724
    %v1237 = vpack.c.b16 %v733, %v725
    %v1238 = vpack.c.b16 %v734, %v726
    %v1239 = vpack.c.b16 %v735, %v727
    %v1240 = vpack.c.b16 %v736, %v728
    %v1241 = vpack.c.b16 %v737, %v729
    %v1242 = vpack.c.b16 %v738, %v730
    %v1243 = vpack.c.b16 %v747, %v739
    %v1244 = vpack.c.b16 %v748, %v740
    %v1245 = vpack.c.b16 %v749, %v741
    %v1246 = vpack.c.b16 %v750, %v742
    %v1247 = vpack.c.b16 %v751, %v743
    %v1248 = vpack.c.b16 %v752, %v744
    %v1249 = vpack.c.b16 %v753, %v745
    %v1250 = vpack.c.b16 %v754, %v746
    %v1251 = vpack.c.b16 %v763, %v755
    %v1252 = vpack.c.b16 %v764, %v756
    %v1253 = vpack.c.b16 %v765, %v757
    %v1254 = vpack.c.b16 %v766, %v758
    %v1255 = vpack.c.b16 %v767, %v759
    %v1256 = vpack.c.b16 %v768, %v760
    %v1257 = vpack.c.b16 %v769, %v761
    %v1258 = vpack.c.b16 %v770, %v762
    %v1259 = vpack.c.b16 %v779, %v771
    %v1260 = vpack.c.b16 %v780, %v772
    %v1261 = vpack.c.b16 %v781, %v773
    %v1262 = vpack.c.b16 %v782, %v774
    %v1263 = vpack.c.b16 %v783, %v775
    %v1264 = vpack.c.b16 %v784, %v776
    %v1265 = vpack.c.b16 %v785, %v777
    %v1266 = vpack.c.b16 %v786, %v778
    %v1267 = vpack.c.b16 %v795, %v787
    %v1268 = vpack.c.b16 %v796, %v788
    %v1269 = vpack.c.b16 %v797, %v789
    %v1270 = vpack.c.b16 %v798, %v790
    %v1271 = vpack.c.b16 %v799, %v791
    %v1272 = vpack.c.b16 %v800, %v792
    %v1273 = vpack.c.b16 %v801, %v793
    %v1274 = vpack.c.b16 %v802, %v794
    %v1275 = vpack.c.b16 %v811, %v803
    %v1276 = vpack.c.b16 %v812, %v804
    %v1277 = vpack.c.b16 %v813, %v805
    %v1278 = vpack.c.b16 %v814, %v806
    %v1279 = vpack.c.b16 %v815, %v807
    %v1280 = vpack.c.b16 %v816, %v808
    %v1281 = vpack.c.b16 %v817, %v809
    %v1282 = vpack.c.b16 %v818, %v810
    %v1283 = vpack.c.b16 %v827, %v819
    %v1284 = vpack.c.b16 %v828, %v820
    %v1285 = vpack.c.b16 %v829, %v821
    %v1286 = vpack.c.b16 %v830, %v822
    %v1287 = vpack.c.b16 %v831, %v823
    %v1288 = vpack.c.b16 %v832, %v824
    %v1289 = vpack.c.b16 %v833, %v825
    %v1290 = vpack.c.b16 %v834, %v826
    %v1291 = vpack.c.b16 %v843, %v835
    %v1292 = vpack.c.b16 %v844, %v836
    %v1293 = vpack.c.b16 %v845, %v837
    %v1294 = vpack.c.b16 %v846, %v838
    %v1295 = vpack.c.b16 %v847, %v839
    %v1296 = vpack.c.b16 %v848, %v840
    %v1297 = vpack.c.b16 %v849, %v841
    %v1298 = vpack.c.b16 %v850, %v842
    %v1299 = vpack.c.b16 %v859, %v851
    %v1300 = vpack.c.b16 %v860, %v852
    %v1301 = vpack.c.b16 %v861, %v853
    %v1302 = vpack.c.b16 %v862, %v854
    %v1303 = vpack.c.b16 %v863, %v855
    %v1304 = vpack.c.b16 %v864, %v856
    %v1305 = vpack.c.b16 %v865, %v857
    %v1306 = vpack.c.b16 %v866, %v858
    %v1307 = vpack.c.b16 %v875, %v867
    %v1308 = vpack.c.b16 %v876, %v868
    %v1309 = vpack.c.b16 %v877, %v869
    %v1310 = vpack.c.b16 %v878, %v870
    %v1311 = vpack.c.b16 %v879, %v871
    %v1312 = vpack.c.b16 %v880, %v872
    %v1313 = vpack.c.b16 %v881, %v873
    %v1314 = vpack.c.b16 %v882, %v874
    %v1315 = vpack.c.b16 %v891, %v883
    %v1316 = vpack.c.b16 %v892, %v884
    %v1317 = vpack.c.b16 %v893, %v885
    %v1318 = vpack.c.b16 %v894, %v886
    %v1319 = vpack.c.b16 %v895, %v887
    %v1320 = vpack.c.b16 %v896, %v888
    %v1321 = vpack.c.b16 %v897, %v889
    %v1322 = vpack.c.b16 %v898, %v890
    %v1323 = vpack.c.b16 %v907, %v899
    %v1324 = vpack.c.b16 %v908, %v900
    %v1325 = vpack.c.b16 %v909, %v901
    %v1326 = vpack.c.b16 %v910, %v902
    %v1327 = vpack.c.b16 %v911, %v903
    %v1328 = vpack.c.b16 %v912, %v904
    %v1329 = vpack.c.b16 %v913, %v905
    %v1330 = vpack.c.b16 %v914, %v906
    %v1331 = vpack.c.b16 %v923, %v915
    %v1332 = vpack.c.b16 %v924, %v916
    %v1333 = vpack.c.b16 %v925, %v917
    %v1334 = vpack.c.b16 %v926, %v918
    %v1335 = vpack.c.b16 %v927, %v919
    %v1336 = vpack.c.b16 %v928, %v920
    %v1337 = vpack.c.b16 %v929, %v921
    %v1338 = vpack.c.b16 %v930, %v922
    %v1339 = vpack.c.b16 %v939, %v931
    %v1340 = vpack.c.b16 %v940, %v932
    %v1341 = vpack.c.b16 %v941, %v933
    %v1342 = vpack.c.b16 %v942, %v934
    %v1343 = vpack.c.b16 %v943, %v935
    %v1344 = vpack.c.b16 %v944, %v936
    %v1345 = vpack.c.b16 %v945, %v937
    %v1346 = vpack.c.b16 %v946, %v938
    %v1347 = vpack.c.b16 %v955, %v947
    %v1348 = vpack.c.b16 %v956, %v948
    %v1349 = vpack.c.b16 %v957, %v949
    %v1350 = vpack.c.b16 %v958, %v950
    %v1351 = vpack.c.b16 %v959, %v951
    %v1352 = vpack.c.b16 %v960, %v952
    %v1353 = vpack.c.b16 %v961, %v953
    %v1354 = vpack.c.b16 %v962, %v954
    %v1355 = vpack.c.b16 %v971, %v963
    %v1356 = vpack.c.b16 %v972, %v964
    %v1357 = vpack.c.b16 %v973, %v965
    %v1358 = vpack.c.b16 %v974, %v966
    %v1359 = vpack.c.b16 %v975, %v967
    %v1360 = vpack.c.b16 %v976, %v968
    %v1361 = vpack.c.b16 %v977, %v969
    %v1362 = vpack.c.b16 %v978, %v970
    %v1363 = vpack.c.b16 %v987, %v979
    %v1364 = vpack.c.b16 %v988, %v980
    %v1365 = vpack.c.b16 %v989, %v981
    %v1366 = vpack.c.b16 %v990, %v982
    %v1367 = vpack.c.b16 %v991, %v983
    %v1368 = vpack.c.b16 %v992, %v984
    %v1369 = vpack.c.b16 %v993, %v985
    %v1370 = vpack.c.b16 %v994, %v986
    %v1371 = vpack.c.b16 %v1003, %v995
    %v1372 = vpack.c.b16 %v1004, %v996
    %v1373 = vpack.c.b16 %v1005, %v997
    %v1374 = vpack.c.b16 %v1006, %v998
    %v1375 = vpack.c.b16 %v1007, %v999
    %v1376 = vpack.c.b16 %v1008, %v1000
    %v1377 = vpack.c.b16 %v1009, %v1001
    %v1378 = vpack.c.b16 %v1010, %v1002
    %v1379 = vpack.c.b16 %v1019, %v1011
    %v1380 = vpack.c.b16 %v1020, %v1012
    %v1381 = vpack.c.b16 %v1021, %v1013
    %v1382 = vpack.c.b16 %v1022, %v1014
    %v1383 = vpack.c.b16 %v1023, %v1015
    %v1384 = vpack.c.b16 %v1024, %v1016
    %v1385 = vpack.c.b16 %v1025, %v1017
    %v1386 = vpack.c.b16 %v1026, %v1018
    %v1387 = vpack.c.b16 %v1035, %v1027
    %v1388 = vpack.c.b16 %v1036, %v1028
    %v1389 = vpack.c.b16 %v1037, %v1029
    %v1390 = vpack.c.b16 %v1038, %v1030
    %v1391 = vpack.c.b16 %v1039, %v1031
    %v1392 = vpack.c.b16 %v1040, %v1032
    %v1393 = vpack.c.b16 %v1041, %v1033
    %v1394 = vpack.c.b16 %v1042, %v1034
    %v1395 = vpack.c.b16 %v1051, %v1043
    %v1396 = vpack.c.b16 %v1052, %v1044
    %v1397 = vpack.c.b16 %v1053, %v1045
    %v1398 = vpack.c.b16 %v1054, %v1046
    %v1399 = vpack.c.b16 %v1055, %v1047
    %v1400 = vpack.c.b16 %v1056, %v1048
    %v1401 = vpack.c.b16 %v1057, %v1049
    %v1402 = vpack.c.b16 %v1058, %v1050
    %v1403 = vpack.c.b16 %v1067, %v1059
    %v1404 = vpack.c.b16 %v1068, %v1060
    %v1405 = vpack.c.b16 %v1069, %v1061
    %v1406 = vpack.c.b16 %v1070, %v1062
    %v1407 = vpack.c.b16 %v1071, %v1063
    %v1408 = vpack.c.b16 %v1072, %v1064
    %v1409 = vpack.c.b16 %v1073, %v1065
    %v1410 = vpack.c.b16 %v1074, %v1066
    %v1411 = vpack.c.b16 %v1083, %v1075
    %v1412 = vpack.c.b16 %v1084, %v1076
    %v1413 = vpack.c.b16 %v1085, %v1077
    %v1414 = vpack.c.b16 %v1086, %v1078
    %v1415 = vpack.c.b16 %v1087, %v1079
    %v1416 = vpack.c.b16 %v1088, %v1080
    %v1417 = vpack.c.b16 %v1089, %v1081
    %v1418 = vpack.c.b16 %v1090, %v1082
    %v1419 = vpack.c.b16 %v1099, %v1091
    %v1420 = vpack.c.b16 %v1100, %v1092
    %v1421 = vpack.c.b16 %v1101, %v1093
    %v1422 = vpack.c.b16 %v1102, %v1094
    %v1423 = vpack.c.b16 %v1103, %v1095
    %v1424 = vpack.c.b16 %v1104, %v1096
    %v1425 = vpack.c.b16 %v1105, %v1097
    %v1426 = vpack.c.b16 %v1106, %v1098
    %v1427 = vpack.c.b16 %v1115, %v1107
    %v1428 = vpack.c.b16 %v1116, %v1108
    %v1429 = vpack.c.b16 %v1117, %v1109
    %v1430 = vpack.c.b16 %v1118, %v1110
    %v1431 = vpack.c.b16 %v1119, %v1111
    %v1432 = vpack.c.b16 %v1120, %v1112
    %v1433 = vpack.c.b16 %v1121, %v1113
    %v1434 = vpack.c.b16 %v1122, %v1114
    %v1435 = vpack.c.b16 %v1131, %v1123
    %v1436 = vpack.c.b16 %v1132, %v1124
    %v1437 = vpack.c.b16 %v1133, %v1125
    %v1438 = vpack.c.b16 %v1134, %v1126
    %v1439 = vpack.c.b16 %v1135, %v1127
    %v1440 = vpack.c.b16 %v1136, %v1128
    %v1441 = vpack.c.b16 %v1137, %v1129
    %v1442 = vpack.c.b16 %v1138, %v1130
    %v1443 = vpack.c.b16 %v1147, %v1139
    %v1444 = vpack.c.b16 %v1148, %v1140
    %v1445 = vpack.c.b16 %v1149, %v1141
    %v1446 = vpack.c.b16 %v1150, %v1142
    %v1447 = vpack.c.b16 %v1151, %v1143
    %v1448 = vpack.c.b16 %v1152, %v1144
    %v1449 = vpack.c.b16 %v1153, %v1145
    %v1450 = vpack.c.b16 %v1154, %v1146
    %v1451 = vpack.c.b16 %v1163, %v1155
    %v1452 = vpack.c.b16 %v1164, %v1156
    %v1453 = vpack.c.b16 %v1165, %v1157
    %v1454 = vpack.c.b16 %v1166, %v1158
    %v1455 = vpack.c.b16 %v1167, %v1159
    %v1456 = vpack.c.b16 %v1168, %v1160
    %v1457 = vpack.c.b16 %v1169, %v1161
    %v1458 = vpack.c.b16 %v1170, %v1162
    %v1459 = vpack.c.b16 %v1179, %v1171
    %v1460 = vpack.c.b16 %v1180, %v1172
    %v1461 = vpack.c.b16 %v1181, %v1173
    %v1462 = vpack.c.b16 %v1182, %v1174
    %v1463 = vpack.c.b16 %v1183, %v1175
    %v1464 = vpack.c.b16 %v1184, %v1176
    %v1465 = vpack.c.b16 %v1185, %v1177
    %v1466 = vpack.c.b16 %v1186, %v1178
    %v1467 = vpack.c.b16 %v1195, %v1187
    %v1468 = vpack.c.b16 %v1196, %v1188
    %v1469 = vpack.c.b16 %v1197, %v1189
    %v1470 = vpack.c.b16 %v1198, %v1190
    %v1471 = vpack.c.b16 %v1199, %v1191
    %v1472 = vpack.c.b16 %v1200, %v1192
    %v1473 = vpack.c.b16 %v1201, %v1193
    %v1474 = vpack.c.b16 %v1202, %v1194
    %v1475 = vpack.c.b16 %v1211, %v1203
    %v1476 = vpack.c.b16 %v1212, %v1204
    %v1477 = vpack.c.b16 %v1213, %v1205
    %v1478 = vpack.c.b16 %v1214, %v1206
    %v1479 = vpack.c.b16 %v1215, %v1207
    %v1480 = vpack.c.b16 %v1216, %v1208
    %v1481 = vpack.c.b16 %v1217, %v1209
    %v1482 = vpack.c.b16 %v1218, %v1210
    %v1483 = vpack.c.b16 %v1227, %v1219
    %v1484 = vpack.c.b16 %v1228, %v1220
    %v1485 = vpack.c.b16 %v1229, %v1221
    %v1486 = vpack.c.b16 %v1230, %v1222
    %v1487 = vpack.c.b16 %v1231, %v1223
    %v1488 = vpack.c.b16 %v1232, %v1224
    %v1489 = vpack.c.b16 %v1233, %v1225
    %v1490 = vpack.c.b16 %v1234, %v1226
    %1747 = vmatpush.bf16.msra.mxu0 %v1291
    %1748 = vmatpush.bf16.msra.mxu0 %v1283
    %1749 = vmatpush.bf16.msra.mxu0 %v1275
    %1750 = vmatpush.bf16.msra.mxu0 %v1267
    %1751 = vmatpush.bf16.msra.mxu0 %v1259
    %1752 = vmatpush.bf16.msra.mxu0 %v1251
    %1753 = vmatpush.bf16.msra.mxu0 %v1243
    %1754 = vmatpush.bf16.msra.mxu0 %v1235
    %1755 = vmatmul.bf16.gmra.mxu0 %v435
    %v1756 = vpop.f32.mrf.mxu0
    %v1757 = vadd.f32 %v371, %v1756
    %v1758 = vpop.f32.mrf.mxu0
    %v1759 = vadd.f32 %v371, %v1758
    %1760 = vmatmul.bf16.gmra.mxu0 %v439
    %v1761 = vpop.f32.mrf.mxu0
    %v1762 = vadd.f32 %v371, %v1761
    %v1763 = vpop.f32.mrf.mxu0
    %v1764 = vadd.f32 %v371, %v1763
    %1765 = vmatmul.bf16.gmra.mxu0 %v443
    %v1766 = vpop.f32.mrf.mxu0
    %v1767 = vadd.f32 %v371, %v1766
    %v1768 = vpop.f32.mrf.mxu0
    %v1769 = vadd.f32 %v371, %v1768
    %1770 = vmatmul.bf16.gmra.mxu0 %v447
    %v1771 = vpop.f32.mrf.mxu0
    %v1772 = vadd.f32 %v371, %v1771
    %v1773 = vpop.f32.mrf.mxu0
    %v1774 = vadd.f32 %v371, %v1773
    %1775 = vdwg.mxu0
    %1776 = vmatpush.bf16.msra.mxu0 %v1355
    %1777 = vmatpush.bf16.msra.mxu0 %v1347
    %1778 = vmatpush.bf16.msra.mxu0 %v1339
    %1779 = vmatpush.bf16.msra.mxu0 %v1331
    %1780 = vmatpush.bf16.msra.mxu0 %v1323
    %1781 = vmatpush.bf16.msra.mxu0 %v1315
    %1782 = vmatpush.bf16.msra.mxu0 %v1307
    %1783 = vmatpush.bf16.msra.mxu0 %v1299
    %1784 = vmatmul.bf16.gmra.mxu0 %v436
    %v1785 = vpop.f32.mrf.mxu0
    %v1786 = vadd.f32 %v1757, %v1785
    %v1787 = vpop.f32.mrf.mxu0
    %v1788 = vadd.f32 %v1759, %v1787
    %1789 = vmatmul.bf16.gmra.mxu0 %v440
    %v1790 = vpop.f32.mrf.mxu0
    %v1791 = vadd.f32 %v1762, %v1790
    %v1792 = vpop.f32.mrf.mxu0
    %v1793 = vadd.f32 %v1764, %v1792
    %1794 = vmatmul.bf16.gmra.mxu0 %v444
    %v1795 = vpop.f32.mrf.mxu0
    %v1796 = vadd.f32 %v1767, %v1795
    %v1797 = vpop.f32.mrf.mxu0
    %v1798 = vadd.f32 %v1769, %v1797
    %1799 = vmatmul.bf16.gmra.mxu0 %v448
    %v1800 = vpop.f32.mrf.mxu0
    %v1801 = vadd.f32 %v1772, %v1800
    %v1802 = vpop.f32.mrf.mxu0
    %v1803 = vadd.f32 %v1774, %v1802
    %1804 = vdwg.mxu0
    %1805 = vmatpush.bf16.msra.mxu0 %v1419
    %1806 = vmatpush.bf16.msra.mxu0 %v1411
    %1807 = vmatpush.bf16.msra.mxu0 %v1403
    %1808 = vmatpush.bf16.msra.mxu0 %v1395
    %1809 = vmatpush.bf16.msra.mxu0 %v1387
    %1810 = vmatpush.bf16.msra.mxu0 %v1379
    %1811 = vmatpush.bf16.msra.mxu0 %v1371
    %1812 = vmatpush.bf16.msra.mxu0 %v1363
    %1813 = vmatmul.bf16.gmra.mxu0 %v437
    %v1814 = vpop.f32.mrf.mxu0
    %v1815 = vadd.f32 %v1786, %v1814
    %v1816 = vpop.f32.mrf.mxu0
    %v1817 = vadd.f32 %v1788, %v1816
    %1818 = vmatmul.bf16.gmra.mxu0 %v441
    %v1819 = vpop.f32.mrf.mxu0
    %v1820 = vadd.f32 %v1791, %v1819
    %v1821 = vpop.f32.mrf.mxu0
    %v1822 = vadd.f32 %v1793, %v1821
    %1823 = vmatmul.bf16.gmra.mxu0 %v445
    %v1824 = vpop.f32.mrf.mxu0
    %v1825 = vadd.f32 %v1796, %v1824
    %v1826 = vpop.f32.mrf.mxu0
    %v1827 = vadd.f32 %v1798, %v1826
    %1828 = vmatmul.bf16.gmra.mxu0 %v449
    %v1829 = vpop.f32.mrf.mxu0
    %v1830 = vadd.f32 %v1801, %v1829
    %v1831 = vpop.f32.mrf.mxu0
    %v1832 = vadd.f32 %v1803, %v1831
    %1833 = vdwg.mxu0
    %1834 = vmatpush.bf16.msra.mxu0 %v1483
    %1835 = vmatpush.bf16.msra.mxu0 %v1475
    %1836 = vmatpush.bf16.msra.mxu0 %v1467
    %1837 = vmatpush.bf16.msra.mxu0 %v1459
    %1838 = vmatpush.bf16.msra.mxu0 %v1451
    %1839 = vmatpush.bf16.msra.mxu0 %v1443
    %1840 = vmatpush.bf16.msra.mxu0 %v1435
    %1841 = vmatpush.bf16.msra.mxu0 %v1427
    %1842 = vmatmul.bf16.gmra.mxu0 %v438
    %v1843 = vpop.f32.mrf.mxu0
    %v1844 = vadd.f32 %v1815, %v1843
    %v1845 = vpop.f32.mrf.mxu0
    %v1846 = vadd.f32 %v1817, %v1845
    %1847 = vmatmul.bf16.gmra.mxu0 %v442
    %v1848 = vpop.f32.mrf.mxu0
    %v1849 = vadd.f32 %v1820, %v1848
    %v1850 = vpop.f32.mrf.mxu0
    %v1851 = vadd.f32 %v1822, %v1850
    %1852 = vmatmul.bf16.gmra.mxu0 %v446
    %v1853 = vpop.f32.mrf.mxu0
    %v1854 = vadd.f32 %v1825, %v1853
    %v1855 = vpop.f32.mrf.mxu0
    %v1856 = vadd.f32 %v1827, %v1855
    %1857 = vmatmul.bf16.gmra.mxu0 %v450
    %v1858 = vpop.f32.mrf.mxu0
    %v1859 = vadd.f32 %v1830, %v1858
    %v1860 = vpop.f32.mrf.mxu0
    %v1861 = vadd.f32 %v1832, %v1860
    %1862 = vdwg.mxu0
    %1863 = vmatpush.bf16.msra.mxu0 %v1292
    %1864 = vmatpush.bf16.msra.mxu0 %v1284
    %1865 = vmatpush.bf16.msra.mxu0 %v1276
    %1866 = vmatpush.bf16.msra.mxu0 %v1268
    %1867 = vmatpush.bf16.msra.mxu0 %v1260
    %1868 = vmatpush.bf16.msra.mxu0 %v1252
    %1869 = vmatpush.bf16.msra.mxu0 %v1244
    %1870 = vmatpush.bf16.msra.mxu0 %v1236
    %1871 = vmatmul.bf16.gmra.mxu0 %v435
    %v1872 = vpop.f32.mrf.mxu0
    %v1873 = vadd.f32 %v372, %v1872
    %v1874 = vpop.f32.mrf.mxu0
    %v1875 = vadd.f32 %v372, %v1874
    %1876 = vmatmul.bf16.gmra.mxu0 %v439
    %v1877 = vpop.f32.mrf.mxu0
    %v1878 = vadd.f32 %v372, %v1877
    %v1879 = vpop.f32.mrf.mxu0
    %v1880 = vadd.f32 %v372, %v1879
    %1881 = vmatmul.bf16.gmra.mxu0 %v443
    %v1882 = vpop.f32.mrf.mxu0
    %v1883 = vadd.f32 %v372, %v1882
    %v1884 = vpop.f32.mrf.mxu0
    %v1885 = vadd.f32 %v372, %v1884
    %1886 = vmatmul.bf16.gmra.mxu0 %v447
    %v1887 = vpop.f32.mrf.mxu0
    %v1888 = vadd.f32 %v372, %v1887
    %v1889 = vpop.f32.mrf.mxu0
    %v1890 = vadd.f32 %v372, %v1889
    %1891 = vdwg.mxu0
    %1892 = vmatpush.bf16.msra.mxu0 %v1356
    %1893 = vmatpush.bf16.msra.mxu0 %v1348
    %1894 = vmatpush.bf16.msra.mxu0 %v1340
    %1895 = vmatpush.bf16.msra.mxu0 %v1332
    %1896 = vmatpush.bf16.msra.mxu0 %v1324
    %1897 = vmatpush.bf16.msra.mxu0 %v1316
    %1898 = vmatpush.bf16.msra.mxu0 %v1308
    %1899 = vmatpush.bf16.msra.mxu0 %v1300
    %1900 = vmatmul.bf16.gmra.mxu0 %v436
    %v1901 = vpop.f32.mrf.mxu0
    %v1902 = vadd.f32 %v1873, %v1901
    %v1903 = vpop.f32.mrf.mxu0
    %v1904 = vadd.f32 %v1875, %v1903
    %1905 = vmatmul.bf16.gmra.mxu0 %v440
    %v1906 = vpop.f32.mrf.mxu0
    %v1907 = vadd.f32 %v1878, %v1906
    %v1908 = vpop.f32.mrf.mxu0
    %v1909 = vadd.f32 %v1880, %v1908
    %1910 = vmatmul.bf16.gmra.mxu0 %v444
    %v1911 = vpop.f32.mrf.mxu0
    %v1912 = vadd.f32 %v1883, %v1911
    %v1913 = vpop.f32.mrf.mxu0
    %v1914 = vadd.f32 %v1885, %v1913
    %1915 = vmatmul.bf16.gmra.mxu0 %v448
    %v1916 = vpop.f32.mrf.mxu0
    %v1917 = vadd.f32 %v1888, %v1916
    %v1918 = vpop.f32.mrf.mxu0
    %v1919 = vadd.f32 %v1890, %v1918
    %1920 = vdwg.mxu0
    %1921 = vmatpush.bf16.msra.mxu0 %v1420
    %1922 = vmatpush.bf16.msra.mxu0 %v1412
    %1923 = vmatpush.bf16.msra.mxu0 %v1404
    %1924 = vmatpush.bf16.msra.mxu0 %v1396
    %1925 = vmatpush.bf16.msra.mxu0 %v1388
    %1926 = vmatpush.bf16.msra.mxu0 %v1380
    %1927 = vmatpush.bf16.msra.mxu0 %v1372
    %1928 = vmatpush.bf16.msra.mxu0 %v1364
    %1929 = vmatmul.bf16.gmra.mxu0 %v437
    %v1930 = vpop.f32.mrf.mxu0
    %v1931 = vadd.f32 %v1902, %v1930
    %v1932 = vpop.f32.mrf.mxu0
    %v1933 = vadd.f32 %v1904, %v1932
    %1934 = vmatmul.bf16.gmra.mxu0 %v441
    %v1935 = vpop.f32.mrf.mxu0
    %v1936 = vadd.f32 %v1907, %v1935
    %v1937 = vpop.f32.mrf.mxu0
    %v1938 = vadd.f32 %v1909, %v1937
    %1939 = vmatmul.bf16.gmra.mxu0 %v445
    %v1940 = vpop.f32.mrf.mxu0
    %v1941 = vadd.f32 %v1912, %v1940
    %v1942 = vpop.f32.mrf.mxu0
    %v1943 = vadd.f32 %v1914, %v1942
    %1944 = vmatmul.bf16.gmra.mxu0 %v449
    %v1945 = vpop.f32.mrf.mxu0
    %v1946 = vadd.f32 %v1917, %v1945
    %v1947 = vpop.f32.mrf.mxu0
    %v1948 = vadd.f32 %v1919, %v1947
    %1949 = vdwg.mxu0
    %1950 = vmatpush.bf16.msra.mxu0 %v1484
    %1951 = vmatpush.bf16.msra.mxu0 %v1476
    %1952 = vmatpush.bf16.msra.mxu0 %v1468
    %1953 = vmatpush.bf16.msra.mxu0 %v1460
    %1954 = vmatpush.bf16.msra.mxu0 %v1452
    %1955 = vmatpush.bf16.msra.mxu0 %v1444
    %1956 = vmatpush.bf16.msra.mxu0 %v1436
    %1957 = vmatpush.bf16.msra.mxu0 %v1428
    %1958 = vmatmul.bf16.gmra.mxu0 %v438
    %v1959 = vpop.f32.mrf.mxu0
    %v1960 = vadd.f32 %v1931, %v1959
    %v1961 = vpop.f32.mrf.mxu0
    %v1962 = vadd.f32 %v1933, %v1961
    %1963 = vmatmul.bf16.gmra.mxu0 %v442
    %v1964 = vpop.f32.mrf.mxu0
    %v1965 = vadd.f32 %v1936, %v1964
    %v1966 = vpop.f32.mrf.mxu0
    %v1967 = vadd.f32 %v1938, %v1966
    %1968 = vmatmul.bf16.gmra.mxu0 %v446
    %v1969 = vpop.f32.mrf.mxu0
    %v1970 = vadd.f32 %v1941, %v1969
    %v1971 = vpop.f32.mrf.mxu0
    %v1972 = vadd.f32 %v1943, %v1971
    %1973 = vmatmul.bf16.gmra.mxu0 %v450
    %v1974 = vpop.f32.mrf.mxu0
    %v1975 = vadd.f32 %v1946, %v1974
    %v1976 = vpop.f32.mrf.mxu0
    %v1977 = vadd.f32 %v1948, %v1976
    %1978 = vdwg.mxu0
    %1979 = vmatpush.bf16.msra.mxu0 %v1293
    %1980 = vmatpush.bf16.msra.mxu0 %v1285
    %1981 = vmatpush.bf16.msra.mxu0 %v1277
    %1982 = vmatpush.bf16.msra.mxu0 %v1269
    %1983 = vmatpush.bf16.msra.mxu0 %v1261
    %1984 = vmatpush.bf16.msra.mxu0 %v1253
    %1985 = vmatpush.bf16.msra.mxu0 %v1245
    %1986 = vmatpush.bf16.msra.mxu0 %v1237
    %1987 = vmatmul.bf16.gmra.mxu0 %v435
    %v1988 = vpop.f32.mrf.mxu0
    %v1989 = vadd.f32 %v373, %v1988
    %v1990 = vpop.f32.mrf.mxu0
    %v1991 = vadd.f32 %v373, %v1990
    %1992 = vmatmul.bf16.gmra.mxu0 %v439
    %v1993 = vpop.f32.mrf.mxu0
    %v1994 = vadd.f32 %v373, %v1993
    %v1995 = vpop.f32.mrf.mxu0
    %v1996 = vadd.f32 %v373, %v1995
    %1997 = vmatmul.bf16.gmra.mxu0 %v443
    %v1998 = vpop.f32.mrf.mxu0
    %v1999 = vadd.f32 %v373, %v1998
    %v2000 = vpop.f32.mrf.mxu0
    %v2001 = vadd.f32 %v373, %v2000
    %2002 = vmatmul.bf16.gmra.mxu0 %v447
    %v2003 = vpop.f32.mrf.mxu0
    %v2004 = vadd.f32 %v373, %v2003
    %v2005 = vpop.f32.mrf.mxu0
    %v2006 = vadd.f32 %v373, %v2005
    %2007 = vdwg.mxu0
    %2008 = vmatpush.bf16.msra.mxu0 %v1357
    %2009 = vmatpush.bf16.msra.mxu0 %v1349
    %2010 = vmatpush.bf16.msra.mxu0 %v1341
    %2011 = vmatpush.bf16.msra.mxu0 %v1333
    %2012 = vmatpush.bf16.msra.mxu0 %v1325
    %2013 = vmatpush.bf16.msra.mxu0 %v1317
    %2014 = vmatpush.bf16.msra.mxu0 %v1309
    %2015 = vmatpush.bf16.msra.mxu0 %v1301
    %2016 = vmatmul.bf16.gmra.mxu0 %v436
    %v2017 = vpop.f32.mrf.mxu0
    %v2018 = vadd.f32 %v1989, %v2017
    %v2019 = vpop.f32.mrf.mxu0
    %v2020 = vadd.f32 %v1991, %v2019
    %2021 = vmatmul.bf16.gmra.mxu0 %v440
    %v2022 = vpop.f32.mrf.mxu0
    %v2023 = vadd.f32 %v1994, %v2022
    %v2024 = vpop.f32.mrf.mxu0
    %v2025 = vadd.f32 %v1996, %v2024
    %2026 = vmatmul.bf16.gmra.mxu0 %v444
    %v2027 = vpop.f32.mrf.mxu0
    %v2028 = vadd.f32 %v1999, %v2027
    %v2029 = vpop.f32.mrf.mxu0
    %v2030 = vadd.f32 %v2001, %v2029
    %2031 = vmatmul.bf16.gmra.mxu0 %v448
    %v2032 = vpop.f32.mrf.mxu0
    %v2033 = vadd.f32 %v2004, %v2032
    %v2034 = vpop.f32.mrf.mxu0
    %v2035 = vadd.f32 %v2006, %v2034
    %2036 = vdwg.mxu0
    %2037 = vmatpush.bf16.msra.mxu0 %v1421
    %2038 = vmatpush.bf16.msra.mxu0 %v1413
    %2039 = vmatpush.bf16.msra.mxu0 %v1405
    %2040 = vmatpush.bf16.msra.mxu0 %v1397
    %2041 = vmatpush.bf16.msra.mxu0 %v1389
    %2042 = vmatpush.bf16.msra.mxu0 %v1381
    %2043 = vmatpush.bf16.msra.mxu0 %v1373
    %2044 = vmatpush.bf16.msra.mxu0 %v1365
    %2045 = vmatmul.bf16.gmra.mxu0 %v437
    %v2046 = vpop.f32.mrf.mxu0
    %v2047 = vadd.f32 %v2018, %v2046
    %v2048 = vpop.f32.mrf.mxu0
    %v2049 = vadd.f32 %v2020, %v2048
    %2050 = vmatmul.bf16.gmra.mxu0 %v441
    %v2051 = vpop.f32.mrf.mxu0
    %v2052 = vadd.f32 %v2023, %v2051
    %v2053 = vpop.f32.mrf.mxu0
    %v2054 = vadd.f32 %v2025, %v2053
    %2055 = vmatmul.bf16.gmra.mxu0 %v445
    %v2056 = vpop.f32.mrf.mxu0
    %v2057 = vadd.f32 %v2028, %v2056
    %v2058 = vpop.f32.mrf.mxu0
    %v2059 = vadd.f32 %v2030, %v2058
    %2060 = vmatmul.bf16.gmra.mxu0 %v449
    %v2061 = vpop.f32.mrf.mxu0
    %v2062 = vadd.f32 %v2033, %v2061
    %v2063 = vpop.f32.mrf.mxu0
    %v2064 = vadd.f32 %v2035, %v2063
    %2065 = vdwg.mxu0
    %2066 = vmatpush.bf16.msra.mxu0 %v1485
    %2067 = vmatpush.bf16.msra.mxu0 %v1477
    %2068 = vmatpush.bf16.msra.mxu0 %v1469
    %2069 = vmatpush.bf16.msra.mxu0 %v1461
    %2070 = vmatpush.bf16.msra.mxu0 %v1453
    %2071 = vmatpush.bf16.msra.mxu0 %v1445
    %2072 = vmatpush.bf16.msra.mxu0 %v1437
    %2073 = vmatpush.bf16.msra.mxu0 %v1429
    %2074 = vmatmul.bf16.gmra.mxu0 %v438
    %v2075 = vpop.f32.mrf.mxu0
    %v2076 = vadd.f32 %v2047, %v2075
    %v2077 = vpop.f32.mrf.mxu0
    %v2078 = vadd.f32 %v2049, %v2077
    %2079 = vmatmul.bf16.gmra.mxu0 %v442
    %v2080 = vpop.f32.mrf.mxu0
    %v2081 = vadd.f32 %v2052, %v2080
    %v2082 = vpop.f32.mrf.mxu0
    %v2083 = vadd.f32 %v2054, %v2082
    %2084 = vmatmul.bf16.gmra.mxu0 %v446
    %v2085 = vpop.f32.mrf.mxu0
    %v2086 = vadd.f32 %v2057, %v2085
    %v2087 = vpop.f32.mrf.mxu0
    %v2088 = vadd.f32 %v2059, %v2087
    %2089 = vmatmul.bf16.gmra.mxu0 %v450
    %v2090 = vpop.f32.mrf.mxu0
    %v2091 = vadd.f32 %v2062, %v2090
    %v2092 = vpop.f32.mrf.mxu0
    %v2093 = vadd.f32 %v2064, %v2092
    %2094 = vdwg.mxu0
    %2095 = vmatpush.bf16.msra.mxu0 %v1294
    %2096 = vmatpush.bf16.msra.mxu0 %v1286
    %2097 = vmatpush.bf16.msra.mxu0 %v1278
    %2098 = vmatpush.bf16.msra.mxu0 %v1270
    %2099 = vmatpush.bf16.msra.mxu0 %v1262
    %2100 = vmatpush.bf16.msra.mxu0 %v1254
    %2101 = vmatpush.bf16.msra.mxu0 %v1246
    %2102 = vmatpush.bf16.msra.mxu0 %v1238
    %2103 = vmatmul.bf16.gmra.mxu0 %v435
    %v2104 = vpop.f32.mrf.mxu0
    %v2105 = vadd.f32 %v374, %v2104
    %v2106 = vpop.f32.mrf.mxu0
    %v2107 = vadd.f32 %v374, %v2106
    %2108 = vmatmul.bf16.gmra.mxu0 %v439
    %v2109 = vpop.f32.mrf.mxu0
    %v2110 = vadd.f32 %v374, %v2109
    %v2111 = vpop.f32.mrf.mxu0
    %v2112 = vadd.f32 %v374, %v2111
    %2113 = vmatmul.bf16.gmra.mxu0 %v443
    %v2114 = vpop.f32.mrf.mxu0
    %v2115 = vadd.f32 %v374, %v2114
    %v2116 = vpop.f32.mrf.mxu0
    %v2117 = vadd.f32 %v374, %v2116
    %2118 = vmatmul.bf16.gmra.mxu0 %v447
    %v2119 = vpop.f32.mrf.mxu0
    %v2120 = vadd.f32 %v374, %v2119
    %v2121 = vpop.f32.mrf.mxu0
    %v2122 = vadd.f32 %v374, %v2121
    %2123 = vdwg.mxu0
    %2124 = vmatpush.bf16.msra.mxu0 %v1358
    %2125 = vmatpush.bf16.msra.mxu0 %v1350
    %2126 = vmatpush.bf16.msra.mxu0 %v1342
    %2127 = vmatpush.bf16.msra.mxu0 %v1334
    %2128 = vmatpush.bf16.msra.mxu0 %v1326
    %2129 = vmatpush.bf16.msra.mxu0 %v1318
    %2130 = vmatpush.bf16.msra.mxu0 %v1310
    %2131 = vmatpush.bf16.msra.mxu0 %v1302
    %2132 = vmatmul.bf16.gmra.mxu0 %v436
    %v2133 = vpop.f32.mrf.mxu0
    %v2134 = vadd.f32 %v2105, %v2133
    %v2135 = vpop.f32.mrf.mxu0
    %v2136 = vadd.f32 %v2107, %v2135
    %2137 = vmatmul.bf16.gmra.mxu0 %v440
    %v2138 = vpop.f32.mrf.mxu0
    %v2139 = vadd.f32 %v2110, %v2138
    %v2140 = vpop.f32.mrf.mxu0
    %v2141 = vadd.f32 %v2112, %v2140
    %2142 = vmatmul.bf16.gmra.mxu0 %v444
    %v2143 = vpop.f32.mrf.mxu0
    %v2144 = vadd.f32 %v2115, %v2143
    %v2145 = vpop.f32.mrf.mxu0
    %v2146 = vadd.f32 %v2117, %v2145
    %2147 = vmatmul.bf16.gmra.mxu0 %v448
    %v2148 = vpop.f32.mrf.mxu0
    %v2149 = vadd.f32 %v2120, %v2148
    %v2150 = vpop.f32.mrf.mxu0
    %v2151 = vadd.f32 %v2122, %v2150
    %2152 = vdwg.mxu0
    %2153 = vmatpush.bf16.msra.mxu0 %v1422
    %2154 = vmatpush.bf16.msra.mxu0 %v1414
    %2155 = vmatpush.bf16.msra.mxu0 %v1406
    %2156 = vmatpush.bf16.msra.mxu0 %v1398
    %2157 = vmatpush.bf16.msra.mxu0 %v1390
    %2158 = vmatpush.bf16.msra.mxu0 %v1382
    %2159 = vmatpush.bf16.msra.mxu0 %v1374
    %2160 = vmatpush.bf16.msra.mxu0 %v1366
    %2161 = vmatmul.bf16.gmra.mxu0 %v437
    %v2162 = vpop.f32.mrf.mxu0
    %v2163 = vadd.f32 %v2134, %v2162
    %v2164 = vpop.f32.mrf.mxu0
    %v2165 = vadd.f32 %v2136, %v2164
    %2166 = vmatmul.bf16.gmra.mxu0 %v441
    %v2167 = vpop.f32.mrf.mxu0
    %v2168 = vadd.f32 %v2139, %v2167
    %v2169 = vpop.f32.mrf.mxu0
    %v2170 = vadd.f32 %v2141, %v2169
    %2171 = vmatmul.bf16.gmra.mxu0 %v445
    %v2172 = vpop.f32.mrf.mxu0
    %v2173 = vadd.f32 %v2144, %v2172
    %v2174 = vpop.f32.mrf.mxu0
    %v2175 = vadd.f32 %v2146, %v2174
    %2176 = vmatmul.bf16.gmra.mxu0 %v449
    %v2177 = vpop.f32.mrf.mxu0
    %v2178 = vadd.f32 %v2149, %v2177
    %v2179 = vpop.f32.mrf.mxu0
    %v2180 = vadd.f32 %v2151, %v2179
    %2181 = vdwg.mxu0
    %2182 = vmatpush.bf16.msra.mxu0 %v1486
    %2183 = vmatpush.bf16.msra.mxu0 %v1478
    %2184 = vmatpush.bf16.msra.mxu0 %v1470
    %2185 = vmatpush.bf16.msra.mxu0 %v1462
    %2186 = vmatpush.bf16.msra.mxu0 %v1454
    %2187 = vmatpush.bf16.msra.mxu0 %v1446
    %2188 = vmatpush.bf16.msra.mxu0 %v1438
    %2189 = vmatpush.bf16.msra.mxu0 %v1430
    %2190 = vmatmul.bf16.gmra.mxu0 %v438
    %v2191 = vpop.f32.mrf.mxu0
    %v2192 = vadd.f32 %v2163, %v2191
    %v2193 = vpop.f32.mrf.mxu0
    %v2194 = vadd.f32 %v2165, %v2193
    %2195 = vmatmul.bf16.gmra.mxu0 %v442
    %v2196 = vpop.f32.mrf.mxu0
    %v2197 = vadd.f32 %v2168, %v2196
    %v2198 = vpop.f32.mrf.mxu0
    %v2199 = vadd.f32 %v2170, %v2198
    %2200 = vmatmul.bf16.gmra.mxu0 %v446
    %v2201 = vpop.f32.mrf.mxu0
    %v2202 = vadd.f32 %v2173, %v2201
    %v2203 = vpop.f32.mrf.mxu0
    %v2204 = vadd.f32 %v2175, %v2203
    %2205 = vmatmul.bf16.gmra.mxu0 %v450
    %v2206 = vpop.f32.mrf.mxu0
    %v2207 = vadd.f32 %v2178, %v2206
    %v2208 = vpop.f32.mrf.mxu0
    %v2209 = vadd.f32 %v2180, %v2208
    %2210 = vdwg.mxu0
    %2211 = vmatpush.bf16.msra.mxu0 %v1295
    %2212 = vmatpush.bf16.msra.mxu0 %v1287
    %2213 = vmatpush.bf16.msra.mxu0 %v1279
    %2214 = vmatpush.bf16.msra.mxu0 %v1271
    %2215 = vmatpush.bf16.msra.mxu0 %v1263
    %2216 = vmatpush.bf16.msra.mxu0 %v1255
    %2217 = vmatpush.bf16.msra.mxu0 %v1247
    %2218 = vmatpush.bf16.msra.mxu0 %v1239
    %2219 = vmatmul.bf16.gmra.mxu0 %v435
    %v2220 = vpop.f32.mrf.mxu0
    %v2221 = vadd.f32 %v375, %v2220
    %v2222 = vpop.f32.mrf.mxu0
    %v2223 = vadd.f32 %v375, %v2222
    %2224 = vmatmul.bf16.gmra.mxu0 %v439
    %v2225 = vpop.f32.mrf.mxu0
    %v2226 = vadd.f32 %v375, %v2225
    %v2227 = vpop.f32.mrf.mxu0
    %v2228 = vadd.f32 %v375, %v2227
    %2229 = vmatmul.bf16.gmra.mxu0 %v443
    %v2230 = vpop.f32.mrf.mxu0
    %v2231 = vadd.f32 %v375, %v2230
    %v2232 = vpop.f32.mrf.mxu0
    %v2233 = vadd.f32 %v375, %v2232
    %2234 = vmatmul.bf16.gmra.mxu0 %v447
    %v2235 = vpop.f32.mrf.mxu0
    %v2236 = vadd.f32 %v375, %v2235
    %v2237 = vpop.f32.mrf.mxu0
    %v2238 = vadd.f32 %v375, %v2237
    %2239 = vdwg.mxu0
    %2240 = vmatpush.bf16.msra.mxu0 %v1359
    %2241 = vmatpush.bf16.msra.mxu0 %v1351
    %2242 = vmatpush.bf16.msra.mxu0 %v1343
    %2243 = vmatpush.bf16.msra.mxu0 %v1335
    %2244 = vmatpush.bf16.msra.mxu0 %v1327
    %2245 = vmatpush.bf16.msra.mxu0 %v1319
    %2246 = vmatpush.bf16.msra.mxu0 %v1311
    %2247 = vmatpush.bf16.msra.mxu0 %v1303
    %2248 = vmatmul.bf16.gmra.mxu0 %v436
    %v2249 = vpop.f32.mrf.mxu0
    %v2250 = vadd.f32 %v2221, %v2249
    %v2251 = vpop.f32.mrf.mxu0
    %v2252 = vadd.f32 %v2223, %v2251
    %2253 = vmatmul.bf16.gmra.mxu0 %v440
    %v2254 = vpop.f32.mrf.mxu0
    %v2255 = vadd.f32 %v2226, %v2254
    %v2256 = vpop.f32.mrf.mxu0
    %v2257 = vadd.f32 %v2228, %v2256
    %2258 = vmatmul.bf16.gmra.mxu0 %v444
    %v2259 = vpop.f32.mrf.mxu0
    %v2260 = vadd.f32 %v2231, %v2259
    %v2261 = vpop.f32.mrf.mxu0
    %v2262 = vadd.f32 %v2233, %v2261
    %2263 = vmatmul.bf16.gmra.mxu0 %v448
    %v2264 = vpop.f32.mrf.mxu0
    %v2265 = vadd.f32 %v2236, %v2264
    %v2266 = vpop.f32.mrf.mxu0
    %v2267 = vadd.f32 %v2238, %v2266
    %2268 = vdwg.mxu0
    %2269 = vmatpush.bf16.msra.mxu0 %v1423
    %2270 = vmatpush.bf16.msra.mxu0 %v1415
    %2271 = vmatpush.bf16.msra.mxu0 %v1407
    %2272 = vmatpush.bf16.msra.mxu0 %v1399
    %2273 = vmatpush.bf16.msra.mxu0 %v1391
    %2274 = vmatpush.bf16.msra.mxu0 %v1383
    %2275 = vmatpush.bf16.msra.mxu0 %v1375
    %2276 = vmatpush.bf16.msra.mxu0 %v1367
    %2277 = vmatmul.bf16.gmra.mxu0 %v437
    %v2278 = vpop.f32.mrf.mxu0
    %v2279 = vadd.f32 %v2250, %v2278
    %v2280 = vpop.f32.mrf.mxu0
    %v2281 = vadd.f32 %v2252, %v2280
    %2282 = vmatmul.bf16.gmra.mxu0 %v441
    %v2283 = vpop.f32.mrf.mxu0
    %v2284 = vadd.f32 %v2255, %v2283
    %v2285 = vpop.f32.mrf.mxu0
    %v2286 = vadd.f32 %v2257, %v2285
    %2287 = vmatmul.bf16.gmra.mxu0 %v445
    %v2288 = vpop.f32.mrf.mxu0
    %v2289 = vadd.f32 %v2260, %v2288
    %v2290 = vpop.f32.mrf.mxu0
    %v2291 = vadd.f32 %v2262, %v2290
    %2292 = vmatmul.bf16.gmra.mxu0 %v449
    %v2293 = vpop.f32.mrf.mxu0
    %v2294 = vadd.f32 %v2265, %v2293
    %v2295 = vpop.f32.mrf.mxu0
    %v2296 = vadd.f32 %v2267, %v2295
    %2297 = vdwg.mxu0
    %2298 = vmatpush.bf16.msra.mxu0 %v1487
    %2299 = vmatpush.bf16.msra.mxu0 %v1479
    %2300 = vmatpush.bf16.msra.mxu0 %v1471
    %2301 = vmatpush.bf16.msra.mxu0 %v1463
    %2302 = vmatpush.bf16.msra.mxu0 %v1455
    %2303 = vmatpush.bf16.msra.mxu0 %v1447
    %2304 = vmatpush.bf16.msra.mxu0 %v1439
    %2305 = vmatpush.bf16.msra.mxu0 %v1431
    %2306 = vmatmul.bf16.gmra.mxu0 %v438
    %v2307 = vpop.f32.mrf.mxu0
    %v2308 = vadd.f32 %v2279, %v2307
    %v2309 = vpop.f32.mrf.mxu0
    %v2310 = vadd.f32 %v2281, %v2309
    %2311 = vmatmul.bf16.gmra.mxu0 %v442
    %v2312 = vpop.f32.mrf.mxu0
    %v2313 = vadd.f32 %v2284, %v2312
    %v2314 = vpop.f32.mrf.mxu0
    %v2315 = vadd.f32 %v2286, %v2314
    %2316 = vmatmul.bf16.gmra.mxu0 %v446
    %v2317 = vpop.f32.mrf.mxu0
    %v2318 = vadd.f32 %v2289, %v2317
    %v2319 = vpop.f32.mrf.mxu0
    %v2320 = vadd.f32 %v2291, %v2319
    %2321 = vmatmul.bf16.gmra.mxu0 %v450
    %v2322 = vpop.f32.mrf.mxu0
    %v2323 = vadd.f32 %v2294, %v2322
    %v2324 = vpop.f32.mrf.mxu0
    %v2325 = vadd.f32 %v2296, %v2324
    %2326 = vdwg.mxu0
    %2327 = vmatpush.bf16.msra.mxu0 %v1296
    %2328 = vmatpush.bf16.msra.mxu0 %v1288
    %2329 = vmatpush.bf16.msra.mxu0 %v1280
    %2330 = vmatpush.bf16.msra.mxu0 %v1272
    %2331 = vmatpush.bf16.msra.mxu0 %v1264
    %2332 = vmatpush.bf16.msra.mxu0 %v1256
    %2333 = vmatpush.bf16.msra.mxu0 %v1248
    %2334 = vmatpush.bf16.msra.mxu0 %v1240
    %2335 = vmatmul.bf16.gmra.mxu0 %v435
    %v2336 = vpop.f32.mrf.mxu0
    %v2337 = vadd.f32 %v376, %v2336
    %v2338 = vpop.f32.mrf.mxu0
    %v2339 = vadd.f32 %v376, %v2338
    %2340 = vmatmul.bf16.gmra.mxu0 %v439
    %v2341 = vpop.f32.mrf.mxu0
    %v2342 = vadd.f32 %v376, %v2341
    %v2343 = vpop.f32.mrf.mxu0
    %v2344 = vadd.f32 %v376, %v2343
    %2345 = vmatmul.bf16.gmra.mxu0 %v443
    %v2346 = vpop.f32.mrf.mxu0
    %v2347 = vadd.f32 %v376, %v2346
    %v2348 = vpop.f32.mrf.mxu0
    %v2349 = vadd.f32 %v376, %v2348
    %2350 = vmatmul.bf16.gmra.mxu0 %v447
    %v2351 = vpop.f32.mrf.mxu0
    %v2352 = vadd.f32 %v376, %v2351
    %v2353 = vpop.f32.mrf.mxu0
    %v2354 = vadd.f32 %v376, %v2353
    %2355 = vdwg.mxu0
    %2356 = vmatpush.bf16.msra.mxu0 %v1360
    %2357 = vmatpush.bf16.msra.mxu0 %v1352
    %2358 = vmatpush.bf16.msra.mxu0 %v1344
    %2359 = vmatpush.bf16.msra.mxu0 %v1336
    %2360 = vmatpush.bf16.msra.mxu0 %v1328
    %2361 = vmatpush.bf16.msra.mxu0 %v1320
    %2362 = vmatpush.bf16.msra.mxu0 %v1312
    %2363 = vmatpush.bf16.msra.mxu0 %v1304
    %2364 = vmatmul.bf16.gmra.mxu0 %v436
    %v2365 = vpop.f32.mrf.mxu0
    %v2366 = vadd.f32 %v2337, %v2365
    %v2367 = vpop.f32.mrf.mxu0
    %v2368 = vadd.f32 %v2339, %v2367
    %2369 = vmatmul.bf16.gmra.mxu0 %v440
    %v2370 = vpop.f32.mrf.mxu0
    %v2371 = vadd.f32 %v2342, %v2370
    %v2372 = vpop.f32.mrf.mxu0
    %v2373 = vadd.f32 %v2344, %v2372
    %2374 = vmatmul.bf16.gmra.mxu0 %v444
    %v2375 = vpop.f32.mrf.mxu0
    %v2376 = vadd.f32 %v2347, %v2375
    %v2377 = vpop.f32.mrf.mxu0
    %v2378 = vadd.f32 %v2349, %v2377
    %2379 = vmatmul.bf16.gmra.mxu0 %v448
    %v2380 = vpop.f32.mrf.mxu0
    %v2381 = vadd.f32 %v2352, %v2380
    %v2382 = vpop.f32.mrf.mxu0
    %v2383 = vadd.f32 %v2354, %v2382
    %2384 = vdwg.mxu0
    %2385 = vmatpush.bf16.msra.mxu0 %v1424
    %2386 = vmatpush.bf16.msra.mxu0 %v1416
    %2387 = vmatpush.bf16.msra.mxu0 %v1408
    %2388 = vmatpush.bf16.msra.mxu0 %v1400
    %2389 = vmatpush.bf16.msra.mxu0 %v1392
    %2390 = vmatpush.bf16.msra.mxu0 %v1384
    %2391 = vmatpush.bf16.msra.mxu0 %v1376
    %2392 = vmatpush.bf16.msra.mxu0 %v1368
    %2393 = vmatmul.bf16.gmra.mxu0 %v437
    %v2394 = vpop.f32.mrf.mxu0
    %v2395 = vadd.f32 %v2366, %v2394
    %v2396 = vpop.f32.mrf.mxu0
    %v2397 = vadd.f32 %v2368, %v2396
    %2398 = vmatmul.bf16.gmra.mxu0 %v441
    %v2399 = vpop.f32.mrf.mxu0
    %v2400 = vadd.f32 %v2371, %v2399
    %v2401 = vpop.f32.mrf.mxu0
    %v2402 = vadd.f32 %v2373, %v2401
    %2403 = vmatmul.bf16.gmra.mxu0 %v445
    %v2404 = vpop.f32.mrf.mxu0
    %v2405 = vadd.f32 %v2376, %v2404
    %v2406 = vpop.f32.mrf.mxu0
    %v2407 = vadd.f32 %v2378, %v2406
    %2408 = vmatmul.bf16.gmra.mxu0 %v449
    %v2409 = vpop.f32.mrf.mxu0
    %v2410 = vadd.f32 %v2381, %v2409
    %v2411 = vpop.f32.mrf.mxu0
    %v2412 = vadd.f32 %v2383, %v2411
    %2413 = vdwg.mxu0
    %2414 = vmatpush.bf16.msra.mxu0 %v1488
    %2415 = vmatpush.bf16.msra.mxu0 %v1480
    %2416 = vmatpush.bf16.msra.mxu0 %v1472
    %2417 = vmatpush.bf16.msra.mxu0 %v1464
    %2418 = vmatpush.bf16.msra.mxu0 %v1456
    %2419 = vmatpush.bf16.msra.mxu0 %v1448
    %2420 = vmatpush.bf16.msra.mxu0 %v1440
    %2421 = vmatpush.bf16.msra.mxu0 %v1432
    %2422 = vmatmul.bf16.gmra.mxu0 %v438
    %v2423 = vpop.f32.mrf.mxu0
    %v2424 = vadd.f32 %v2395, %v2423
    %v2425 = vpop.f32.mrf.mxu0
    %v2426 = vadd.f32 %v2397, %v2425
    %2427 = vmatmul.bf16.gmra.mxu0 %v442
    %v2428 = vpop.f32.mrf.mxu0
    %v2429 = vadd.f32 %v2400, %v2428
    %v2430 = vpop.f32.mrf.mxu0
    %v2431 = vadd.f32 %v2402, %v2430
    %2432 = vmatmul.bf16.gmra.mxu0 %v446
    %v2433 = vpop.f32.mrf.mxu0
    %v2434 = vadd.f32 %v2405, %v2433
    %v2435 = vpop.f32.mrf.mxu0
    %v2436 = vadd.f32 %v2407, %v2435
    %2437 = vmatmul.bf16.gmra.mxu0 %v450
    %v2438 = vpop.f32.mrf.mxu0
    %v2439 = vadd.f32 %v2410, %v2438
    %v2440 = vpop.f32.mrf.mxu0
    %v2441 = vadd.f32 %v2412, %v2440
    %2442 = vdwg.mxu0
    %2443 = vmatpush.bf16.msra.mxu0 %v1297
    %2444 = vmatpush.bf16.msra.mxu0 %v1289
    %2445 = vmatpush.bf16.msra.mxu0 %v1281
    %2446 = vmatpush.bf16.msra.mxu0 %v1273
    %2447 = vmatpush.bf16.msra.mxu0 %v1265
    %2448 = vmatpush.bf16.msra.mxu0 %v1257
    %2449 = vmatpush.bf16.msra.mxu0 %v1249
    %2450 = vmatpush.bf16.msra.mxu0 %v1241
    %2451 = vmatmul.bf16.gmra.mxu0 %v435
    %v2452 = vpop.f32.mrf.mxu0
    %v2453 = vadd.f32 %v377, %v2452
    %v2454 = vpop.f32.mrf.mxu0
    %v2455 = vadd.f32 %v377, %v2454
    %2456 = vmatmul.bf16.gmra.mxu0 %v439
    %v2457 = vpop.f32.mrf.mxu0
    %v2458 = vadd.f32 %v377, %v2457
    %v2459 = vpop.f32.mrf.mxu0
    %v2460 = vadd.f32 %v377, %v2459
    %2461 = vmatmul.bf16.gmra.mxu0 %v443
    %v2462 = vpop.f32.mrf.mxu0
    %v2463 = vadd.f32 %v377, %v2462
    %v2464 = vpop.f32.mrf.mxu0
    %v2465 = vadd.f32 %v377, %v2464
    %2466 = vmatmul.bf16.gmra.mxu0 %v447
    %v2467 = vpop.f32.mrf.mxu0
    %v2468 = vadd.f32 %v377, %v2467
    %v2469 = vpop.f32.mrf.mxu0
    %v2470 = vadd.f32 %v377, %v2469
    %2471 = vdwg.mxu0
    %2472 = vmatpush.bf16.msra.mxu0 %v1361
    %2473 = vmatpush.bf16.msra.mxu0 %v1353
    %2474 = vmatpush.bf16.msra.mxu0 %v1345
    %2475 = vmatpush.bf16.msra.mxu0 %v1337
    %2476 = vmatpush.bf16.msra.mxu0 %v1329
    %2477 = vmatpush.bf16.msra.mxu0 %v1321
    %2478 = vmatpush.bf16.msra.mxu0 %v1313
    %2479 = vmatpush.bf16.msra.mxu0 %v1305
    %2480 = vmatmul.bf16.gmra.mxu0 %v436
    %v2481 = vpop.f32.mrf.mxu0
    %v2482 = vadd.f32 %v2453, %v2481
    %v2483 = vpop.f32.mrf.mxu0
    %v2484 = vadd.f32 %v2455, %v2483
    %2485 = vmatmul.bf16.gmra.mxu0 %v440
    %v2486 = vpop.f32.mrf.mxu0
    %v2487 = vadd.f32 %v2458, %v2486
    %v2488 = vpop.f32.mrf.mxu0
    %v2489 = vadd.f32 %v2460, %v2488
    %2490 = vmatmul.bf16.gmra.mxu0 %v444
    %v2491 = vpop.f32.mrf.mxu0
    %v2492 = vadd.f32 %v2463, %v2491
    %v2493 = vpop.f32.mrf.mxu0
    %v2494 = vadd.f32 %v2465, %v2493
    %2495 = vmatmul.bf16.gmra.mxu0 %v448
    %v2496 = vpop.f32.mrf.mxu0
    %v2497 = vadd.f32 %v2468, %v2496
    %v2498 = vpop.f32.mrf.mxu0
    %v2499 = vadd.f32 %v2470, %v2498
    %2500 = vdwg.mxu0
    %2501 = vmatpush.bf16.msra.mxu0 %v1425
    %2502 = vmatpush.bf16.msra.mxu0 %v1417
    %2503 = vmatpush.bf16.msra.mxu0 %v1409
    %2504 = vmatpush.bf16.msra.mxu0 %v1401
    %2505 = vmatpush.bf16.msra.mxu0 %v1393
    %2506 = vmatpush.bf16.msra.mxu0 %v1385
    %2507 = vmatpush.bf16.msra.mxu0 %v1377
    %2508 = vmatpush.bf16.msra.mxu0 %v1369
    %2509 = vmatmul.bf16.gmra.mxu0 %v437
    %v2510 = vpop.f32.mrf.mxu0
    %v2511 = vadd.f32 %v2482, %v2510
    %v2512 = vpop.f32.mrf.mxu0
    %v2513 = vadd.f32 %v2484, %v2512
    %2514 = vmatmul.bf16.gmra.mxu0 %v441
    %v2515 = vpop.f32.mrf.mxu0
    %v2516 = vadd.f32 %v2487, %v2515
    %v2517 = vpop.f32.mrf.mxu0
    %v2518 = vadd.f32 %v2489, %v2517
    %2519 = vmatmul.bf16.gmra.mxu0 %v445
    %v2520 = vpop.f32.mrf.mxu0
    %v2521 = vadd.f32 %v2492, %v2520
    %v2522 = vpop.f32.mrf.mxu0
    %v2523 = vadd.f32 %v2494, %v2522
    %2524 = vmatmul.bf16.gmra.mxu0 %v449
    %v2525 = vpop.f32.mrf.mxu0
    %v2526 = vadd.f32 %v2497, %v2525
    %v2527 = vpop.f32.mrf.mxu0
    %v2528 = vadd.f32 %v2499, %v2527
    %2529 = vdwg.mxu0
    %2530 = vmatpush.bf16.msra.mxu0 %v1489
    %2531 = vmatpush.bf16.msra.mxu0 %v1481
    %2532 = vmatpush.bf16.msra.mxu0 %v1473
    %2533 = vmatpush.bf16.msra.mxu0 %v1465
    %2534 = vmatpush.bf16.msra.mxu0 %v1457
    %2535 = vmatpush.bf16.msra.mxu0 %v1449
    %2536 = vmatpush.bf16.msra.mxu0 %v1441
    %2537 = vmatpush.bf16.msra.mxu0 %v1433
    %2538 = vmatmul.bf16.gmra.mxu0 %v438
    %v2539 = vpop.f32.mrf.mxu0
    %v2540 = vadd.f32 %v2511, %v2539
    %v2541 = vpop.f32.mrf.mxu0
    %v2542 = vadd.f32 %v2513, %v2541
    %2543 = vmatmul.bf16.gmra.mxu0 %v442
    %v2544 = vpop.f32.mrf.mxu0
    %v2545 = vadd.f32 %v2516, %v2544
    %v2546 = vpop.f32.mrf.mxu0
    %v2547 = vadd.f32 %v2518, %v2546
    %2548 = vmatmul.bf16.gmra.mxu0 %v446
    %v2549 = vpop.f32.mrf.mxu0
    %v2550 = vadd.f32 %v2521, %v2549
    %v2551 = vpop.f32.mrf.mxu0
    %v2552 = vadd.f32 %v2523, %v2551
    %2553 = vmatmul.bf16.gmra.mxu0 %v450
    %v2554 = vpop.f32.mrf.mxu0
    %v2555 = vadd.f32 %v2526, %v2554
    %v2556 = vpop.f32.mrf.mxu0
    %v2557 = vadd.f32 %v2528, %v2556
    %2558 = vdwg.mxu0
    %2559 = vmatpush.bf16.msra.mxu0 %v1298
    %2560 = vmatpush.bf16.msra.mxu0 %v1290
    %2561 = vmatpush.bf16.msra.mxu0 %v1282
    %2562 = vmatpush.bf16.msra.mxu0 %v1274
    %2563 = vmatpush.bf16.msra.mxu0 %v1266
    %2564 = vmatpush.bf16.msra.mxu0 %v1258
    %2565 = vmatpush.bf16.msra.mxu0 %v1250
    %2566 = vmatpush.bf16.msra.mxu0 %v1242
    %2567 = vmatmul.bf16.gmra.mxu0 %v435
    %v2568 = vpop.f32.mrf.mxu0
    %v2569 = vadd.f32 %v378, %v2568
    %v2570 = vpop.f32.mrf.mxu0
    %v2571 = vadd.f32 %v378, %v2570
    %2572 = vmatmul.bf16.gmra.mxu0 %v439
    %v2573 = vpop.f32.mrf.mxu0
    %v2574 = vadd.f32 %v378, %v2573
    %v2575 = vpop.f32.mrf.mxu0
    %v2576 = vadd.f32 %v378, %v2575
    %2577 = vmatmul.bf16.gmra.mxu0 %v443
    %v2578 = vpop.f32.mrf.mxu0
    %v2579 = vadd.f32 %v378, %v2578
    %v2580 = vpop.f32.mrf.mxu0
    %v2581 = vadd.f32 %v378, %v2580
    %2582 = vmatmul.bf16.gmra.mxu0 %v447
    %v2583 = vpop.f32.mrf.mxu0
    %v2584 = vadd.f32 %v378, %v2583
    %v2585 = vpop.f32.mrf.mxu0
    %v2586 = vadd.f32 %v378, %v2585
    %2587 = vdwg.mxu0
    %2588 = vmatpush.bf16.msra.mxu0 %v1362
    %2589 = vmatpush.bf16.msra.mxu0 %v1354
    %2590 = vmatpush.bf16.msra.mxu0 %v1346
    %2591 = vmatpush.bf16.msra.mxu0 %v1338
    %2592 = vmatpush.bf16.msra.mxu0 %v1330
    %2593 = vmatpush.bf16.msra.mxu0 %v1322
    %2594 = vmatpush.bf16.msra.mxu0 %v1314
    %2595 = vmatpush.bf16.msra.mxu0 %v1306
    %2596 = vmatmul.bf16.gmra.mxu0 %v436
    %v2597 = vpop.f32.mrf.mxu0
    %v2598 = vadd.f32 %v2569, %v2597
    %v2599 = vpop.f32.mrf.mxu0
    %v2600 = vadd.f32 %v2571, %v2599
    %2601 = vmatmul.bf16.gmra.mxu0 %v440
    %v2602 = vpop.f32.mrf.mxu0
    %v2603 = vadd.f32 %v2574, %v2602
    %v2604 = vpop.f32.mrf.mxu0
    %v2605 = vadd.f32 %v2576, %v2604
    %2606 = vmatmul.bf16.gmra.mxu0 %v444
    %v2607 = vpop.f32.mrf.mxu0
    %v2608 = vadd.f32 %v2579, %v2607
    %v2609 = vpop.f32.mrf.mxu0
    %v2610 = vadd.f32 %v2581, %v2609
    %2611 = vmatmul.bf16.gmra.mxu0 %v448
    %v2612 = vpop.f32.mrf.mxu0
    %v2613 = vadd.f32 %v2584, %v2612
    %v2614 = vpop.f32.mrf.mxu0
    %v2615 = vadd.f32 %v2586, %v2614
    %2616 = vdwg.mxu0
    %2617 = vmatpush.bf16.msra.mxu0 %v1426
    %2618 = vmatpush.bf16.msra.mxu0 %v1418
    %2619 = vmatpush.bf16.msra.mxu0 %v1410
    %2620 = vmatpush.bf16.msra.mxu0 %v1402
    %2621 = vmatpush.bf16.msra.mxu0 %v1394
    %2622 = vmatpush.bf16.msra.mxu0 %v1386
    %2623 = vmatpush.bf16.msra.mxu0 %v1378
    %2624 = vmatpush.bf16.msra.mxu0 %v1370
    %2625 = vmatmul.bf16.gmra.mxu0 %v437
    %v2626 = vpop.f32.mrf.mxu0
    %v2627 = vadd.f32 %v2598, %v2626
    %v2628 = vpop.f32.mrf.mxu0
    %v2629 = vadd.f32 %v2600, %v2628
    %2630 = vmatmul.bf16.gmra.mxu0 %v441
    %v2631 = vpop.f32.mrf.mxu0
    %v2632 = vadd.f32 %v2603, %v2631
    %v2633 = vpop.f32.mrf.mxu0
    %v2634 = vadd.f32 %v2605, %v2633
    %2635 = vmatmul.bf16.gmra.mxu0 %v445
    %v2636 = vpop.f32.mrf.mxu0
    %v2637 = vadd.f32 %v2608, %v2636
    %v2638 = vpop.f32.mrf.mxu0
    %v2639 = vadd.f32 %v2610, %v2638
    %2640 = vmatmul.bf16.gmra.mxu0 %v449
    %v2641 = vpop.f32.mrf.mxu0
    %v2642 = vadd.f32 %v2613, %v2641
    %v2643 = vpop.f32.mrf.mxu0
    %v2644 = vadd.f32 %v2615, %v2643
    %2645 = vdwg.mxu0
    %2646 = vmatpush.bf16.msra.mxu0 %v1490
    %2647 = vmatpush.bf16.msra.mxu0 %v1482
    %2648 = vmatpush.bf16.msra.mxu0 %v1474
    %2649 = vmatpush.bf16.msra.mxu0 %v1466
    %2650 = vmatpush.bf16.msra.mxu0 %v1458
    %2651 = vmatpush.bf16.msra.mxu0 %v1450
    %2652 = vmatpush.bf16.msra.mxu0 %v1442
    %2653 = vmatpush.bf16.msra.mxu0 %v1434
    %2654 = vmatmul.bf16.gmra.mxu0 %v438
    %v2655 = vpop.f32.mrf.mxu0
    %v2656 = vadd.f32 %v2627, %v2655
    %v2657 = vpop.f32.mrf.mxu0
    %v2658 = vadd.f32 %v2629, %v2657
    %2659 = vmatmul.bf16.gmra.mxu0 %v442
    %v2660 = vpop.f32.mrf.mxu0
    %v2661 = vadd.f32 %v2632, %v2660
    %v2662 = vpop.f32.mrf.mxu0
    %v2663 = vadd.f32 %v2634, %v2662
    %2664 = vmatmul.bf16.gmra.mxu0 %v446
    %v2665 = vpop.f32.mrf.mxu0
    %v2666 = vadd.f32 %v2637, %v2665
    %v2667 = vpop.f32.mrf.mxu0
    %v2668 = vadd.f32 %v2639, %v2667
    %2669 = vmatmul.bf16.gmra.mxu0 %v450
    %v2670 = vpop.f32.mrf.mxu0
    %v2671 = vadd.f32 %v2642, %v2670
    %v2672 = vpop.f32.mrf.mxu0
    %v2673 = vadd.f32 %v2644, %v2672
    %2674 = vdwg.mxu0
    %2675 = vst [vmem:[#allocation2] sm:$0xff] %v1844
    %2676 = vst [vmem:[#allocation2 + $0x8] sm:$0xff] %v1960
    %2677 = vst [vmem:[#allocation2 + $0x10] sm:$0xff] %v2076
    %2678 = vst [vmem:[#allocation2 + $0x18] sm:$0xff] %v2192
    %2679 = vst [vmem:[#allocation2 + $0x20] sm:$0xff] %v2308
    %2680 = vst [vmem:[#allocation2 + $0x28] sm:$0xff] %v2424
    %2681 = vst [vmem:[#allocation2 + $0x30] sm:$0xff] %v2540
    %2682 = vst [vmem:[#allocation2 + $0x38] sm:$0xff] %v2656
    %2683 = vst [vmem:[#allocation2 + $0x40] sm:$0xff] %v1846
    %2684 = vst [vmem:[#allocation2 + $0x48] sm:$0xff] %v1962
    %2685 = vst [vmem:[#allocation2 + $0x50] sm:$0xff] %v2078
    %2686 = vst [vmem:[#allocation2 + $0x58] sm:$0xff] %v2194
    %2687 = vst [vmem:[#allocation2 + $0x60] sm:$0xff] %v2310
    %2688 = vst [vmem:[#allocation2 + $0x68] sm:$0xff] %v2426
    %2689 = vst [vmem:[#allocation2 + $0x70] sm:$0xff] %v2542
    %2690 = vst [vmem:[#allocation2 + $0x78] sm:$0xff] %v2658
    %2691 = vst [vmem:[#allocation2 + $0x80] sm:$0xff] %v1849
    %2692 = vst [vmem:[#allocation2 + $0x88] sm:$0xff] %v1965
    %2693 = vst [vmem:[#allocation2 + $0x90] sm:$0xff] %v2081
    %2694 = vst [vmem:[#allocation2 + $0x98] sm:$0xff] %v2197
    %2695 = vst [vmem:[#allocation2 + $0xa0] sm:$0xff] %v2313
    %2696 = vst [vmem:[#allocation2 + $0xa8] sm:$0xff] %v2429
    %2697 = vst [vmem:[#allocation2 + $0xb0] sm:$0xff] %v2545
    %2698 = vst [vmem:[#allocation2 + $0xb8] sm:$0xff] %v2661
    %2699 = vst [vmem:[#allocation2 + $0xc0] sm:$0xff] %v1851
    %2700 = vst [vmem:[#allocation2 + $0xc8] sm:$0xff] %v1967
    %2701 = vst [vmem:[#allocation2 + $0xd0] sm:$0xff] %v2083
    %2702 = vst [vmem:[#allocation2 + $0xd8] sm:$0xff] %v2199
    %2703 = vst [vmem:[#allocation2 + $0xe0] sm:$0xff] %v2315
    %2704 = vst [vmem:[#allocation2 + $0xe8] sm:$0xff] %v2431
    %2705 = vst [vmem:[#allocation2 + $0xf0] sm:$0xff] %v2547
    %2706 = vst [vmem:[#allocation2 + $0xf8] sm:$0xff] %v2663
    %2707 = vst [vmem:[#allocation2 + $0x100] sm:$0xff] %v1854
    %2708 = vst [vmem:[#allocation2 + $0x108] sm:$0xff] %v1970
    %2709 = vst [vmem:[#allocation2 + $0x110] sm:$0xff] %v2086
    %2710 = vst [vmem:[#allocation2 + $0x118] sm:$0xff] %v2202
    %2711 = vst [vmem:[#allocation2 + $0x120] sm:$0xff] %v2318
    %2712 = vst [vmem:[#allocation2 + $0x128] sm:$0xff] %v2434
    %2713 = vst [vmem:[#allocation2 + $0x130] sm:$0xff] %v2550
    %2714 = vst [vmem:[#allocation2 + $0x138] sm:$0xff] %v2666
    %2715 = vst [vmem:[#allocation2 + $0x140] sm:$0xff] %v1856
    %2716 = vst [vmem:[#allocation2 + $0x148] sm:$0xff] %v1972
    %2717 = vst [vmem:[#allocation2 + $0x150] sm:$0xff] %v2088
    %2718 = vst [vmem:[#allocation2 + $0x158] sm:$0xff] %v2204
    %2719 = vst [vmem:[#allocation2 + $0x160] sm:$0xff] %v2320
    %2720 = vst [vmem:[#allocation2 + $0x168] sm:$0xff] %v2436
    %2721 = vst [vmem:[#allocation2 + $0x170] sm:$0xff] %v2552
    %2722 = vst [vmem:[#allocation2 + $0x178] sm:$0xff] %v2668
    %2723 = vst [vmem:[#allocation2 + $0x180] sm:$0xff] %v1859
    %2724 = vst [vmem:[#allocation2 + $0x188] sm:$0xff] %v1975
    %2725 = vst [vmem:[#allocation2 + $0x190] sm:$0xff] %v2091
    %2726 = vst [vmem:[#allocation2 + $0x198] sm:$0xff] %v2207
    %2727 = vst [vmem:[#allocation2 + $0x1a0] sm:$0xff] %v2323
    %2728 = vst [vmem:[#allocation2 + $0x1a8] sm:$0xff] %v2439
    %2729 = vst [vmem:[#allocation2 + $0x1b0] sm:$0xff] %v2555
    %2730 = vst [vmem:[#allocation2 + $0x1b8] sm:$0xff] %v2671
    %2731 = vst [vmem:[#allocation2 + $0x1c0] sm:$0xff] %v1861
    %2732 = vst [vmem:[#allocation2 + $0x1c8] sm:$0xff] %v1977
    %2733 = vst [vmem:[#allocation2 + $0x1d0] sm:$0xff] %v2093
    %2734 = vst [vmem:[#allocation2 + $0x1d8] sm:$0xff] %v2209
    %2735 = vst [vmem:[#allocation2 + $0x1e0] sm:$0xff] %v2325
    %2736 = vst [vmem:[#allocation2 + $0x1e8] sm:$0xff] %v2441
    %2737 = vst [vmem:[#allocation2 + $0x1f0] sm:$0xff] %v2557
    %2738 = vst [vmem:[#allocation2 + $0x1f8] sm:$0xff] %v2673
    %s2739 = smul.u32 4, 32
    %s2740 = smul.u32 %s2739, 8
    %s2741 = sshll.u32 %s2740, 4
    %2742 = dma.done [#allocation4], %s2741
    %v2743 = vld [vmem:[#allocation3] sm:$0xff]
    %v2744 = vld [vmem:[#allocation3 + $0x8] sm:$0xff]
    %v2745 = vld [vmem:[#allocation3 + $0x10] sm:$0xff]
    %v2746 = vld [vmem:[#allocation3 + $0x18] sm:$0xff]
    %v2747 = vld [vmem:[#allocation3 + $0x20] sm:$0xff]
    %v2748 = vld [vmem:[#allocation3 + $0x28] sm:$0xff]
    %v2749 = vld [vmem:[#allocation3 + $0x30] sm:$0xff]
    %v2750 = vld [vmem:[#allocation3 + $0x38] sm:$0xff]
    %v2751 = vld [vmem:[#allocation3 + $0x40] sm:$0xff]
    %v2752 = vld [vmem:[#allocation3 + $0x48] sm:$0xff]
    %v2753 = vld [vmem:[#allocation3 + $0x50] sm:$0xff]
    %v2754 = vld [vmem:[#allocation3 + $0x58] sm:$0xff]
    %v2755 = vld [vmem:[#allocation3 + $0x60] sm:$0xff]
    %v2756 = vld [vmem:[#allocation3 + $0x68] sm:$0xff]
    %v2757 = vld [vmem:[#allocation3 + $0x70] sm:$0xff]
    %v2758 = vld [vmem:[#allocation3 + $0x78] sm:$0xff]
    %v2759 = vld [vmem:[#allocation3 + $0x80] sm:$0xff]
    %v2760 = vld [vmem:[#allocation3 + $0x88] sm:$0xff]
    %v2761 = vld [vmem:[#allocation3 + $0x90] sm:$0xff]
    %v2762 = vld [vmem:[#allocation3 + $0x98] sm:$0xff]
    %v2763 = vld [vmem:[#allocation3 + $0xa0] sm:$0xff]
    %v2764 = vld [vmem:[#allocation3 + $0xa8] sm:$0xff]
    %v2765 = vld [vmem:[#allocation3 + $0xb0] sm:$0xff]
    %v2766 = vld [vmem:[#allocation3 + $0xb8] sm:$0xff]
    %v2767 = vld [vmem:[#allocation3 + $0xc0] sm:$0xff]
    %v2768 = vld [vmem:[#allocation3 + $0xc8] sm:$0xff]
    %v2769 = vld [vmem:[#allocation3 + $0xd0] sm:$0xff]
    %v2770 = vld [vmem:[#allocation3 + $0xd8] sm:$0xff]
    %v2771 = vld [vmem:[#allocation3 + $0xe0] sm:$0xff]
    %v2772 = vld [vmem:[#allocation3 + $0xe8] sm:$0xff]
    %v2773 = vld [vmem:[#allocation3 + $0xf0] sm:$0xff]
    %v2774 = vld [vmem:[#allocation3 + $0xf8] sm:$0xff]
    %v2775 = vld [vmem:[#allocation3 + $0x100] sm:$0xff]
    %v2776 = vld [vmem:[#allocation3 + $0x108] sm:$0xff]
    %v2777 = vld [vmem:[#allocation3 + $0x110] sm:$0xff]
    %v2778 = vld [vmem:[#allocation3 + $0x118] sm:$0xff]
    %v2779 = vld [vmem:[#allocation3 + $0x120] sm:$0xff]
    %v2780 = vld [vmem:[#allocation3 + $0x128] sm:$0xff]
    %v2781 = vld [vmem:[#allocation3 + $0x130] sm:$0xff]
    %v2782 = vld [vmem:[#allocation3 + $0x138] sm:$0xff]
    %v2783 = vld [vmem:[#allocation3 + $0x140] sm:$0xff]
    %v2784 = vld [vmem:[#allocation3 + $0x148] sm:$0xff]
    %v2785 = vld [vmem:[#allocation3 + $0x150] sm:$0xff]
    %v2786 = vld [vmem:[#allocation3 + $0x158] sm:$0xff]
    %v2787 = vld [vmem:[#allocation3 + $0x160] sm:$0xff]
    %v2788 = vld [vmem:[#allocation3 + $0x168] sm:$0xff]
    %v2789 = vld [vmem:[#allocation3 + $0x170] sm:$0xff]
    %v2790 = vld [vmem:[#allocation3 + $0x178] sm:$0xff]
    %v2791 = vld [vmem:[#allocation3 + $0x180] sm:$0xff]
    %v2792 = vld [vmem:[#allocation3 + $0x188] sm:$0xff]
    %v2793 = vld [vmem:[#allocation3 + $0x190] sm:$0xff]
    %v2794 = vld [vmem:[#allocation3 + $0x198] sm:$0xff]
    %v2795 = vld [vmem:[#allocation3 + $0x1a0] sm:$0xff]
    %v2796 = vld [vmem:[#allocation3 + $0x1a8] sm:$0xff]
    %v2797 = vld [vmem:[#allocation3 + $0x1b0] sm:$0xff]
    %v2798 = vld [vmem:[#allocation3 + $0x1b8] sm:$0xff]
    %v2799 = vld [vmem:[#allocation3 + $0x1c0] sm:$0xff]
    %v2800 = vld [vmem:[#allocation3 + $0x1c8] sm:$0xff]
    %v2801 = vld [vmem:[#allocation3 + $0x1d0] sm:$0xff]
    %v2802 = vld [vmem:[#allocation3 + $0x1d8] sm:$0xff]
    %v2803 = vld [vmem:[#allocation3 + $0x1e0] sm:$0xff]
    %v2804 = vld [vmem:[#allocation3 + $0x1e8] sm:$0xff]
    %v2805 = vld [vmem:[#allocation3 + $0x1f0] sm:$0xff]
    %v2806 = vld [vmem:[#allocation3 + $0x1f8] sm:$0xff]
    %v2807 = vld [vmem:[#allocation3 + $0x200] sm:$0xff]
    %v2808 = vld [vmem:[#allocation3 + $0x208] sm:$0xff]
    %v2809 = vld [vmem:[#allocation3 + $0x210] sm:$0xff]
    %v2810 = vld [vmem:[#allocation3 + $0x218] sm:$0xff]
    %v2811 = vld [vmem:[#allocation3 + $0x220] sm:$0xff]
    %v2812 = vld [vmem:[#allocation3 + $0x228] sm:$0xff]
    %v2813 = vld [vmem:[#allocation3 + $0x230] sm:$0xff]
    %v2814 = vld [vmem:[#allocation3 + $0x238] sm:$0xff]
    %v2815 = vld [vmem:[#allocation3 + $0x240] sm:$0xff]
    %v2816 = vld [vmem:[#allocation3 + $0x248] sm:$0xff]
    %v2817 = vld [vmem:[#allocation3 + $0x250] sm:$0xff]
    %v2818 = vld [vmem:[#allocation3 + $0x258] sm:$0xff]
    %v2819 = vld [vmem:[#allocation3 + $0x260] sm:$0xff]
    %v2820 = vld [vmem:[#allocation3 + $0x268] sm:$0xff]
    %v2821 = vld [vmem:[#allocation3 + $0x270] sm:$0xff]
    %v2822 = vld [vmem:[#allocation3 + $0x278] sm:$0xff]
    %v2823 = vld [vmem:[#allocation3 + $0x280] sm:$0xff]
    %v2824 = vld [vmem:[#allocation3 + $0x288] sm:$0xff]
    %v2825 = vld [vmem:[#allocation3 + $0x290] sm:$0xff]
    %v2826 = vld [vmem:[#allocation3 + $0x298] sm:$0xff]
    %v2827 = vld [vmem:[#allocation3 + $0x2a0] sm:$0xff]
    %v2828 = vld [vmem:[#allocation3 + $0x2a8] sm:$0xff]
    %v2829 = vld [vmem:[#allocation3 + $0x2b0] sm:$0xff]
    %v2830 = vld [vmem:[#allocation3 + $0x2b8] sm:$0xff]
    %v2831 = vld [vmem:[#allocation3 + $0x2c0] sm:$0xff]
    %v2832 = vld [vmem:[#allocation3 + $0x2c8] sm:$0xff]
    %v2833 = vld [vmem:[#allocation3 + $0x2d0] sm:$0xff]
    %v2834 = vld [vmem:[#allocation3 + $0x2d8] sm:$0xff]
    %v2835 = vld [vmem:[#allocation3 + $0x2e0] sm:$0xff]
    %v2836 = vld [vmem:[#allocation3 + $0x2e8] sm:$0xff]
    %v2837 = vld [vmem:[#allocation3 + $0x2f0] sm:$0xff]
    %v2838 = vld [vmem:[#allocation3 + $0x2f8] sm:$0xff]
    %v2839 = vld [vmem:[#allocation3 + $0x300] sm:$0xff]
    %v2840 = vld [vmem:[#allocation3 + $0x308] sm:$0xff]
    %v2841 = vld [vmem:[#allocation3 + $0x310] sm:$0xff]
    %v2842 = vld [vmem:[#allocation3 + $0x318] sm:$0xff]
    %v2843 = vld [vmem:[#allocation3 + $0x320] sm:$0xff]
    %v2844 = vld [vmem:[#allocation3 + $0x328] sm:$0xff]
    %v2845 = vld [vmem:[#allocation3 + $0x330] sm:$0xff]
    %v2846 = vld [vmem:[#allocation3 + $0x338] sm:$0xff]
    %v2847 = vld [vmem:[#allocation3 + $0x340] sm:$0xff]
    %v2848 = vld [vmem:[#allocation3 + $0x348] sm:$0xff]
    %v2849 = vld [vmem:[#allocation3 + $0x350] sm:$0xff]
    %v2850 = vld [vmem:[#allocation3 + $0x358] sm:$0xff]
    %v2851 = vld [vmem:[#allocation3 + $0x360] sm:$0xff]
    %v2852 = vld [vmem:[#allocation3 + $0x368] sm:$0xff]
    %v2853 = vld [vmem:[#allocation3 + $0x370] sm:$0xff]
    %v2854 = vld [vmem:[#allocation3 + $0x378] sm:$0xff]
    %v2855 = vld [vmem:[#allocation3 + $0x380] sm:$0xff]
    %v2856 = vld [vmem:[#allocation3 + $0x388] sm:$0xff]
    %v2857 = vld [vmem:[#allocation3 + $0x390] sm:$0xff]
    %v2858 = vld [vmem:[#allocation3 + $0x398] sm:$0xff]
    %v2859 = vld [vmem:[#allocation3 + $0x3a0] sm:$0xff]
    %v2860 = vld [vmem:[#allocation3 + $0x3a8] sm:$0xff]
    %v2861 = vld [vmem:[#allocation3 + $0x3b0] sm:$0xff]
    %v2862 = vld [vmem:[#allocation3 + $0x3b8] sm:$0xff]
    %v2863 = vld [vmem:[#allocation3 + $0x3c0] sm:$0xff]
    %v2864 = vld [vmem:[#allocation3 + $0x3c8] sm:$0xff]
    %v2865 = vld [vmem:[#allocation3 + $0x3d0] sm:$0xff]
    %v2866 = vld [vmem:[#allocation3 + $0x3d8] sm:$0xff]
    %v2867 = vld [vmem:[#allocation3 + $0x3e0] sm:$0xff]
    %v2868 = vld [vmem:[#allocation3 + $0x3e8] sm:$0xff]
    %v2869 = vld [vmem:[#allocation3 + $0x3f0] sm:$0xff]
    %v2870 = vld [vmem:[#allocation3 + $0x3f8] sm:$0xff]
    %v2871 = vld [vmem:[#allocation2] sm:$0xff]
    %v2872 = vld [vmem:[#allocation2 + $0x8] sm:$0xff]
    %v2873 = vld [vmem:[#allocation2 + $0x10] sm:$0xff]
    %v2874 = vld [vmem:[#allocation2 + $0x18] sm:$0xff]
    %v2875 = vld [vmem:[#allocation2 + $0x20] sm:$0xff]
    %v2876 = vld [vmem:[#allocation2 + $0x28] sm:$0xff]
    %v2877 = vld [vmem:[#allocation2 + $0x30] sm:$0xff]
    %v2878 = vld [vmem:[#allocation2 + $0x38] sm:$0xff]
    %v3007 = vunpack.c.l.b16 %v2743
    %v3008 = vunpack.c.h.b16 %v2743
    %v3009 = vunpack.c.l.b16 %v2744
    %v3010 = vunpack.c.h.b16 %v2744
    %v3011 = vunpack.c.l.b16 %v2745
    %v3012 = vunpack.c.h.b16 %v2745
    %v3013 = vunpack.c.l.b16 %v2746
    %v3014 = vunpack.c.h.b16 %v2746
    %v3015 = vunpack.c.l.b16 %v2747
    %v3016 = vunpack.c.h.b16 %v2747
    %v3017 = vunpack.c.l.b16 %v2748
    %v3018 = vunpack.c.h.b16 %v2748
    %v3019 = vunpack.c.l.b16 %v2749
    %v3020 = vunpack.c.h.b16 %v2749
    %v3021 = vunpack.c.l.b16 %v2750
    %v3022 = vunpack.c.h.b16 %v2750
    %v3023 = vunpack.c.l.b16 %v2751
    %v3024 = vunpack.c.h.b16 %v2751
    %v3025 = vunpack.c.l.b16 %v2752
    %v3026 = vunpack.c.h.b16 %v2752
    %v3027 = vunpack.c.l.b16 %v2753
    %v3028 = vunpack.c.h.b16 %v2753
    %v3029 = vunpack.c.l.b16 %v2754
    %v3030 = vunpack.c.h.b16 %v2754
    %v3031 = vunpack.c.l.b16 %v2755
    %v3032 = vunpack.c.h.b16 %v2755
    %v3033 = vunpack.c.l.b16 %v2756
    %v3034 = vunpack.c.h.b16 %v2756
    %v3035 = vunpack.c.l.b16 %v2757
    %v3036 = vunpack.c.h.b16 %v2757
    %v3037 = vunpack.c.l.b16 %v2758
    %v3038 = vunpack.c.h.b16 %v2758
    %v3039 = vunpack.c.l.b16 %v2759
    %v3040 = vunpack.c.h.b16 %v2759
    %v3041 = vunpack.c.l.b16 %v2760
    %v3042 = vunpack.c.h.b16 %v2760
    %v3043 = vunpack.c.l.b16 %v2761
    %v3044 = vunpack.c.h.b16 %v2761
    %v3045 = vunpack.c.l.b16 %v2762
    %v3046 = vunpack.c.h.b16 %v2762
    %v3047 = vunpack.c.l.b16 %v2763
    %v3048 = vunpack.c.h.b16 %v2763
    %v3049 = vunpack.c.l.b16 %v2764
    %v3050 = vunpack.c.h.b16 %v2764
    %v3051 = vunpack.c.l.b16 %v2765
    %v3052 = vunpack.c.h.b16 %v2765
    %v3053 = vunpack.c.l.b16 %v2766
    %v3054 = vunpack.c.h.b16 %v2766
    %v3055 = vunpack.c.l.b16 %v2767
    %v3056 = vunpack.c.h.b16 %v2767
    %v3057 = vunpack.c.l.b16 %v2768
    %v3058 = vunpack.c.h.b16 %v2768
    %v3059 = vunpack.c.l.b16 %v2769
    %v3060 = vunpack.c.h.b16 %v2769
    %v3061 = vunpack.c.l.b16 %v2770
    %v3062 = vunpack.c.h.b16 %v2770
    %v3063 = vunpack.c.l.b16 %v2771
    %v3064 = vunpack.c.h.b16 %v2771
    %v3065 = vunpack.c.l.b16 %v2772
    %v3066 = vunpack.c.h.b16 %v2772
    %v3067 = vunpack.c.l.b16 %v2773
    %v3068 = vunpack.c.h.b16 %v2773
    %v3069 = vunpack.c.l.b16 %v2774
    %v3070 = vunpack.c.h.b16 %v2774
    %v3071 = vunpack.c.l.b16 %v2775
    %v3072 = vunpack.c.h.b16 %v2775
    %v3073 = vunpack.c.l.b16 %v2776
    %v3074 = vunpack.c.h.b16 %v2776
    %v3075 = vunpack.c.l.b16 %v2777
    %v3076 = vunpack.c.h.b16 %v2777
    %v3077 = vunpack.c.l.b16 %v2778
    %v3078 = vunpack.c.h.b16 %v2778
    %v3079 = vunpack.c.l.b16 %v2779
    %v3080 = vunpack.c.h.b16 %v2779
    %v3081 = vunpack.c.l.b16 %v2780
    %v3082 = vunpack.c.h.b16 %v2780
    %v3083 = vunpack.c.l.b16 %v2781
    %v3084 = vunpack.c.h.b16 %v2781
    %v3085 = vunpack.c.l.b16 %v2782
    %v3086 = vunpack.c.h.b16 %v2782
    %v3087 = vunpack.c.l.b16 %v2783
    %v3088 = vunpack.c.h.b16 %v2783
    %v3089 = vunpack.c.l.b16 %v2784
    %v3090 = vunpack.c.h.b16 %v2784
    %v3091 = vunpack.c.l.b16 %v2785
    %v3092 = vunpack.c.h.b16 %v2785
    %v3093 = vunpack.c.l.b16 %v2786
    %v3094 = vunpack.c.h.b16 %v2786
    %v3095 = vunpack.c.l.b16 %v2787
    %v3096 = vunpack.c.h.b16 %v2787
    %v3097 = vunpack.c.l.b16 %v2788
    %v3098 = vunpack.c.h.b16 %v2788
    %v3099 = vunpack.c.l.b16 %v2789
    %v3100 = vunpack.c.h.b16 %v2789
    %v3101 = vunpack.c.l.b16 %v2790
    %v3102 = vunpack.c.h.b16 %v2790
    %v3103 = vunpack.c.l.b16 %v2791
    %v3104 = vunpack.c.h.b16 %v2791
    %v3105 = vunpack.c.l.b16 %v2792
    %v3106 = vunpack.c.h.b16 %v2792
    %v3107 = vunpack.c.l.b16 %v2793
    %v3108 = vunpack.c.h.b16 %v2793
    %v3109 = vunpack.c.l.b16 %v2794
    %v3110 = vunpack.c.h.b16 %v2794
    %v3111 = vunpack.c.l.b16 %v2795
    %v3112 = vunpack.c.h.b16 %v2795
    %v3113 = vunpack.c.l.b16 %v2796
    %v3114 = vunpack.c.h.b16 %v2796
    %v3115 = vunpack.c.l.b16 %v2797
    %v3116 = vunpack.c.h.b16 %v2797
    %v3117 = vunpack.c.l.b16 %v2798
    %v3118 = vunpack.c.h.b16 %v2798
    %v3119 = vunpack.c.l.b16 %v2799
    %v3120 = vunpack.c.h.b16 %v2799
    %v3121 = vunpack.c.l.b16 %v2800
    %v3122 = vunpack.c.h.b16 %v2800
    %v3123 = vunpack.c.l.b16 %v2801
    %v3124 = vunpack.c.h.b16 %v2801
    %v3125 = vunpack.c.l.b16 %v2802
    %v3126 = vunpack.c.h.b16 %v2802
    %v3127 = vunpack.c.l.b16 %v2803
    %v3128 = vunpack.c.h.b16 %v2803
    %v3129 = vunpack.c.l.b16 %v2804
    %v3130 = vunpack.c.h.b16 %v2804
    %v3131 = vunpack.c.l.b16 %v2805
    %v3132 = vunpack.c.h.b16 %v2805
    %v3133 = vunpack.c.l.b16 %v2806
    %v3134 = vunpack.c.h.b16 %v2806
    %v3135 = vunpack.c.l.b16 %v2807
    %v3136 = vunpack.c.h.b16 %v2807
    %v3137 = vunpack.c.l.b16 %v2808
    %v3138 = vunpack.c.h.b16 %v2808
    %v3139 = vunpack.c.l.b16 %v2809
    %v3140 = vunpack.c.h.b16 %v2809
    %v3141 = vunpack.c.l.b16 %v2810
    %v3142 = vunpack.c.h.b16 %v2810
    %v3143 = vunpack.c.l.b16 %v2811
    %v3144 = vunpack.c.h.b16 %v2811
    %v3145 = vunpack.c.l.b16 %v2812
    %v3146 = vunpack.c.h.b16 %v2812
    %v3147 = vunpack.c.l.b16 %v2813
    %v3148 = vunpack.c.h.b16 %v2813
    %v3149 = vunpack.c.l.b16 %v2814
    %v3150 = vunpack.c.h.b16 %v2814
    %v3151 = vunpack.c.l.b16 %v2815
    %v3152 = vunpack.c.h.b16 %v2815
    %v3153 = vunpack.c.l.b16 %v2816
    %v3154 = vunpack.c.h.b16 %v2816
    %v3155 = vunpack.c.l.b16 %v2817
    %v3156 = vunpack.c.h.b16 %v2817
    %v3157 = vunpack.c.l.b16 %v2818
    %v3158 = vunpack.c.h.b16 %v2818
    %v3159 = vunpack.c.l.b16 %v2819
    %v3160 = vunpack.c.h.b16 %v2819
    %v3161 = vunpack.c.l.b16 %v2820
    %v3162 = vunpack.c.h.b16 %v2820
    %v3163 = vunpack.c.l.b16 %v2821
    %v3164 = vunpack.c.h.b16 %v2821
    %v3165 = vunpack.c.l.b16 %v2822
    %v3166 = vunpack.c.h.b16 %v2822
    %v3167 = vunpack.c.l.b16 %v2823
    %v3168 = vunpack.c.h.b16 %v2823
    %v3169 = vunpack.c.l.b16 %v2824
    %v3170 = vunpack.c.h.b16 %v2824
    %v3171 = vunpack.c.l.b16 %v2825
    %v3172 = vunpack.c.h.b16 %v2825
    %v3173 = vunpack.c.l.b16 %v2826
    %v3174 = vunpack.c.h.b16 %v2826
    %v3175 = vunpack.c.l.b16 %v2827
    %v3176 = vunpack.c.h.b16 %v2827
    %v3177 = vunpack.c.l.b16 %v2828
    %v3178 = vunpack.c.h.b16 %v2828
    %v3179 = vunpack.c.l.b16 %v2829
    %v3180 = vunpack.c.h.b16 %v2829
    %v3181 = vunpack.c.l.b16 %v2830
    %v3182 = vunpack.c.h.b16 %v2830
    %v3183 = vunpack.c.l.b16 %v2831
    %v3184 = vunpack.c.h.b16 %v2831
    %v3185 = vunpack.c.l.b16 %v2832
    %v3186 = vunpack.c.h.b16 %v2832
    %v3187 = vunpack.c.l.b16 %v2833
    %v3188 = vunpack.c.h.b16 %v2833
    %v3189 = vunpack.c.l.b16 %v2834
    %v3190 = vunpack.c.h.b16 %v2834
    %v3191 = vunpack.c.l.b16 %v2835
    %v3192 = vunpack.c.h.b16 %v2835
    %v3193 = vunpack.c.l.b16 %v2836
    %v3194 = vunpack.c.h.b16 %v2836
    %v3195 = vunpack.c.l.b16 %v2837
    %v3196 = vunpack.c.h.b16 %v2837
    %v3197 = vunpack.c.l.b16 %v2838
    %v3198 = vunpack.c.h.b16 %v2838
    %v3199 = vunpack.c.l.b16 %v2839
    %v3200 = vunpack.c.h.b16 %v2839
    %v3201 = vunpack.c.l.b16 %v2840
    %v3202 = vunpack.c.h.b16 %v2840
    %v3203 = vunpack.c.l.b16 %v2841
    %v3204 = vunpack.c.h.b16 %v2841
    %v3205 = vunpack.c.l.b16 %v2842
    %v3206 = vunpack.c.h.b16 %v2842
    %v3207 = vunpack.c.l.b16 %v2843
    %v3208 = vunpack.c.h.b16 %v2843
    %v3209 = vunpack.c.l.b16 %v2844
    %v3210 = vunpack.c.h.b16 %v2844
    %v3211 = vunpack.c.l.b16 %v2845
    %v3212 = vunpack.c.h.b16 %v2845
    %v3213 = vunpack.c.l.b16 %v2846
    %v3214 = vunpack.c.h.b16 %v2846
    %v3215 = vunpack.c.l.b16 %v2847
    %v3216 = vunpack.c.h.b16 %v2847
    %v3217 = vunpack.c.l.b16 %v2848
    %v3218 = vunpack.c.h.b16 %v2848
    %v3219 = vunpack.c.l.b16 %v2849
    %v3220 = vunpack.c.h.b16 %v2849
    %v3221 = vunpack.c.l.b16 %v2850
    %v3222 = vunpack.c.h.b16 %v2850
    %v3223 = vunpack.c.l.b16 %v2851
    %v3224 = vunpack.c.h.b16 %v2851
    %v3225 = vunpack.c.l.b16 %v2852
    %v3226 = vunpack.c.h.b16 %v2852
    %v3227 = vunpack.c.l.b16 %v2853
    %v3228 = vunpack.c.h.b16 %v2853
    %v3229 = vunpack.c.l.b16 %v2854
    %v3230 = vunpack.c.h.b16 %v2854
    %v3231 = vunpack.c.l.b16 %v2855
    %v3232 = vunpack.c.h.b16 %v2855
    %v3233 = vunpack.c.l.b16 %v2856
    %v3234 = vunpack.c.h.b16 %v2856
    %v3235 = vunpack.c.l.b16 %v2857
    %v3236 = vunpack.c.h.b16 %v2857
    %v3237 = vunpack.c.l.b16 %v2858
    %v3238 = vunpack.c.h.b16 %v2858
    %v3239 = vunpack.c.l.b16 %v2859
    %v3240 = vunpack.c.h.b16 %v2859
    %v3241 = vunpack.c.l.b16 %v2860
    %v3242 = vunpack.c.h.b16 %v2860
    %v3243 = vunpack.c.l.b16 %v2861
    %v3244 = vunpack.c.h.b16 %v2861
    %v3245 = vunpack.c.l.b16 %v2862
    %v3246 = vunpack.c.h.b16 %v2862
    %v3247 = vunpack.c.l.b16 %v2863
    %v3248 = vunpack.c.h.b16 %v2863
    %v3249 = vunpack.c.l.b16 %v2864
    %v3250 = vunpack.c.h.b16 %v2864
    %v3251 = vunpack.c.l.b16 %v2865
    %v3252 = vunpack.c.h.b16 %v2865
    %v3253 = vunpack.c.l.b16 %v2866
    %v3254 = vunpack.c.h.b16 %v2866
    %v3255 = vunpack.c.l.b16 %v2867
    %v3256 = vunpack.c.h.b16 %v2867
    %v3257 = vunpack.c.l.b16 %v2868
    %v3258 = vunpack.c.h.b16 %v2868
    %v3259 = vunpack.c.l.b16 %v2869
    %v3260 = vunpack.c.h.b16 %v2869
    %v3261 = vunpack.c.l.b16 %v2870
    %v3262 = vunpack.c.h.b16 %v2870
    %v3263 = vpack.c.b16 %v3015, %v3007
    %v3264 = vpack.c.b16 %v3016, %v3008
    %v3265 = vpack.c.b16 %v3017, %v3009
    %v3266 = vpack.c.b16 %v3018, %v3010
    %v3267 = vpack.c.b16 %v3019, %v3011
    %v3268 = vpack.c.b16 %v3020, %v3012
    %v3269 = vpack.c.b16 %v3021, %v3013
    %v3270 = vpack.c.b16 %v3022, %v3014
    %v3271 = vpack.c.b16 %v3031, %v3023
    %v3272 = vpack.c.b16 %v3032, %v3024
    %v3273 = vpack.c.b16 %v3033, %v3025
    %v3274 = vpack.c.b16 %v3034, %v3026
    %v3275 = vpack.c.b16 %v3035, %v3027
    %v3276 = vpack.c.b16 %v3036, %v3028
    %v3277 = vpack.c.b16 %v3037, %v3029
    %v3278 = vpack.c.b16 %v3038, %v3030
    %v3279 = vpack.c.b16 %v3047, %v3039
    %v3280 = vpack.c.b16 %v3048, %v3040
    %v3281 = vpack.c.b16 %v3049, %v3041
    %v3282 = vpack.c.b16 %v3050, %v3042
    %v3283 = vpack.c.b16 %v3051, %v3043
    %v3284 = vpack.c.b16 %v3052, %v3044
    %v3285 = vpack.c.b16 %v3053, %v3045
    %v3286 = vpack.c.b16 %v3054, %v3046
    %v3287 = vpack.c.b16 %v3063, %v3055
    %v3288 = vpack.c.b16 %v3064, %v3056
    %v3289 = vpack.c.b16 %v3065, %v3057
    %v3290 = vpack.c.b16 %v3066, %v3058
    %v3291 = vpack.c.b16 %v3067, %v3059
    %v3292 = vpack.c.b16 %v3068, %v3060
    %v3293 = vpack.c.b16 %v3069, %v3061
    %v3294 = vpack.c.b16 %v3070, %v3062
    %v3295 = vpack.c.b16 %v3079, %v3071
    %v3296 = vpack.c.b16 %v3080, %v3072
    %v3297 = vpack.c.b16 %v3081, %v3073
    %v3298 = vpack.c.b16 %v3082, %v3074
    %v3299 = vpack.c.b16 %v3083, %v3075
    %v3300 = vpack.c.b16 %v3084, %v3076
    %v3301 = vpack.c.b16 %v3085, %v3077
    %v3302 = vpack.c.b16 %v3086, %v3078
    %v3303 = vpack.c.b16 %v3095, %v3087
    %v3304 = vpack.c.b16 %v3096, %v3088
    %v3305 = vpack.c.b16 %v3097, %v3089
    %v3306 = vpack.c.b16 %v3098, %v3090
    %v3307 = vpack.c.b16 %v3099, %v3091
    %v3308 = vpack.c.b16 %v3100, %v3092
    %v3309 = vpack.c.b16 %v3101, %v3093
    %v3310 = vpack.c.b16 %v3102, %v3094
    %v3311 = vpack.c.b16 %v3111, %v3103
    %v3312 = vpack.c.b16 %v3112, %v3104
    %v3313 = vpack.c.b16 %v3113, %v3105
    %v3314 = vpack.c.b16 %v3114, %v3106
    %v3315 = vpack.c.b16 %v3115, %v3107
    %v3316 = vpack.c.b16 %v3116, %v3108
    %v3317 = vpack.c.b16 %v3117, %v3109
    %v3318 = vpack.c.b16 %v3118, %v3110
    %v3319 = vpack.c.b16 %v3127, %v3119
    %v3320 = vpack.c.b16 %v3128, %v3120
    %v3321 = vpack.c.b16 %v3129, %v3121
    %v3322 = vpack.c.b16 %v3130, %v3122
    %v3323 = vpack.c.b16 %v3131, %v3123
    %v3324 = vpack.c.b16 %v3132, %v3124
    %v3325 = vpack.c.b16 %v3133, %v3125
    %v3326 = vpack.c.b16 %v3134, %v3126
    %v3327 = vpack.c.b16 %v3143, %v3135
    %v3328 = vpack.c.b16 %v3144, %v3136
    %v3329 = vpack.c.b16 %v3145, %v3137
    %v3330 = vpack.c.b16 %v3146, %v3138
    %v3331 = vpack.c.b16 %v3147, %v3139
    %v3332 = vpack.c.b16 %v3148, %v3140
    %v3333 = vpack.c.b16 %v3149, %v3141
    %v3334 = vpack.c.b16 %v3150, %v3142
    %v3335 = vpack.c.b16 %v3159, %v3151
    %v3336 = vpack.c.b16 %v3160, %v3152
    %v3337 = vpack.c.b16 %v3161, %v3153
    %v3338 = vpack.c.b16 %v3162, %v3154
    %v3339 = vpack.c.b16 %v3163, %v3155
    %v3340 = vpack.c.b16 %v3164, %v3156
    %v3341 = vpack.c.b16 %v3165, %v3157
    %v3342 = vpack.c.b16 %v3166, %v3158
    %v3343 = vpack.c.b16 %v3175, %v3167
    %v3344 = vpack.c.b16 %v3176, %v3168
    %v3345 = vpack.c.b16 %v3177, %v3169
    %v3346 = vpack.c.b16 %v3178, %v3170
    %v3347 = vpack.c.b16 %v3179, %v3171
    %v3348 = vpack.c.b16 %v3180, %v3172
    %v3349 = vpack.c.b16 %v3181, %v3173
    %v3350 = vpack.c.b16 %v3182, %v3174
    %v3351 = vpack.c.b16 %v3191, %v3183
    %v3352 = vpack.c.b16 %v3192, %v3184
    %v3353 = vpack.c.b16 %v3193, %v3185
    %v3354 = vpack.c.b16 %v3194, %v3186
    %v3355 = vpack.c.b16 %v3195, %v3187
    %v3356 = vpack.c.b16 %v3196, %v3188
    %v3357 = vpack.c.b16 %v3197, %v3189
    %v3358 = vpack.c.b16 %v3198, %v3190
    %v3359 = vpack.c.b16 %v3207, %v3199
    %v3360 = vpack.c.b16 %v3208, %v3200
    %v3361 = vpack.c.b16 %v3209, %v3201
    %v3362 = vpack.c.b16 %v3210, %v3202
    %v3363 = vpack.c.b16 %v3211, %v3203
    %v3364 = vpack.c.b16 %v3212, %v3204
    %v3365 = vpack.c.b16 %v3213, %v3205
    %v3366 = vpack.c.b16 %v3214, %v3206
    %v3367 = vpack.c.b16 %v3223, %v3215
    %v3368 = vpack.c.b16 %v3224, %v3216
    %v3369 = vpack.c.b16 %v3225, %v3217
    %v3370 = vpack.c.b16 %v3226, %v3218
    %v3371 = vpack.c.b16 %v3227, %v3219
    %v3372 = vpack.c.b16 %v3228, %v3220
    %v3373 = vpack.c.b16 %v3229, %v3221
    %v3374 = vpack.c.b16 %v3230, %v3222
    %v3375 = vpack.c.b16 %v3239, %v3231
    %v3376 = vpack.c.b16 %v3240, %v3232
    %v3377 = vpack.c.b16 %v3241, %v3233
    %v3378 = vpack.c.b16 %v3242, %v3234
    %v3379 = vpack.c.b16 %v3243, %v3235
    %v3380 = vpack.c.b16 %v3244, %v3236
    %v3381 = vpack.c.b16 %v3245, %v3237
    %v3382 = vpack.c.b16 %v3246, %v3238
    %v3383 = vpack.c.b16 %v3255, %v3247
    %v3384 = vpack.c.b16 %v3256, %v3248
    %v3385 = vpack.c.b16 %v3257, %v3249
    %v3386 = vpack.c.b16 %v3258, %v3250
    %v3387 = vpack.c.b16 %v3259, %v3251
    %v3388 = vpack.c.b16 %v3260, %v3252
    %v3389 = vpack.c.b16 %v3261, %v3253
    %v3390 = vpack.c.b16 %v3262, %v3254
    %3519 = vmatpush.bf16.msra.mxu0 %v3319
    %3520 = vmatpush.bf16.msra.mxu0 %v3311
    %3521 = vmatpush.bf16.msra.mxu0 %v3303
    %3522 = vmatpush.bf16.msra.mxu0 %v3295
    %3523 = vmatpush.bf16.msra.mxu0 %v3287
    %3524 = vmatpush.bf16.msra.mxu0 %v3279
    %3525 = vmatpush.bf16.msra.mxu0 %v3271
    %3526 = vmatpush.bf16.msra.mxu0 %v3263
    %3527 = vmatmul.bf16.gmra.mxu0 0
    %v3528 = vpop.f32.mrf.mxu0
    %v3529 = vadd.f32 0.0, %v3528
    %v3530 = vpop.f32.mrf.mxu0
    %3531 = vdwg.mxu0
    %3532 = vmatpush.bf16.msra.mxu0 %v3383
    %3533 = vmatpush.bf16.msra.mxu0 %v3375
    %3534 = vmatpush.bf16.msra.mxu0 %v3367
    %3535 = vmatpush.bf16.msra.mxu0 %v3359
    %3536 = vmatpush.bf16.msra.mxu0 %v3351
    %3537 = vmatpush.bf16.msra.mxu0 %v3343
    %3538 = vmatpush.bf16.msra.mxu0 %v3335
    %3539 = vmatpush.bf16.msra.mxu0 %v3327
    %3540 = vmatmul.bf16.gmra.mxu0 0
    %v3541 = vpop.f32.mrf.mxu0
    %v3542 = vadd.f32 %v3529, %v3541
    %v3543 = vpop.f32.mrf.mxu0
    %3544 = vdwg.mxu0
    %3545 = vmatpush.bf16.msra.mxu0 %v3320
    %3546 = vmatpush.bf16.msra.mxu0 %v3312
    %3547 = vmatpush.bf16.msra.mxu0 %v3304
    %3548 = vmatpush.bf16.msra.mxu0 %v3296
    %3549 = vmatpush.bf16.msra.mxu0 %v3288
    %3550 = vmatpush.bf16.msra.mxu0 %v3280
    %3551 = vmatpush.bf16.msra.mxu0 %v3272
    %3552 = vmatpush.bf16.msra.mxu0 %v3264
    %3553 = vmatmul.bf16.gmra.mxu0 0
    %v3554 = vpop.f32.mrf.mxu0
    %v3555 = vadd.f32 0.0, %v3554
    %v3556 = vpop.f32.mrf.mxu0
    %3557 = vdwg.mxu0
    %3558 = vmatpush.bf16.msra.mxu0 %v3384
    %3559 = vmatpush.bf16.msra.mxu0 %v3376
    %3560 = vmatpush.bf16.msra.mxu0 %v3368
    %3561 = vmatpush.bf16.msra.mxu0 %v3360
    %3562 = vmatpush.bf16.msra.mxu0 %v3352
    %3563 = vmatpush.bf16.msra.mxu0 %v3344
    %3564 = vmatpush.bf16.msra.mxu0 %v3336
    %3565 = vmatpush.bf16.msra.mxu0 %v3328
    %3566 = vmatmul.bf16.gmra.mxu0 0
    %v3567 = vpop.f32.mrf.mxu0
    %v3568 = vadd.f32 %v3555, %v3567
    %v3569 = vpop.f32.mrf.mxu0
    %3570 = vdwg.mxu0
    %3571 = vmatpush.bf16.msra.mxu0 %v3321
    %3572 = vmatpush.bf16.msra.mxu0 %v3313
    %3573 = vmatpush.bf16.msra.mxu0 %v3305
    %3574 = vmatpush.bf16.msra.mxu0 %v3297
    %3575 = vmatpush.bf16.msra.mxu0 %v3289
    %3576 = vmatpush.bf16.msra.mxu0 %v3281
    %3577 = vmatpush.bf16.msra.mxu0 %v3273
    %3578 = vmatpush.bf16.msra.mxu0 %v3265
    %3579 = vmatmul.bf16.gmra.mxu0 0
    %v3580 = vpop.f32.mrf.mxu0
    %v3581 = vadd.f32 0.0, %v3580
    %v3582 = vpop.f32.mrf.mxu0
    %3583 = vdwg.mxu0
    %3584 = vmatpush.bf16.msra.mxu0 %v3385
    %3585 = vmatpush.bf16.msra.mxu0 %v3377
    %3586 = vmatpush.bf16.msra.mxu0 %v3369
    %3587 = vmatpush.bf16.msra.mxu0 %v3361
    %3588 = vmatpush.bf16.msra.mxu0 %v3353
    %3589 = vmatpush.bf16.msra.mxu0 %v3345
    %3590 = vmatpush.bf16.msra.mxu0 %v3337
    %3591 = vmatpush.bf16.msra.mxu0 %v3329
    %3592 = vmatmul.bf16.gmra.mxu0 0
    %v3593 = vpop.f32.mrf.mxu0
    %v3594 = vadd.f32 %v3581, %v3593
    %v3595 = vpop.f32.mrf.mxu0
    %3596 = vdwg.mxu0
    %3597 = vmatpush.bf16.msra.mxu0 %v3322
    %3598 = vmatpush.bf16.msra.mxu0 %v3314
    %3599 = vmatpush.bf16.msra.mxu0 %v3306
    %3600 = vmatpush.bf16.msra.mxu0 %v3298
    %3601 = vmatpush.bf16.msra.mxu0 %v3290
    %3602 = vmatpush.bf16.msra.mxu0 %v3282
    %3603 = vmatpush.bf16.msra.mxu0 %v3274
    %3604 = vmatpush.bf16.msra.mxu0 %v3266
    %3605 = vmatmul.bf16.gmra.mxu0 0
    %v3606 = vpop.f32.mrf.mxu0
    %v3607 = vadd.f32 0.0, %v3606
    %v3608 = vpop.f32.mrf.mxu0
    %3609 = vdwg.mxu0
    %3610 = vmatpush.bf16.msra.mxu0 %v3386
    %3611 = vmatpush.bf16.msra.mxu0 %v3378
    %3612 = vmatpush.bf16.msra.mxu0 %v3370
    %3613 = vmatpush.bf16.msra.mxu0 %v3362
    %3614 = vmatpush.bf16.msra.mxu0 %v3354
    %3615 = vmatpush.bf16.msra.mxu0 %v3346
    %3616 = vmatpush.bf16.msra.mxu0 %v3338
    %3617 = vmatpush.bf16.msra.mxu0 %v3330
    %3618 = vmatmul.bf16.gmra.mxu0 0
    %v3619 = vpop.f32.mrf.mxu0
    %v3620 = vadd.f32 %v3607, %v3619
    %v3621 = vpop.f32.mrf.mxu0
    %3622 = vdwg.mxu0
    %3623 = vmatpush.bf16.msra.mxu0 %v3323
    %3624 = vmatpush.bf16.msra.mxu0 %v3315
    %3625 = vmatpush.bf16.msra.mxu0 %v3307
    %3626 = vmatpush.bf16.msra.mxu0 %v3299
    %3627 = vmatpush.bf16.msra.mxu0 %v3291
    %3628 = vmatpush.bf16.msra.mxu0 %v3283
    %3629 = vmatpush.bf16.msra.mxu0 %v3275
    %3630 = vmatpush.bf16.msra.mxu0 %v3267
    %3631 = vmatmul.bf16.gmra.mxu0 0
    %v3632 = vpop.f32.mrf.mxu0
    %v3633 = vadd.f32 0.0, %v3632
    %v3634 = vpop.f32.mrf.mxu0
    %3635 = vdwg.mxu0
    %3636 = vmatpush.bf16.msra.mxu0 %v3387
    %3637 = vmatpush.bf16.msra.mxu0 %v3379
    %3638 = vmatpush.bf16.msra.mxu0 %v3371
    %3639 = vmatpush.bf16.msra.mxu0 %v3363
    %3640 = vmatpush.bf16.msra.mxu0 %v3355
    %3641 = vmatpush.bf16.msra.mxu0 %v3347
    %3642 = vmatpush.bf16.msra.mxu0 %v3339
    %3643 = vmatpush.bf16.msra.mxu0 %v3331
    %3644 = vmatmul.bf16.gmra.mxu0 0
    %v3645 = vpop.f32.mrf.mxu0
    %v3646 = vadd.f32 %v3633, %v3645
    %v3647 = vpop.f32.mrf.mxu0
    %3648 = vdwg.mxu0
    %3649 = vmatpush.bf16.msra.mxu0 %v3324
    %3650 = vmatpush.bf16.msra.mxu0 %v3316
    %3651 = vmatpush.bf16.msra.mxu0 %v3308
    %3652 = vmatpush.bf16.msra.mxu0 %v3300
    %3653 = vmatpush.bf16.msra.mxu0 %v3292
    %3654 = vmatpush.bf16.msra.mxu0 %v3284
    %3655 = vmatpush.bf16.msra.mxu0 %v3276
    %3656 = vmatpush.bf16.msra.mxu0 %v3268
    %3657 = vmatmul.bf16.gmra.mxu0 0
    %v3658 = vpop.f32.mrf.mxu0
    %v3659 = vadd.f32 0.0, %v3658
    %v3660 = vpop.f32.mrf.mxu0
    %3661 = vdwg.mxu0
    %3662 = vmatpush.bf16.msra.mxu0 %v3388
    %3663 = vmatpush.bf16.msra.mxu0 %v3380
    %3664 = vmatpush.bf16.msra.mxu0 %v3372
    %3665 = vmatpush.bf16.msra.mxu0 %v3364
    %3666 = vmatpush.bf16.msra.mxu0 %v3356
    %3667 = vmatpush.bf16.msra.mxu0 %v3348
    %3668 = vmatpush.bf16.msra.mxu0 %v3340
    %3669 = vmatpush.bf16.msra.mxu0 %v3332
    %3670 = vmatmul.bf16.gmra.mxu0 0
    %v3671 = vpop.f32.mrf.mxu0
    %v3672 = vadd.f32 %v3659, %v3671
    %v3673 = vpop.f32.mrf.mxu0
    %3674 = vdwg.mxu0
    %3675 = vmatpush.bf16.msra.mxu0 %v3325
    %3676 = vmatpush.bf16.msra.mxu0 %v3317
    %3677 = vmatpush.bf16.msra.mxu0 %v3309
    %3678 = vmatpush.bf16.msra.mxu0 %v3301
    %3679 = vmatpush.bf16.msra.mxu0 %v3293
    %3680 = vmatpush.bf16.msra.mxu0 %v3285
    %3681 = vmatpush.bf16.msra.mxu0 %v3277
    %3682 = vmatpush.bf16.msra.mxu0 %v3269
    %3683 = vmatmul.bf16.gmra.mxu0 0
    %v3684 = vpop.f32.mrf.mxu0
    %v3685 = vadd.f32 0.0, %v3684
    %v3686 = vpop.f32.mrf.mxu0
    %3687 = vdwg.mxu0
    %3688 = vmatpush.bf16.msra.mxu0 %v3389
    %3689 = vmatpush.bf16.msra.mxu0 %v3381
    %3690 = vmatpush.bf16.msra.mxu0 %v3373
    %3691 = vmatpush.bf16.msra.mxu0 %v3365
    %3692 = vmatpush.bf16.msra.mxu0 %v3357
    %3693 = vmatpush.bf16.msra.mxu0 %v3349
    %3694 = vmatpush.bf16.msra.mxu0 %v3341
    %3695 = vmatpush.bf16.msra.mxu0 %v3333
    %3696 = vmatmul.bf16.gmra.mxu0 0
    %v3697 = vpop.f32.mrf.mxu0
    %v3698 = vadd.f32 %v3685, %v3697
    %v3699 = vpop.f32.mrf.mxu0
    %3700 = vdwg.mxu0
    %3701 = vmatpush.bf16.msra.mxu0 %v3326
    %3702 = vmatpush.bf16.msra.mxu0 %v3318
    %3703 = vmatpush.bf16.msra.mxu0 %v3310
    %3704 = vmatpush.bf16.msra.mxu0 %v3302
    %3705 = vmatpush.bf16.msra.mxu0 %v3294
    %3706 = vmatpush.bf16.msra.mxu0 %v3286
    %3707 = vmatpush.bf16.msra.mxu0 %v3278
    %3708 = vmatpush.bf16.msra.mxu0 %v3270
    %3709 = vmatmul.bf16.gmra.mxu0 0
    %v3710 = vpop.f32.mrf.mxu0
    %v3711 = vadd.f32 0.0, %v3710
    %v3712 = vpop.f32.mrf.mxu0
    %3713 = vdwg.mxu0
    %3714 = vmatpush.bf16.msra.mxu0 %v3390
    %3715 = vmatpush.bf16.msra.mxu0 %v3382
    %3716 = vmatpush.bf16.msra.mxu0 %v3374
    %3717 = vmatpush.bf16.msra.mxu0 %v3366
    %3718 = vmatpush.bf16.msra.mxu0 %v3358
    %3719 = vmatpush.bf16.msra.mxu0 %v3350
    %3720 = vmatpush.bf16.msra.mxu0 %v3342
    %3721 = vmatpush.bf16.msra.mxu0 %v3334
    %3722 = vmatmul.bf16.gmra.mxu0 0
    %v3723 = vpop.f32.mrf.mxu0
    %v3724 = vadd.f32 %v3711, %v3723
    %v3725 = vpop.f32.mrf.mxu0
    %3726 = vdwg.mxu0
    %v3727 = vadd.f32 %v2871, %v3542
    %v3728 = vadd.f32 %v2872, %v3568
    %v3729 = vadd.f32 %v2873, %v3594
    %v3730 = vadd.f32 %v2874, %v3620
    %v3731 = vadd.f32 %v2875, %v3646
    %v3732 = vadd.f32 %v2876, %v3672
    %v3733 = vadd.f32 %v2877, %v3698
    %v3734 = vadd.f32 %v2878, %v3724
    %v3735 = vxor.u32 %v3727, 2147483648
    %v3736 = vxor.u32 %v3728, 2147483648
    %v3737 = vmul.f32 %v3735, 1.442695
    %v3738 = vpow.pop %v3737
    %v3739 = vmul.f32 %v3736, 1.442695
    %v3740 = vpow.pop %v3739
    %v3741 = vadd.f32 %v3738, 1.0
    %v3742 = vadd.f32 %v3740, 1.0
    %v3743 = vrcp.pop %v3741
    %v3744 = vmul.f32 %v3741, %v3743
    %v3745 = vsub.f32 1.0, %v3744
    %v3746 = vmul.f32 %v3743, %v3745
    %v3747 = vadd.f32 %v3743, %v3746
    %vm3748 = vweird.f32 %v3741
    %vm3749 = vweird.f32 %v3743
    %vm3750 = vmor %vm3748, %vm3749
    %v3751 = vsel %vm3750, %v3743, %v3747
    %v3752 = vand.u32 2147483647, %v3741
    %vm3753 = vcmp.eq.f32.partialorder %v3752, 8.507059e+37
    %v3754 = vand.u32 %v3741, 2147483648
    %v3755 = vor.u32 1.1754944e-38, %v3754
    %v3756 = vsel %vm3753, %v3755, %v3751
    %v3757 = vmul.f32 1.0, %v3756
    %v3758 = vrcp.pop %v3742
    %v3759 = vmul.f32 %v3742, %v3758
    %v3760 = vsub.f32 1.0, %v3759
    %v3761 = vmul.f32 %v3758, %v3760
    %v3762 = vadd.f32 %v3758, %v3761
    %vm3763 = vweird.f32 %v3742
    %vm3764 = vweird.f32 %v3758
    %vm3765 = vmor %vm3763, %vm3764
    %v3766 = vsel %vm3765, %v3758, %v3762
    %v3767 = vand.u32 2147483647, %v3742
    %vm3768 = vcmp.eq.f32.partialorder %v3767, 8.507059e+37
    %v3769 = vand.u32 %v3742, 2147483648
    %v3770 = vor.u32 1.1754944e-38, %v3769
    %v3771 = vsel %vm3768, %v3770, %v3766
    %v3772 = vmul.f32 1.0, %v3771
    %v3773 = vxor.u32 %v3729, 2147483648
    %v3774 = vxor.u32 %v3730, 2147483648
    %v3775 = vmul.f32 %v3773, 1.442695
    %v3776 = vpow.pop %v3775
    %v3777 = vmul.f32 %v3774, 1.442695
    %v3778 = vpow.pop %v3777
    %v3779 = vadd.f32 %v3776, 1.0
    %v3780 = vadd.f32 %v3778, 1.0
    %v3781 = vrcp.pop %v3779
    %v3782 = vmul.f32 %v3779, %v3781
    %v3783 = vsub.f32 1.0, %v3782
    %v3784 = vmul.f32 %v3781, %v3783
    %v3785 = vadd.f32 %v3781, %v3784
    %vm3786 = vweird.f32 %v3779
    %vm3787 = vweird.f32 %v3781
    %vm3788 = vmor %vm3786, %vm3787
    %v3789 = vsel %vm3788, %v3781, %v3785
    %v3790 = vand.u32 2147483647, %v3779
    %vm3791 = vcmp.eq.f32.partialorder %v3790, 8.507059e+37
    %v3792 = vand.u32 %v3779, 2147483648
    %v3793 = vor.u32 1.1754944e-38, %v3792
    %v3794 = vsel %vm3791, %v3793, %v3789
    %v3795 = vmul.f32 1.0, %v3794
    %v3796 = vrcp.pop %v3780
    %v3797 = vmul.f32 %v3780, %v3796
    %v3798 = vsub.f32 1.0, %v3797
    %v3799 = vmul.f32 %v3796, %v3798
    %v3800 = vadd.f32 %v3796, %v3799
    %vm3801 = vweird.f32 %v3780
    %vm3802 = vweird.f32 %v3796
    %vm3803 = vmor %vm3801, %vm3802
    %v3804 = vsel %vm3803, %v3796, %v3800
    %v3805 = vand.u32 2147483647, %v3780
    %vm3806 = vcmp.eq.f32.partialorder %v3805, 8.507059e+37
    %v3807 = vand.u32 %v3780, 2147483648
    %v3808 = vor.u32 1.1754944e-38, %v3807
    %v3809 = vsel %vm3806, %v3808, %v3804
    %v3810 = vmul.f32 1.0, %v3809
    %v3811 = vtanh.pop %v3731
    %v3812 = vtanh.pop %v3732
    %v3813 = vxor.u32 %v3733, 2147483648
    %v3814 = vxor.u32 %v3734, 2147483648
    %v3815 = vmul.f32 %v3813, 1.442695
    %v3816 = vpow.pop %v3815
    %v3817 = vmul.f32 %v3814, 1.442695
    %v3818 = vpow.pop %v3817
    %v3819 = vadd.f32 %v3816, 1.0
    %v3820 = vadd.f32 %v3818, 1.0
    %v3821 = vrcp.pop %v3819
    %v3822 = vmul.f32 %v3819, %v3821
    %v3823 = vsub.f32 1.0, %v3822
    %v3824 = vmul.f32 %v3821, %v3823
    %v3825 = vadd.f32 %v3821, %v3824
    %vm3826 = vweird.f32 %v3819
    %vm3827 = vweird.f32 %v3821
    %vm3828 = vmor %vm3826, %vm3827
    %v3829 = vsel %vm3828, %v3821, %v3825
    %v3830 = vand.u32 2147483647, %v3819
    %vm3831 = vcmp.eq.f32.partialorder %v3830, 8.507059e+37
    %v3832 = vand.u32 %v3819, 2147483648
    %v3833 = vor.u32 1.1754944e-38, %v3832
    %v3834 = vsel %vm3831, %v3833, %v3829
    %v3835 = vmul.f32 1.0, %v3834
    %v3836 = vrcp.pop %v3820
    %v3837 = vmul.f32 %v3820, %v3836
    %v3838 = vsub.f32 1.0, %v3837
    %v3839 = vmul.f32 %v3836, %v3838
    %v3840 = vadd.f32 %v3836, %v3839
    %vm3841 = vweird.f32 %v3820
    %vm3842 = vweird.f32 %v3836
    %vm3843 = vmor %vm3841, %vm3842
    %v3844 = vsel %vm3843, %v3836, %v3840
    %v3845 = vand.u32 2147483647, %v3820
    %vm3846 = vcmp.eq.f32.partialorder %v3845, 8.507059e+37
    %v3847 = vand.u32 %v3820, 2147483648
    %v3848 = vor.u32 1.1754944e-38, %v3847
    %v3849 = vsel %vm3846, %v3848, %v3844
    %v3850 = vmul.f32 1.0, %v3849
    %v3851 = vmul.f32 %v3795, 0.0
    %v3852 = vmul.f32 %v3810, 0.0
    %v3853 = vmul.f32 %v3757, %v3811
    %v3854 = vmul.f32 %v3772, %v3812
    %v3855 = vadd.f32 %v3851, %v3853
    %v3856 = vadd.f32 %v3852, %v3854
    %v3857 = vtanh.pop %v3855
    %v3858 = vtanh.pop %v3856
    %v3859 = vmul.f32 %v3835, %v3857
    %v3860 = vmul.f32 %v3850, %v3858
    %v3861 = vld [vmem:[#allocation2 + $0x40] sm:$0xff]
    %v3862 = vld [vmem:[#allocation2 + $0x48] sm:$0xff]
    %v3863 = vld [vmem:[#allocation2 + $0x50] sm:$0xff]
    %v3864 = vld [vmem:[#allocation2 + $0x58] sm:$0xff]
    %v3865 = vld [vmem:[#allocation2 + $0x60] sm:$0xff]
    %v3866 = vld [vmem:[#allocation2 + $0x68] sm:$0xff]
    %v3867 = vld [vmem:[#allocation2 + $0x70] sm:$0xff]
    %v3868 = vld [vmem:[#allocation2 + $0x78] sm:$0xff]
    %v3869 = vpack.c.bf16 %v3859, %v3859
    %v3870 = vpack.c.bf16 %v3860, %v3860
    %3871 = vmatpush.bf16.msra.mxu0 %v3319
    %3872 = vmatpush.bf16.msra.mxu0 %v3311
    %3873 = vmatpush.bf16.msra.mxu0 %v3303
    %3874 = vmatpush.bf16.msra.mxu0 %v3295
    %3875 = vmatpush.bf16.msra.mxu0 %v3287
    %3876 = vmatpush.bf16.msra.mxu0 %v3279
    %3877 = vmatpush.bf16.msra.mxu0 %v3271
    %3878 = vmatpush.bf16.msra.mxu0 %v3263
    %3879 = vmatmul.bf16.gmra.mxu0 %v3869
    %v3880 = vpop.f32.mrf.mxu0
    %v3881 = vadd.f32 0.0, %v3880
    %v3882 = vpop.f32.mrf.mxu0
    %3883 = vdwg.mxu0
    %3884 = vmatpush.bf16.msra.mxu0 %v3383
    %3885 = vmatpush.bf16.msra.mxu0 %v3375
    %3886 = vmatpush.bf16.msra.mxu0 %v3367
    %3887 = vmatpush.bf16.msra.mxu0 %v3359
    %3888 = vmatpush.bf16.msra.mxu0 %v3351
    %3889 = vmatpush.bf16.msra.mxu0 %v3343
    %3890 = vmatpush.bf16.msra.mxu0 %v3335
    %3891 = vmatpush.bf16.msra.mxu0 %v3327
    %3892 = vmatmul.bf16.gmra.mxu0 %v3870
    %v3893 = vpop.f32.mrf.mxu0
    %v3894 = vadd.f32 %v3881, %v3893
    %v3895 = vpop.f32.mrf.mxu0
    %3896 = vdwg.mxu0
    %3897 = vmatpush.bf16.msra.mxu0 %v3320
    %3898 = vmatpush.bf16.msra.mxu0 %v3312
    %3899 = vmatpush.bf16.msra.mxu0 %v3304
    %3900 = vmatpush.bf16.msra.mxu0 %v3296
    %3901 = vmatpush.bf16.msra.mxu0 %v3288
    %3902 = vmatpush.bf16.msra.mxu0 %v3280
    %3903 = vmatpush.bf16.msra.mxu0 %v3272
    %3904 = vmatpush.bf16.msra.mxu0 %v3264
    %3905 = vmatmul.bf16.gmra.mxu0 %v3869
    %v3906 = vpop.f32.mrf.mxu0
    %v3907 = vadd.f32 0.0, %v3906
    %v3908 = vpop.f32.mrf.mxu0
    %3909 = vdwg.mxu0
    %3910 = vmatpush.bf16.msra.mxu0 %v3384
    %3911 = vmatpush.bf16.msra.mxu0 %v3376
    %3912 = vmatpush.bf16.msra.mxu0 %v3368
    %3913 = vmatpush.bf16.msra.mxu0 %v3360
    %3914 = vmatpush.bf16.msra.mxu0 %v3352
    %3915 = vmatpush.bf16.msra.mxu0 %v3344
    %3916 = vmatpush.bf16.msra.mxu0 %v3336
    %3917 = vmatpush.bf16.msra.mxu0 %v3328
    %3918 = vmatmul.bf16.gmra.mxu0 %v3870
    %v3919 = vpop.f32.mrf.mxu0
    %v3920 = vadd.f32 %v3907, %v3919
    %v3921 = vpop.f32.mrf.mxu0
    %3922 = vdwg.mxu0
    %3923 = vmatpush.bf16.msra.mxu0 %v3321
    %3924 = vmatpush.bf16.msra.mxu0 %v3313
    %3925 = vmatpush.bf16.msra.mxu0 %v3305
    %3926 = vmatpush.bf16.msra.mxu0 %v3297
    %3927 = vmatpush.bf16.msra.mxu0 %v3289
    %3928 = vmatpush.bf16.msra.mxu0 %v3281
    %3929 = vmatpush.bf16.msra.mxu0 %v3273
    %3930 = vmatpush.bf16.msra.mxu0 %v3265
    %3931 = vmatmul.bf16.gmra.mxu0 %v3869
    %v3932 = vpop.f32.mrf.mxu0
    %v3933 = vadd.f32 0.0, %v3932
    %v3934 = vpop.f32.mrf.mxu0
    %3935 = vdwg.mxu0
    %3936 = vmatpush.bf16.msra.mxu0 %v3385
    %3937 = vmatpush.bf16.msra.mxu0 %v3377
    %3938 = vmatpush.bf16.msra.mxu0 %v3369
    %3939 = vmatpush.bf16.msra.mxu0 %v3361
    %3940 = vmatpush.bf16.msra.mxu0 %v3353
    %3941 = vmatpush.bf16.msra.mxu0 %v3345
    %3942 = vmatpush.bf16.msra.mxu0 %v3337
    %3943 = vmatpush.bf16.msra.mxu0 %v3329
    %3944 = vmatmul.bf16.gmra.mxu0 %v3870
    %v3945 = vpop.f32.mrf.mxu0
    %v3946 = vadd.f32 %v3933, %v3945
    %v3947 = vpop.f32.mrf.mxu0
    %3948 = vdwg.mxu0
    %3949 = vmatpush.bf16.msra.mxu0 %v3322
    %3950 = vmatpush.bf16.msra.mxu0 %v3314
    %3951 = vmatpush.bf16.msra.mxu0 %v3306
    %3952 = vmatpush.bf16.msra.mxu0 %v3298
    %3953 = vmatpush.bf16.msra.mxu0 %v3290
    %3954 = vmatpush.bf16.msra.mxu0 %v3282
    %3955 = vmatpush.bf16.msra.mxu0 %v3274
    %3956 = vmatpush.bf16.msra.mxu0 %v3266
    %3957 = vmatmul.bf16.gmra.mxu0 %v3869
    %v3958 = vpop.f32.mrf.mxu0
    %v3959 = vadd.f32 0.0, %v3958
    %v3960 = vpop.f32.mrf.mxu0
    %3961 = vdwg.mxu0
    %3962 = vmatpush.bf16.msra.mxu0 %v3386
    %3963 = vmatpush.bf16.msra.mxu0 %v3378
    %3964 = vmatpush.bf16.msra.mxu0 %v3370
    %3965 = vmatpush.bf16.msra.mxu0 %v3362
    %3966 = vmatpush.bf16.msra.mxu0 %v3354
    %3967 = vmatpush.bf16.msra.mxu0 %v3346
    %3968 = vmatpush.bf16.msra.mxu0 %v3338
    %3969 = vmatpush.bf16.msra.mxu0 %v3330
    %3970 = vmatmul.bf16.gmra.mxu0 %v3870
    %v3971 = vpop.f32.mrf.mxu0
    %v3972 = vadd.f32 %v3959, %v3971
    %v3973 = vpop.f32.mrf.mxu0
    %3974 = vdwg.mxu0
    %3975 = vmatpush.bf16.msra.mxu0 %v3323
    %3976 = vmatpush.bf16.msra.mxu0 %v3315
    %3977 = vmatpush.bf16.msra.mxu0 %v3307
    %3978 = vmatpush.bf16.msra.mxu0 %v3299
    %3979 = vmatpush.bf16.msra.mxu0 %v3291
    %3980 = vmatpush.bf16.msra.mxu0 %v3283
    %3981 = vmatpush.bf16.msra.mxu0 %v3275
    %3982 = vmatpush.bf16.msra.mxu0 %v3267
    %3983 = vmatmul.bf16.gmra.mxu0 %v3869
    %v3984 = vpop.f32.mrf.mxu0
    %v3985 = vadd.f32 0.0, %v3984
    %v3986 = vpop.f32.mrf.mxu0
    %3987 = vdwg.mxu0
    %3988 = vmatpush.bf16.msra.mxu0 %v3387
    %3989 = vmatpush.bf16.msra.mxu0 %v3379
    %3990 = vmatpush.bf16.msra.mxu0 %v3371
    %3991 = vmatpush.bf16.msra.mxu0 %v3363
    %3992 = vmatpush.bf16.msra.mxu0 %v3355
    %3993 = vmatpush.bf16.msra.mxu0 %v3347
    %3994 = vmatpush.bf16.msra.mxu0 %v3339
    %3995 = vmatpush.bf16.msra.mxu0 %v3331
    %3996 = vmatmul.bf16.gmra.mxu0 %v3870
    %v3997 = vpop.f32.mrf.mxu0
    %v3998 = vadd.f32 %v3985, %v3997
    %v3999 = vpop.f32.mrf.mxu0
    %4000 = vdwg.mxu0
    %4001 = vmatpush.bf16.msra.mxu0 %v3324
    %4002 = vmatpush.bf16.msra.mxu0 %v3316
    %4003 = vmatpush.bf16.msra.mxu0 %v3308
    %4004 = vmatpush.bf16.msra.mxu0 %v3300
    %4005 = vmatpush.bf16.msra.mxu0 %v3292
    %4006 = vmatpush.bf16.msra.mxu0 %v3284
    %4007 = vmatpush.bf16.msra.mxu0 %v3276
    %4008 = vmatpush.bf16.msra.mxu0 %v3268
    %4009 = vmatmul.bf16.gmra.mxu0 %v3869
    %v4010 = vpop.f32.mrf.mxu0
    %v4011 = vadd.f32 0.0, %v4010
    %v4012 = vpop.f32.mrf.mxu0
    %4013 = vdwg.mxu0
    %4014 = vmatpush.bf16.msra.mxu0 %v3388
    %4015 = vmatpush.bf16.msra.mxu0 %v3380
    %4016 = vmatpush.bf16.msra.mxu0 %v3372
    %4017 = vmatpush.bf16.msra.mxu0 %v3364
    %4018 = vmatpush.bf16.msra.mxu0 %v3356
    %4019 = vmatpush.bf16.msra.mxu0 %v3348
    %4020 = vmatpush.bf16.msra.mxu0 %v3340
    %4021 = vmatpush.bf16.msra.mxu0 %v3332
    %4022 = vmatmul.bf16.gmra.mxu0 %v3870
    %v4023 = vpop.f32.mrf.mxu0
    %v4024 = vadd.f32 %v4011, %v4023
    %v4025 = vpop.f32.mrf.mxu0
    %4026 = vdwg.mxu0
    %4027 = vmatpush.bf16.msra.mxu0 %v3325
    %4028 = vmatpush.bf16.msra.mxu0 %v3317
    %4029 = vmatpush.bf16.msra.mxu0 %v3309
    %4030 = vmatpush.bf16.msra.mxu0 %v3301
    %4031 = vmatpush.bf16.msra.mxu0 %v3293
    %4032 = vmatpush.bf16.msra.mxu0 %v3285
    %4033 = vmatpush.bf16.msra.mxu0 %v3277
    %4034 = vmatpush.bf16.msra.mxu0 %v3269
    %4035 = vmatmul.bf16.gmra.mxu0 %v3869
    %v4036 = vpop.f32.mrf.mxu0
    %v4037 = vadd.f32 0.0, %v4036
    %v4038 = vpop.f32.mrf.mxu0
    %4039 = vdwg.mxu0
    %4040 = vmatpush.bf16.msra.mxu0 %v3389
    %4041 = vmatpush.bf16.msra.mxu0 %v3381
    %4042 = vmatpush.bf16.msra.mxu0 %v3373
    %4043 = vmatpush.bf16.msra.mxu0 %v3365
    %4044 = vmatpush.bf16.msra.mxu0 %v3357
    %4045 = vmatpush.bf16.msra.mxu0 %v3349
    %4046 = vmatpush.bf16.msra.mxu0 %v3341
    %4047 = vmatpush.bf16.msra.mxu0 %v3333
    %4048 = vmatmul.bf16.gmra.mxu0 %v3870
    %v4049 = vpop.f32.mrf.mxu0
    %v4050 = vadd.f32 %v4037, %v4049
    %v4051 = vpop.f32.mrf.mxu0
    %4052 = vdwg.mxu0
    %4053 = vmatpush.bf16.msra.mxu0 %v3326
    %4054 = vmatpush.bf16.msra.mxu0 %v3318
    %4055 = vmatpush.bf16.msra.mxu0 %v3310
    %4056 = vmatpush.bf16.msra.mxu0 %v3302
    %4057 = vmatpush.bf16.msra.mxu0 %v3294
    %4058 = vmatpush.bf16.msra.mxu0 %v3286
    %4059 = vmatpush.bf16.msra.mxu0 %v3278
    %4060 = vmatpush.bf16.msra.mxu0 %v3270
    %4061 = vmatmul.bf16.gmra.mxu0 %v3869
    %v4062 = vpop.f32.mrf.mxu0
    %v4063 = vadd.f32 0.0, %v4062
    %v4064 = vpop.f32.mrf.mxu0
    %4065 = vdwg.mxu0
    %4066 = vmatpush.bf16.msra.mxu0 %v3390
    %4067 = vmatpush.bf16.msra.mxu0 %v3382
    %4068 = vmatpush.bf16.msra.mxu0 %v3374
    %4069 = vmatpush.bf16.msra.mxu0 %v3366
    %4070 = vmatpush.bf16.msra.mxu0 %v3358
    %4071 = vmatpush.bf16.msra.mxu0 %v3350
    %4072 = vmatpush.bf16.msra.mxu0 %v3342
    %4073 = vmatpush.bf16.msra.mxu0 %v3334
    %4074 = vmatmul.bf16.gmra.mxu0 %v3870
    %v4075 = vpop.f32.mrf.mxu0
    %v4076 = vadd.f32 %v4063, %v4075
    %v4077 = vpop.f32.mrf.mxu0
    %4078 = vdwg.mxu0
    %v4079 = vadd.f32 %v3861, %v3894
    %v4080 = vadd.f32 %v3862, %v3920
    %v4081 = vadd.f32 %v3863, %v3946
    %v4082 = vadd.f32 %v3864, %v3972
    %v4083 = vadd.f32 %v3865, %v3998
    %v4084 = vadd.f32 %v3866, %v4024
    %v4085 = vadd.f32 %v3867, %v4050
    %v4086 = vadd.f32 %v3868, %v4076
    %v4087 = vxor.u32 %v4079, 2147483648
    %v4088 = vxor.u32 %v4080, 2147483648
    %v4089 = vmul.f32 %v4087, 1.442695
    %v4090 = vpow.pop %v4089
    %v4091 = vmul.f32 %v4088, 1.442695
    %v4092 = vpow.pop %v4091
    %v4093 = vadd.f32 %v4090, 1.0
    %v4094 = vadd.f32 %v4092, 1.0
    %v4095 = vrcp.pop %v4093
    %v4096 = vmul.f32 %v4093, %v4095
    %v4097 = vsub.f32 1.0, %v4096
    %v4098 = vmul.f32 %v4095, %v4097
    %v4099 = vadd.f32 %v4095, %v4098
    %vm4100 = vweird.f32 %v4093
    %vm4101 = vweird.f32 %v4095
    %vm4102 = vmor %vm4100, %vm4101
    %v4103 = vsel %vm4102, %v4095, %v4099
    %v4104 = vand.u32 2147483647, %v4093
    %vm4105 = vcmp.eq.f32.partialorder %v4104, 8.507059e+37
    %v4106 = vand.u32 %v4093, 2147483648
    %v4107 = vor.u32 1.1754944e-38, %v4106
    %v4108 = vsel %vm4105, %v4107, %v4103
    %v4109 = vmul.f32 1.0, %v4108
    %v4110 = vrcp.pop %v4094
    %v4111 = vmul.f32 %v4094, %v4110
    %v4112 = vsub.f32 1.0, %v4111
    %v4113 = vmul.f32 %v4110, %v4112
    %v4114 = vadd.f32 %v4110, %v4113
    %vm4115 = vweird.f32 %v4094
    %vm4116 = vweird.f32 %v4110
    %vm4117 = vmor %vm4115, %vm4116
    %v4118 = vsel %vm4117, %v4110, %v4114
    %v4119 = vand.u32 2147483647, %v4094
    %vm4120 = vcmp.eq.f32.partialorder %v4119, 8.507059e+37
    %v4121 = vand.u32 %v4094, 2147483648
    %v4122 = vor.u32 1.1754944e-38, %v4121
    %v4123 = vsel %vm4120, %v4122, %v4118
    %v4124 = vmul.f32 1.0, %v4123
    %v4125 = vxor.u32 %v4081, 2147483648
    %v4126 = vxor.u32 %v4082, 2147483648
    %v4127 = vmul.f32 %v4125, 1.442695
    %v4128 = vpow.pop %v4127
    %v4129 = vmul.f32 %v4126, 1.442695
    %v4130 = vpow.pop %v4129
    %v4131 = vadd.f32 %v4128, 1.0
    %v4132 = vadd.f32 %v4130, 1.0
    %v4133 = vrcp.pop %v4131
    %v4134 = vmul.f32 %v4131, %v4133
    %v4135 = vsub.f32 1.0, %v4134
    %v4136 = vmul.f32 %v4133, %v4135
    %v4137 = vadd.f32 %v4133, %v4136
    %vm4138 = vweird.f32 %v4131
    %vm4139 = vweird.f32 %v4133
    %vm4140 = vmor %vm4138, %vm4139
    %v4141 = vsel %vm4140, %v4133, %v4137
    %v4142 = vand.u32 2147483647, %v4131
    %vm4143 = vcmp.eq.f32.partialorder %v4142, 8.507059e+37
    %v4144 = vand.u32 %v4131, 2147483648
    %v4145 = vor.u32 1.1754944e-38, %v4144
    %v4146 = vsel %vm4143, %v4145, %v4141
    %v4147 = vmul.f32 1.0, %v4146
    %v4148 = vrcp.pop %v4132
    %v4149 = vmul.f32 %v4132, %v4148
    %v4150 = vsub.f32 1.0, %v4149
    %v4151 = vmul.f32 %v4148, %v4150
    %v4152 = vadd.f32 %v4148, %v4151
    %vm4153 = vweird.f32 %v4132
    %vm4154 = vweird.f32 %v4148
    %vm4155 = vmor %vm4153, %vm4154
    %v4156 = vsel %vm4155, %v4148, %v4152
    %v4157 = vand.u32 2147483647, %v4132
    %vm4158 = vcmp.eq.f32.partialorder %v4157, 8.507059e+37
    %v4159 = vand.u32 %v4132, 2147483648
    %v4160 = vor.u32 1.1754944e-38, %v4159
    %v4161 = vsel %vm4158, %v4160, %v4156
    %v4162 = vmul.f32 1.0, %v4161
    %v4163 = vtanh.pop %v4083
    %v4164 = vtanh.pop %v4084
    %v4165 = vxor.u32 %v4085, 2147483648
    %v4166 = vxor.u32 %v4086, 2147483648
    %v4167 = vmul.f32 %v4165, 1.442695
    %v4168 = vpow.pop %v4167
    %v4169 = vmul.f32 %v4166, 1.442695
    %v4170 = vpow.pop %v4169
    %v4171 = vadd.f32 %v4168, 1.0
    %v4172 = vadd.f32 %v4170, 1.0
    %v4173 = vrcp.pop %v4171
    %v4174 = vmul.f32 %v4171, %v4173
    %v4175 = vsub.f32 1.0, %v4174
    %v4176 = vmul.f32 %v4173, %v4175
    %v4177 = vadd.f32 %v4173, %v4176
    %vm4178 = vweird.f32 %v4171
    %vm4179 = vweird.f32 %v4173
    %vm4180 = vmor %vm4178, %vm4179
    %v4181 = vsel %vm4180, %v4173, %v4177
    %v4182 = vand.u32 2147483647, %v4171
    %vm4183 = vcmp.eq.f32.partialorder %v4182, 8.507059e+37
    %v4184 = vand.u32 %v4171, 2147483648
    %v4185 = vor.u32 1.1754944e-38, %v4184
    %v4186 = vsel %vm4183, %v4185, %v4181
    %v4187 = vmul.f32 1.0, %v4186
    %v4188 = vrcp.pop %v4172
    %v4189 = vmul.f32 %v4172, %v4188
    %v4190 = vsub.f32 1.0, %v4189
    %v4191 = vmul.f32 %v4188, %v4190
    %v4192 = vadd.f32 %v4188, %v4191
    %vm4193 = vweird.f32 %v4172
    %vm4194 = vweird.f32 %v4188
    %vm4195 = vmor %vm4193, %vm4194
    %v4196 = vsel %vm4195, %v4188, %v4192
    %v4197 = vand.u32 2147483647, %v4172
    %vm4198 = vcmp.eq.f32.partialorder %v4197, 8.507059e+37
    %v4199 = vand.u32 %v4172, 2147483648
    %v4200 = vor.u32 1.1754944e-38, %v4199
    %v4201 = vsel %vm4198, %v4200, %v4196
    %v4202 = vmul.f32 1.0, %v4201
    %v4203 = vmul.f32 %v4147, %v3855
    %v4204 = vmul.f32 %v4162, %v3856
    %v4205 = vmul.f32 %v4109, %v4163
    %v4206 = vmul.f32 %v4124, %v4164
    %v4207 = vadd.f32 %v4203, %v4205
    %v4208 = vadd.f32 %v4204, %v4206
    %v4209 = vtanh.pop %v4207
    %v4210 = vtanh.pop %v4208
    %v4211 = vmul.f32 %v4187, %v4209
    %v4212 = vmul.f32 %v4202, %v4210
    %v4213 = vld [vmem:[#allocation2 + $0x80] sm:$0xff]
    %v4214 = vld [vmem:[#allocation2 + $0x88] sm:$0xff]
    %v4215 = vld [vmem:[#allocation2 + $0x90] sm:$0xff]
    %v4216 = vld [vmem:[#allocation2 + $0x98] sm:$0xff]
    %v4217 = vld [vmem:[#allocation2 + $0xa0] sm:$0xff]
    %v4218 = vld [vmem:[#allocation2 + $0xa8] sm:$0xff]
    %v4219 = vld [vmem:[#allocation2 + $0xb0] sm:$0xff]
    %v4220 = vld [vmem:[#allocation2 + $0xb8] sm:$0xff]
    %v4221 = vpack.c.bf16 %v4211, %v4211
    %v4222 = vpack.c.bf16 %v4212, %v4212
    %4223 = vmatpush.bf16.msra.mxu0 %v3319
    %4224 = vmatpush.bf16.msra.mxu0 %v3311
    %4225 = vmatpush.bf16.msra.mxu0 %v3303
    %4226 = vmatpush.bf16.msra.mxu0 %v3295
    %4227 = vmatpush.bf16.msra.mxu0 %v3287
    %4228 = vmatpush.bf16.msra.mxu0 %v3279
    %4229 = vmatpush.bf16.msra.mxu0 %v3271
    %4230 = vmatpush.bf16.msra.mxu0 %v3263
    %4231 = vmatmul.bf16.gmra.mxu0 %v4221
    %v4232 = vpop.f32.mrf.mxu0
    %v4233 = vadd.f32 0.0, %v4232
    %v4234 = vpop.f32.mrf.mxu0
    %4235 = vdwg.mxu0
    %4236 = vmatpush.bf16.msra.mxu0 %v3383
    %4237 = vmatpush.bf16.msra.mxu0 %v3375
    %4238 = vmatpush.bf16.msra.mxu0 %v3367
    %4239 = vmatpush.bf16.msra.mxu0 %v3359
    %4240 = vmatpush.bf16.msra.mxu0 %v3351
    %4241 = vmatpush.bf16.msra.mxu0 %v3343
    %4242 = vmatpush.bf16.msra.mxu0 %v3335
    %4243 = vmatpush.bf16.msra.mxu0 %v3327
    %4244 = vmatmul.bf16.gmra.mxu0 %v4222
    %v4245 = vpop.f32.mrf.mxu0
    %v4246 = vadd.f32 %v4233, %v4245
    %v4247 = vpop.f32.mrf.mxu0
    %4248 = vdwg.mxu0
    %4249 = vmatpush.bf16.msra.mxu0 %v3320
    %4250 = vmatpush.bf16.msra.mxu0 %v3312
    %4251 = vmatpush.bf16.msra.mxu0 %v3304
    %4252 = vmatpush.bf16.msra.mxu0 %v3296
    %4253 = vmatpush.bf16.msra.mxu0 %v3288
    %4254 = vmatpush.bf16.msra.mxu0 %v3280
    %4255 = vmatpush.bf16.msra.mxu0 %v3272
    %4256 = vmatpush.bf16.msra.mxu0 %v3264
    %4257 = vmatmul.bf16.gmra.mxu0 %v4221
    %v4258 = vpop.f32.mrf.mxu0
    %v4259 = vadd.f32 0.0, %v4258
    %v4260 = vpop.f32.mrf.mxu0
    %4261 = vdwg.mxu0
    %4262 = vmatpush.bf16.msra.mxu0 %v3384
    %4263 = vmatpush.bf16.msra.mxu0 %v3376
    %4264 = vmatpush.bf16.msra.mxu0 %v3368
    %4265 = vmatpush.bf16.msra.mxu0 %v3360
    %4266 = vmatpush.bf16.msra.mxu0 %v3352
    %4267 = vmatpush.bf16.msra.mxu0 %v3344
    %4268 = vmatpush.bf16.msra.mxu0 %v3336
    %4269 = vmatpush.bf16.msra.mxu0 %v3328
    %4270 = vmatmul.bf16.gmra.mxu0 %v4222
    %v4271 = vpop.f32.mrf.mxu0
    %v4272 = vadd.f32 %v4259, %v4271
    %v4273 = vpop.f32.mrf.mxu0
    %4274 = vdwg.mxu0
    %4275 = vmatpush.bf16.msra.mxu0 %v3321
    %4276 = vmatpush.bf16.msra.mxu0 %v3313
    %4277 = vmatpush.bf16.msra.mxu0 %v3305
    %4278 = vmatpush.bf16.msra.mxu0 %v3297
    %4279 = vmatpush.bf16.msra.mxu0 %v3289
    %4280 = vmatpush.bf16.msra.mxu0 %v3281
    %4281 = vmatpush.bf16.msra.mxu0 %v3273
    %4282 = vmatpush.bf16.msra.mxu0 %v3265
    %4283 = vmatmul.bf16.gmra.mxu0 %v4221
    %v4284 = vpop.f32.mrf.mxu0
    %v4285 = vadd.f32 0.0, %v4284
    %v4286 = vpop.f32.mrf.mxu0
    %4287 = vdwg.mxu0
    %4288 = vmatpush.bf16.msra.mxu0 %v3385
    %4289 = vmatpush.bf16.msra.mxu0 %v3377
    %4290 = vmatpush.bf16.msra.mxu0 %v3369
    %4291 = vmatpush.bf16.msra.mxu0 %v3361
    %4292 = vmatpush.bf16.msra.mxu0 %v3353
    %4293 = vmatpush.bf16.msra.mxu0 %v3345
    %4294 = vmatpush.bf16.msra.mxu0 %v3337
    %4295 = vmatpush.bf16.msra.mxu0 %v3329
    %4296 = vmatmul.bf16.gmra.mxu0 %v4222
    %v4297 = vpop.f32.mrf.mxu0
    %v4298 = vadd.f32 %v4285, %v4297
    %v4299 = vpop.f32.mrf.mxu0
    %4300 = vdwg.mxu0
    %4301 = vmatpush.bf16.msra.mxu0 %v3322
    %4302 = vmatpush.bf16.msra.mxu0 %v3314
    %4303 = vmatpush.bf16.msra.mxu0 %v3306
    %4304 = vmatpush.bf16.msra.mxu0 %v3298
    %4305 = vmatpush.bf16.msra.mxu0 %v3290
    %4306 = vmatpush.bf16.msra.mxu0 %v3282
    %4307 = vmatpush.bf16.msra.mxu0 %v3274
    %4308 = vmatpush.bf16.msra.mxu0 %v3266
    %4309 = vmatmul.bf16.gmra.mxu0 %v4221
    %v4310 = vpop.f32.mrf.mxu0
    %v4311 = vadd.f32 0.0, %v4310
    %v4312 = vpop.f32.mrf.mxu0
    %4313 = vdwg.mxu0
    %4314 = vmatpush.bf16.msra.mxu0 %v3386
    %4315 = vmatpush.bf16.msra.mxu0 %v3378
    %4316 = vmatpush.bf16.msra.mxu0 %v3370
    %4317 = vmatpush.bf16.msra.mxu0 %v3362
    %4318 = vmatpush.bf16.msra.mxu0 %v3354
    %4319 = vmatpush.bf16.msra.mxu0 %v3346
    %4320 = vmatpush.bf16.msra.mxu0 %v3338
    %4321 = vmatpush.bf16.msra.mxu0 %v3330
    %4322 = vmatmul.bf16.gmra.mxu0 %v4222
    %v4323 = vpop.f32.mrf.mxu0
    %v4324 = vadd.f32 %v4311, %v4323
    %v4325 = vpop.f32.mrf.mxu0
    %4326 = vdwg.mxu0
    %4327 = vmatpush.bf16.msra.mxu0 %v3323
    %4328 = vmatpush.bf16.msra.mxu0 %v3315
    %4329 = vmatpush.bf16.msra.mxu0 %v3307
    %4330 = vmatpush.bf16.msra.mxu0 %v3299
    %4331 = vmatpush.bf16.msra.mxu0 %v3291
    %4332 = vmatpush.bf16.msra.mxu0 %v3283
    %4333 = vmatpush.bf16.msra.mxu0 %v3275
    %4334 = vmatpush.bf16.msra.mxu0 %v3267
    %4335 = vmatmul.bf16.gmra.mxu0 %v4221
    %v4336 = vpop.f32.mrf.mxu0
    %v4337 = vadd.f32 0.0, %v4336
    %v4338 = vpop.f32.mrf.mxu0
    %4339 = vdwg.mxu0
    %4340 = vmatpush.bf16.msra.mxu0 %v3387
    %4341 = vmatpush.bf16.msra.mxu0 %v3379
    %4342 = vmatpush.bf16.msra.mxu0 %v3371
    %4343 = vmatpush.bf16.msra.mxu0 %v3363
    %4344 = vmatpush.bf16.msra.mxu0 %v3355
    %4345 = vmatpush.bf16.msra.mxu0 %v3347
    %4346 = vmatpush.bf16.msra.mxu0 %v3339
    %4347 = vmatpush.bf16.msra.mxu0 %v3331
    %4348 = vmatmul.bf16.gmra.mxu0 %v4222
    %v4349 = vpop.f32.mrf.mxu0
    %v4350 = vadd.f32 %v4337, %v4349
    %v4351 = vpop.f32.mrf.mxu0
    %4352 = vdwg.mxu0
    %4353 = vmatpush.bf16.msra.mxu0 %v3324
    %4354 = vmatpush.bf16.msra.mxu0 %v3316
    %4355 = vmatpush.bf16.msra.mxu0 %v3308
    %4356 = vmatpush.bf16.msra.mxu0 %v3300
    %4357 = vmatpush.bf16.msra.mxu0 %v3292
    %4358 = vmatpush.bf16.msra.mxu0 %v3284
    %4359 = vmatpush.bf16.msra.mxu0 %v3276
    %4360 = vmatpush.bf16.msra.mxu0 %v3268
    %4361 = vmatmul.bf16.gmra.mxu0 %v4221
    %v4362 = vpop.f32.mrf.mxu0
    %v4363 = vadd.f32 0.0, %v4362
    %v4364 = vpop.f32.mrf.mxu0
    %4365 = vdwg.mxu0
    %4366 = vmatpush.bf16.msra.mxu0 %v3388
    %4367 = vmatpush.bf16.msra.mxu0 %v3380
    %4368 = vmatpush.bf16.msra.mxu0 %v3372
    %4369 = vmatpush.bf16.msra.mxu0 %v3364
    %4370 = vmatpush.bf16.msra.mxu0 %v3356
    %4371 = vmatpush.bf16.msra.mxu0 %v3348
    %4372 = vmatpush.bf16.msra.mxu0 %v3340
    %4373 = vmatpush.bf16.msra.mxu0 %v3332
    %4374 = vmatmul.bf16.gmra.mxu0 %v4222
    %v4375 = vpop.f32.mrf.mxu0
    %v4376 = vadd.f32 %v4363, %v4375
    %v4377 = vpop.f32.mrf.mxu0
    %4378 = vdwg.mxu0
    %4379 = vmatpush.bf16.msra.mxu0 %v3325
    %4380 = vmatpush.bf16.msra.mxu0 %v3317
    %4381 = vmatpush.bf16.msra.mxu0 %v3309
    %4382 = vmatpush.bf16.msra.mxu0 %v3301
    %4383 = vmatpush.bf16.msra.mxu0 %v3293
    %4384 = vmatpush.bf16.msra.mxu0 %v3285
    %4385 = vmatpush.bf16.msra.mxu0 %v3277
    %4386 = vmatpush.bf16.msra.mxu0 %v3269
    %4387 = vmatmul.bf16.gmra.mxu0 %v4221
    %v4388 = vpop.f32.mrf.mxu0
    %v4389 = vadd.f32 0.0, %v4388
    %v4390 = vpop.f32.mrf.mxu0
    %4391 = vdwg.mxu0
    %4392 = vmatpush.bf16.msra.mxu0 %v3389
    %4393 = vmatpush.bf16.msra.mxu0 %v3381
    %4394 = vmatpush.bf16.msra.mxu0 %v3373
    %4395 = vmatpush.bf16.msra.mxu0 %v3365
    %4396 = vmatpush.bf16.msra.mxu0 %v3357
    %4397 = vmatpush.bf16.msra.mxu0 %v3349
    %4398 = vmatpush.bf16.msra.mxu0 %v3341
    %4399 = vmatpush.bf16.msra.mxu0 %v3333
    %4400 = vmatmul.bf16.gmra.mxu0 %v4222
    %v4401 = vpop.f32.mrf.mxu0
    %v4402 = vadd.f32 %v4389, %v4401
    %v4403 = vpop.f32.mrf.mxu0
    %4404 = vdwg.mxu0
    %4405 = vmatpush.bf16.msra.mxu0 %v3326
    %4406 = vmatpush.bf16.msra.mxu0 %v3318
    %4407 = vmatpush.bf16.msra.mxu0 %v3310
    %4408 = vmatpush.bf16.msra.mxu0 %v3302
    %4409 = vmatpush.bf16.msra.mxu0 %v3294
    %4410 = vmatpush.bf16.msra.mxu0 %v3286
    %4411 = vmatpush.bf16.msra.mxu0 %v3278
    %4412 = vmatpush.bf16.msra.mxu0 %v3270
    %4413 = vmatmul.bf16.gmra.mxu0 %v4221
    %v4414 = vpop.f32.mrf.mxu0
    %v4415 = vadd.f32 0.0, %v4414
    %v4416 = vpop.f32.mrf.mxu0
    %4417 = vdwg.mxu0
    %4418 = vmatpush.bf16.msra.mxu0 %v3390
    %4419 = vmatpush.bf16.msra.mxu0 %v3382
    %4420 = vmatpush.bf16.msra.mxu0 %v3374
    %4421 = vmatpush.bf16.msra.mxu0 %v3366
    %4422 = vmatpush.bf16.msra.mxu0 %v3358
    %4423 = vmatpush.bf16.msra.mxu0 %v3350
    %4424 = vmatpush.bf16.msra.mxu0 %v3342
    %4425 = vmatpush.bf16.msra.mxu0 %v3334
    %4426 = vmatmul.bf16.gmra.mxu0 %v4222
    %v4427 = vpop.f32.mrf.mxu0
    %v4428 = vadd.f32 %v4415, %v4427
    %v4429 = vpop.f32.mrf.mxu0
    %4430 = vdwg.mxu0
    %v4431 = vadd.f32 %v4213, %v4246
    %v4432 = vadd.f32 %v4214, %v4272
    %v4433 = vadd.f32 %v4215, %v4298
    %v4434 = vadd.f32 %v4216, %v4324
    %v4435 = vadd.f32 %v4217, %v4350
    %v4436 = vadd.f32 %v4218, %v4376
    %v4437 = vadd.f32 %v4219, %v4402
    %v4438 = vadd.f32 %v4220, %v4428
    %v4439 = vxor.u32 %v4431, 2147483648
    %v4440 = vxor.u32 %v4432, 2147483648
    %v4441 = vmul.f32 %v4439, 1.442695
    %v4442 = vpow.pop %v4441
    %v4443 = vmul.f32 %v4440, 1.442695
    %v4444 = vpow.pop %v4443
    %v4445 = vadd.f32 %v4442, 1.0
    %v4446 = vadd.f32 %v4444, 1.0
    %v4447 = vrcp.pop %v4445
    %v4448 = vmul.f32 %v4445, %v4447
    %v4449 = vsub.f32 1.0, %v4448
    %v4450 = vmul.f32 %v4447, %v4449
    %v4451 = vadd.f32 %v4447, %v4450
    %vm4452 = vweird.f32 %v4445
    %vm4453 = vweird.f32 %v4447
    %vm4454 = vmor %vm4452, %vm4453
    %v4455 = vsel %vm4454, %v4447, %v4451
    %v4456 = vand.u32 2147483647, %v4445
    %vm4457 = vcmp.eq.f32.partialorder %v4456, 8.507059e+37
    %v4458 = vand.u32 %v4445, 2147483648
    %v4459 = vor.u32 1.1754944e-38, %v4458
    %v4460 = vsel %vm4457, %v4459, %v4455
    %v4461 = vmul.f32 1.0, %v4460
    %v4462 = vrcp.pop %v4446
    %v4463 = vmul.f32 %v4446, %v4462
    %v4464 = vsub.f32 1.0, %v4463
    %v4465 = vmul.f32 %v4462, %v4464
    %v4466 = vadd.f32 %v4462, %v4465
    %vm4467 = vweird.f32 %v4446
    %vm4468 = vweird.f32 %v4462
    %vm4469 = vmor %vm4467, %vm4468
    %v4470 = vsel %vm4469, %v4462, %v4466
    %v4471 = vand.u32 2147483647, %v4446
    %vm4472 = vcmp.eq.f32.partialorder %v4471, 8.507059e+37
    %v4473 = vand.u32 %v4446, 2147483648
    %v4474 = vor.u32 1.1754944e-38, %v4473
    %v4475 = vsel %vm4472, %v4474, %v4470
    %v4476 = vmul.f32 1.0, %v4475
    %v4477 = vxor.u32 %v4433, 2147483648
    %v4478 = vxor.u32 %v4434, 2147483648
    %v4479 = vmul.f32 %v4477, 1.442695
    %v4480 = vpow.pop %v4479
    %v4481 = vmul.f32 %v4478, 1.442695
    %v4482 = vpow.pop %v4481
    %v4483 = vadd.f32 %v4480, 1.0
    %v4484 = vadd.f32 %v4482, 1.0
    %v4485 = vrcp.pop %v4483
    %v4486 = vmul.f32 %v4483, %v4485
    %v4487 = vsub.f32 1.0, %v4486
    %v4488 = vmul.f32 %v4485, %v4487
    %v4489 = vadd.f32 %v4485, %v4488
    %vm4490 = vweird.f32 %v4483
    %vm4491 = vweird.f32 %v4485
    %vm4492 = vmor %vm4490, %vm4491
    %v4493 = vsel %vm4492, %v4485, %v4489
    %v4494 = vand.u32 2147483647, %v4483
    %vm4495 = vcmp.eq.f32.partialorder %v4494, 8.507059e+37
    %v4496 = vand.u32 %v4483, 2147483648
    %v4497 = vor.u32 1.1754944e-38, %v4496
    %v4498 = vsel %vm4495, %v4497, %v4493
    %v4499 = vmul.f32 1.0, %v4498
    %v4500 = vrcp.pop %v4484
    %v4501 = vmul.f32 %v4484, %v4500
    %v4502 = vsub.f32 1.0, %v4501
    %v4503 = vmul.f32 %v4500, %v4502
    %v4504 = vadd.f32 %v4500, %v4503
    %vm4505 = vweird.f32 %v4484
    %vm4506 = vweird.f32 %v4500
    %vm4507 = vmor %vm4505, %vm4506
    %v4508 = vsel %vm4507, %v4500, %v4504
    %v4509 = vand.u32 2147483647, %v4484
    %vm4510 = vcmp.eq.f32.partialorder %v4509, 8.507059e+37
    %v4511 = vand.u32 %v4484, 2147483648
    %v4512 = vor.u32 1.1754944e-38, %v4511
    %v4513 = vsel %vm4510, %v4512, %v4508
    %v4514 = vmul.f32 1.0, %v4513
    %v4515 = vtanh.pop %v4435
    %v4516 = vtanh.pop %v4436
    %v4517 = vxor.u32 %v4437, 2147483648
    %v4518 = vxor.u32 %v4438, 2147483648
    %v4519 = vmul.f32 %v4517, 1.442695
    %v4520 = vpow.pop %v4519
    %v4521 = vmul.f32 %v4518, 1.442695
    %v4522 = vpow.pop %v4521
    %v4523 = vadd.f32 %v4520, 1.0
    %v4524 = vadd.f32 %v4522, 1.0
    %v4525 = vrcp.pop %v4523
    %v4526 = vmul.f32 %v4523, %v4525
    %v4527 = vsub.f32 1.0, %v4526
    %v4528 = vmul.f32 %v4525, %v4527
    %v4529 = vadd.f32 %v4525, %v4528
    %vm4530 = vweird.f32 %v4523
    %vm4531 = vweird.f32 %v4525
    %vm4532 = vmor %vm4530, %vm4531
    %v4533 = vsel %vm4532, %v4525, %v4529
    %v4534 = vand.u32 2147483647, %v4523
    %vm4535 = vcmp.eq.f32.partialorder %v4534, 8.507059e+37
    %v4536 = vand.u32 %v4523, 2147483648
    %v4537 = vor.u32 1.1754944e-38, %v4536
    %v4538 = vsel %vm4535, %v4537, %v4533
    %v4539 = vmul.f32 1.0, %v4538
    %v4540 = vrcp.pop %v4524
    %v4541 = vmul.f32 %v4524, %v4540
    %v4542 = vsub.f32 1.0, %v4541
    %v4543 = vmul.f32 %v4540, %v4542
    %v4544 = vadd.f32 %v4540, %v4543
    %vm4545 = vweird.f32 %v4524
    %vm4546 = vweird.f32 %v4540
    %vm4547 = vmor %vm4545, %vm4546
    %v4548 = vsel %vm4547, %v4540, %v4544
    %v4549 = vand.u32 2147483647, %v4524
    %vm4550 = vcmp.eq.f32.partialorder %v4549, 8.507059e+37
    %v4551 = vand.u32 %v4524, 2147483648
    %v4552 = vor.u32 1.1754944e-38, %v4551
    %v4553 = vsel %vm4550, %v4552, %v4548
    %v4554 = vmul.f32 1.0, %v4553
    %v4555 = vmul.f32 %v4499, %v4207
    %v4556 = vmul.f32 %v4514, %v4208
    %v4557 = vmul.f32 %v4461, %v4515
    %v4558 = vmul.f32 %v4476, %v4516
    %v4559 = vadd.f32 %v4555, %v4557
    %v4560 = vadd.f32 %v4556, %v4558
    %v4561 = vtanh.pop %v4559
    %v4562 = vtanh.pop %v4560
    %v4563 = vmul.f32 %v4539, %v4561
    %v4564 = vmul.f32 %v4554, %v4562
    %v4565 = vld [vmem:[#allocation2 + $0xc0] sm:$0xff]
    %v4566 = vld [vmem:[#allocation2 + $0xc8] sm:$0xff]
    %v4567 = vld [vmem:[#allocation2 + $0xd0] sm:$0xff]
    %v4568 = vld [vmem:[#allocation2 + $0xd8] sm:$0xff]
    %v4569 = vld [vmem:[#allocation2 + $0xe0] sm:$0xff]
    %v4570 = vld [vmem:[#allocation2 + $0xe8] sm:$0xff]
    %v4571 = vld [vmem:[#allocation2 + $0xf0] sm:$0xff]
    %v4572 = vld [vmem:[#allocation2 + $0xf8] sm:$0xff]
    %v4573 = vpack.c.bf16 %v4563, %v4563
    %v4574 = vpack.c.bf16 %v4564, %v4564
    %4575 = vmatpush.bf16.msra.mxu0 %v3319
    %4576 = vmatpush.bf16.msra.mxu0 %v3311
    %4577 = vmatpush.bf16.msra.mxu0 %v3303
    %4578 = vmatpush.bf16.msra.mxu0 %v3295
    %4579 = vmatpush.bf16.msra.mxu0 %v3287
    %4580 = vmatpush.bf16.msra.mxu0 %v3279
    %4581 = vmatpush.bf16.msra.mxu0 %v3271
    %4582 = vmatpush.bf16.msra.mxu0 %v3263
    %4583 = vmatmul.bf16.gmra.mxu0 %v4573
    %v4584 = vpop.f32.mrf.mxu0
    %v4585 = vadd.f32 0.0, %v4584
    %v4586 = vpop.f32.mrf.mxu0
    %4587 = vdwg.mxu0
    %4588 = vmatpush.bf16.msra.mxu0 %v3383
    %4589 = vmatpush.bf16.msra.mxu0 %v3375
    %4590 = vmatpush.bf16.msra.mxu0 %v3367
    %4591 = vmatpush.bf16.msra.mxu0 %v3359
    %4592 = vmatpush.bf16.msra.mxu0 %v3351
    %4593 = vmatpush.bf16.msra.mxu0 %v3343
    %4594 = vmatpush.bf16.msra.mxu0 %v3335
    %4595 = vmatpush.bf16.msra.mxu0 %v3327
    %4596 = vmatmul.bf16.gmra.mxu0 %v4574
    %v4597 = vpop.f32.mrf.mxu0
    %v4598 = vadd.f32 %v4585, %v4597
    %v4599 = vpop.f32.mrf.mxu0
    %4600 = vdwg.mxu0
    %4601 = vmatpush.bf16.msra.mxu0 %v3320
    %4602 = vmatpush.bf16.msra.mxu0 %v3312
    %4603 = vmatpush.bf16.msra.mxu0 %v3304
    %4604 = vmatpush.bf16.msra.mxu0 %v3296
    %4605 = vmatpush.bf16.msra.mxu0 %v3288
    %4606 = vmatpush.bf16.msra.mxu0 %v3280
    %4607 = vmatpush.bf16.msra.mxu0 %v3272
    %4608 = vmatpush.bf16.msra.mxu0 %v3264
    %4609 = vmatmul.bf16.gmra.mxu0 %v4573
    %v4610 = vpop.f32.mrf.mxu0
    %v4611 = vadd.f32 0.0, %v4610
    %v4612 = vpop.f32.mrf.mxu0
    %4613 = vdwg.mxu0
    %4614 = vmatpush.bf16.msra.mxu0 %v3384
    %4615 = vmatpush.bf16.msra.mxu0 %v3376
    %4616 = vmatpush.bf16.msra.mxu0 %v3368
    %4617 = vmatpush.bf16.msra.mxu0 %v3360
    %4618 = vmatpush.bf16.msra.mxu0 %v3352
    %4619 = vmatpush.bf16.msra.mxu0 %v3344
    %4620 = vmatpush.bf16.msra.mxu0 %v3336
    %4621 = vmatpush.bf16.msra.mxu0 %v3328
    %4622 = vmatmul.bf16.gmra.mxu0 %v4574
    %v4623 = vpop.f32.mrf.mxu0
    %v4624 = vadd.f32 %v4611, %v4623
    %v4625 = vpop.f32.mrf.mxu0
    %4626 = vdwg.mxu0
    %4627 = vmatpush.bf16.msra.mxu0 %v3321
    %4628 = vmatpush.bf16.msra.mxu0 %v3313
    %4629 = vmatpush.bf16.msra.mxu0 %v3305
    %4630 = vmatpush.bf16.msra.mxu0 %v3297
    %4631 = vmatpush.bf16.msra.mxu0 %v3289
    %4632 = vmatpush.bf16.msra.mxu0 %v3281
    %4633 = vmatpush.bf16.msra.mxu0 %v3273
    %4634 = vmatpush.bf16.msra.mxu0 %v3265
    %4635 = vmatmul.bf16.gmra.mxu0 %v4573
    %v4636 = vpop.f32.mrf.mxu0
    %v4637 = vadd.f32 0.0, %v4636
    %v4638 = vpop.f32.mrf.mxu0
    %4639 = vdwg.mxu0
    %4640 = vmatpush.bf16.msra.mxu0 %v3385
    %4641 = vmatpush.bf16.msra.mxu0 %v3377
    %4642 = vmatpush.bf16.msra.mxu0 %v3369
    %4643 = vmatpush.bf16.msra.mxu0 %v3361
    %4644 = vmatpush.bf16.msra.mxu0 %v3353
    %4645 = vmatpush.bf16.msra.mxu0 %v3345
    %4646 = vmatpush.bf16.msra.mxu0 %v3337
    %4647 = vmatpush.bf16.msra.mxu0 %v3329
    %4648 = vmatmul.bf16.gmra.mxu0 %v4574
    %v4649 = vpop.f32.mrf.mxu0
    %v4650 = vadd.f32 %v4637, %v4649
    %v4651 = vpop.f32.mrf.mxu0
    %4652 = vdwg.mxu0
    %4653 = vmatpush.bf16.msra.mxu0 %v3322
    %4654 = vmatpush.bf16.msra.mxu0 %v3314
    %4655 = vmatpush.bf16.msra.mxu0 %v3306
    %4656 = vmatpush.bf16.msra.mxu0 %v3298
    %4657 = vmatpush.bf16.msra.mxu0 %v3290
    %4658 = vmatpush.bf16.msra.mxu0 %v3282
    %4659 = vmatpush.bf16.msra.mxu0 %v3274
    %4660 = vmatpush.bf16.msra.mxu0 %v3266
    %4661 = vmatmul.bf16.gmra.mxu0 %v4573
    %v4662 = vpop.f32.mrf.mxu0
    %v4663 = vadd.f32 0.0, %v4662
    %v4664 = vpop.f32.mrf.mxu0
    %4665 = vdwg.mxu0
    %4666 = vmatpush.bf16.msra.mxu0 %v3386
    %4667 = vmatpush.bf16.msra.mxu0 %v3378
    %4668 = vmatpush.bf16.msra.mxu0 %v3370
    %4669 = vmatpush.bf16.msra.mxu0 %v3362
    %4670 = vmatpush.bf16.msra.mxu0 %v3354
    %4671 = vmatpush.bf16.msra.mxu0 %v3346
    %4672 = vmatpush.bf16.msra.mxu0 %v3338
    %4673 = vmatpush.bf16.msra.mxu0 %v3330
    %4674 = vmatmul.bf16.gmra.mxu0 %v4574
    %v4675 = vpop.f32.mrf.mxu0
    %v4676 = vadd.f32 %v4663, %v4675
    %v4677 = vpop.f32.mrf.mxu0
    %4678 = vdwg.mxu0
    %4679 = vmatpush.bf16.msra.mxu0 %v3323
    %4680 = vmatpush.bf16.msra.mxu0 %v3315
    %4681 = vmatpush.bf16.msra.mxu0 %v3307
    %4682 = vmatpush.bf16.msra.mxu0 %v3299
    %4683 = vmatpush.bf16.msra.mxu0 %v3291
    %4684 = vmatpush.bf16.msra.mxu0 %v3283
    %4685 = vmatpush.bf16.msra.mxu0 %v3275
    %4686 = vmatpush.bf16.msra.mxu0 %v3267
    %4687 = vmatmul.bf16.gmra.mxu0 %v4573
    %v4688 = vpop.f32.mrf.mxu0
    %v4689 = vadd.f32 0.0, %v4688
    %v4690 = vpop.f32.mrf.mxu0
    %4691 = vdwg.mxu0
    %4692 = vmatpush.bf16.msra.mxu0 %v3387
    %4693 = vmatpush.bf16.msra.mxu0 %v3379
    %4694 = vmatpush.bf16.msra.mxu0 %v3371
    %4695 = vmatpush.bf16.msra.mxu0 %v3363
    %4696 = vmatpush.bf16.msra.mxu0 %v3355
    %4697 = vmatpush.bf16.msra.mxu0 %v3347
    %4698 = vmatpush.bf16.msra.mxu0 %v3339
    %4699 = vmatpush.bf16.msra.mxu0 %v3331
    %4700 = vmatmul.bf16.gmra.mxu0 %v4574
    %v4701 = vpop.f32.mrf.mxu0
    %v4702 = vadd.f32 %v4689, %v4701
    %v4703 = vpop.f32.mrf.mxu0
    %4704 = vdwg.mxu0
    %4705 = vmatpush.bf16.msra.mxu0 %v3324
    %4706 = vmatpush.bf16.msra.mxu0 %v3316
    %4707 = vmatpush.bf16.msra.mxu0 %v3308
    %4708 = vmatpush.bf16.msra.mxu0 %v3300
    %4709 = vmatpush.bf16.msra.mxu0 %v3292
    %4710 = vmatpush.bf16.msra.mxu0 %v3284
    %4711 = vmatpush.bf16.msra.mxu0 %v3276
    %4712 = vmatpush.bf16.msra.mxu0 %v3268
    %4713 = vmatmul.bf16.gmra.mxu0 %v4573
    %v4714 = vpop.f32.mrf.mxu0
    %v4715 = vadd.f32 0.0, %v4714
    %v4716 = vpop.f32.mrf.mxu0
    %4717 = vdwg.mxu0
    %4718 = vmatpush.bf16.msra.mxu0 %v3388
    %4719 = vmatpush.bf16.msra.mxu0 %v3380
    %4720 = vmatpush.bf16.msra.mxu0 %v3372
    %4721 = vmatpush.bf16.msra.mxu0 %v3364
    %4722 = vmatpush.bf16.msra.mxu0 %v3356
    %4723 = vmatpush.bf16.msra.mxu0 %v3348
    %4724 = vmatpush.bf16.msra.mxu0 %v3340
    %4725 = vmatpush.bf16.msra.mxu0 %v3332
    %4726 = vmatmul.bf16.gmra.mxu0 %v4574
    %v4727 = vpop.f32.mrf.mxu0
    %v4728 = vadd.f32 %v4715, %v4727
    %v4729 = vpop.f32.mrf.mxu0
    %4730 = vdwg.mxu0
    %4731 = vmatpush.bf16.msra.mxu0 %v3325
    %4732 = vmatpush.bf16.msra.mxu0 %v3317
    %4733 = vmatpush.bf16.msra.mxu0 %v3309
    %4734 = vmatpush.bf16.msra.mxu0 %v3301
    %4735 = vmatpush.bf16.msra.mxu0 %v3293
    %4736 = vmatpush.bf16.msra.mxu0 %v3285
    %4737 = vmatpush.bf16.msra.mxu0 %v3277
    %4738 = vmatpush.bf16.msra.mxu0 %v3269
    %4739 = vmatmul.bf16.gmra.mxu0 %v4573
    %v4740 = vpop.f32.mrf.mxu0
    %v4741 = vadd.f32 0.0, %v4740
    %v4742 = vpop.f32.mrf.mxu0
    %4743 = vdwg.mxu0
    %4744 = vmatpush.bf16.msra.mxu0 %v3389
    %4745 = vmatpush.bf16.msra.mxu0 %v3381
    %4746 = vmatpush.bf16.msra.mxu0 %v3373
    %4747 = vmatpush.bf16.msra.mxu0 %v3365
    %4748 = vmatpush.bf16.msra.mxu0 %v3357
    %4749 = vmatpush.bf16.msra.mxu0 %v3349
    %4750 = vmatpush.bf16.msra.mxu0 %v3341
    %4751 = vmatpush.bf16.msra.mxu0 %v3333
    %4752 = vmatmul.bf16.gmra.mxu0 %v4574
    %v4753 = vpop.f32.mrf.mxu0
    %v4754 = vadd.f32 %v4741, %v4753
    %v4755 = vpop.f32.mrf.mxu0
    %4756 = vdwg.mxu0
    %4757 = vmatpush.bf16.msra.mxu0 %v3326
    %4758 = vmatpush.bf16.msra.mxu0 %v3318
    %4759 = vmatpush.bf16.msra.mxu0 %v3310
    %4760 = vmatpush.bf16.msra.mxu0 %v3302
    %4761 = vmatpush.bf16.msra.mxu0 %v3294
    %4762 = vmatpush.bf16.msra.mxu0 %v3286
    %4763 = vmatpush.bf16.msra.mxu0 %v3278
    %4764 = vmatpush.bf16.msra.mxu0 %v3270
    %4765 = vmatmul.bf16.gmra.mxu0 %v4573
    %v4766 = vpop.f32.mrf.mxu0
    %v4767 = vadd.f32 0.0, %v4766
    %v4768 = vpop.f32.mrf.mxu0
    %4769 = vdwg.mxu0
    %4770 = vmatpush.bf16.msra.mxu0 %v3390
    %4771 = vmatpush.bf16.msra.mxu0 %v3382
    %4772 = vmatpush.bf16.msra.mxu0 %v3374
    %4773 = vmatpush.bf16.msra.mxu0 %v3366
    %4774 = vmatpush.bf16.msra.mxu0 %v3358
    %4775 = vmatpush.bf16.msra.mxu0 %v3350
    %4776 = vmatpush.bf16.msra.mxu0 %v3342
    %4777 = vmatpush.bf16.msra.mxu0 %v3334
    %4778 = vmatmul.bf16.gmra.mxu0 %v4574
    %v4779 = vpop.f32.mrf.mxu0
    %v4780 = vadd.f32 %v4767, %v4779
    %v4781 = vpop.f32.mrf.mxu0
    %4782 = vdwg.mxu0
    %v4783 = vadd.f32 %v4565, %v4598
    %v4784 = vadd.f32 %v4566, %v4624
    %v4785 = vadd.f32 %v4567, %v4650
    %v4786 = vadd.f32 %v4568, %v4676
    %v4787 = vadd.f32 %v4569, %v4702
    %v4788 = vadd.f32 %v4570, %v4728
    %v4789 = vadd.f32 %v4571, %v4754
    %v4790 = vadd.f32 %v4572, %v4780
    %v4791 = vxor.u32 %v4783, 2147483648
    %v4792 = vxor.u32 %v4784, 2147483648
    %v4793 = vmul.f32 %v4791, 1.442695
    %v4794 = vpow.pop %v4793
    %v4795 = vmul.f32 %v4792, 1.442695
    %v4796 = vpow.pop %v4795
    %v4797 = vadd.f32 %v4794, 1.0
    %v4798 = vadd.f32 %v4796, 1.0
    %v4799 = vrcp.pop %v4797
    %v4800 = vmul.f32 %v4797, %v4799
    %v4801 = vsub.f32 1.0, %v4800
    %v4802 = vmul.f32 %v4799, %v4801
    %v4803 = vadd.f32 %v4799, %v4802
    %vm4804 = vweird.f32 %v4797
    %vm4805 = vweird.f32 %v4799
    %vm4806 = vmor %vm4804, %vm4805
    %v4807 = vsel %vm4806, %v4799, %v4803
    %v4808 = vand.u32 2147483647, %v4797
    %vm4809 = vcmp.eq.f32.partialorder %v4808, 8.507059e+37
    %v4810 = vand.u32 %v4797, 2147483648
    %v4811 = vor.u32 1.1754944e-38, %v4810
    %v4812 = vsel %vm4809, %v4811, %v4807
    %v4813 = vmul.f32 1.0, %v4812
    %v4814 = vrcp.pop %v4798
    %v4815 = vmul.f32 %v4798, %v4814
    %v4816 = vsub.f32 1.0, %v4815
    %v4817 = vmul.f32 %v4814, %v4816
    %v4818 = vadd.f32 %v4814, %v4817
    %vm4819 = vweird.f32 %v4798
    %vm4820 = vweird.f32 %v4814
    %vm4821 = vmor %vm4819, %vm4820
    %v4822 = vsel %vm4821, %v4814, %v4818
    %v4823 = vand.u32 2147483647, %v4798
    %vm4824 = vcmp.eq.f32.partialorder %v4823, 8.507059e+37
    %v4825 = vand.u32 %v4798, 2147483648
    %v4826 = vor.u32 1.1754944e-38, %v4825
    %v4827 = vsel %vm4824, %v4826, %v4822
    %v4828 = vmul.f32 1.0, %v4827
    %v4829 = vxor.u32 %v4785, 2147483648
    %v4830 = vxor.u32 %v4786, 2147483648
    %v4831 = vmul.f32 %v4829, 1.442695
    %v4832 = vpow.pop %v4831
    %v4833 = vmul.f32 %v4830, 1.442695
    %v4834 = vpow.pop %v4833
    %v4835 = vadd.f32 %v4832, 1.0
    %v4836 = vadd.f32 %v4834, 1.0
    %v4837 = vrcp.pop %v4835
    %v4838 = vmul.f32 %v4835, %v4837
    %v4839 = vsub.f32 1.0, %v4838
    %v4840 = vmul.f32 %v4837, %v4839
    %v4841 = vadd.f32 %v4837, %v4840
    %vm4842 = vweird.f32 %v4835
    %vm4843 = vweird.f32 %v4837
    %vm4844 = vmor %vm4842, %vm4843
    %v4845 = vsel %vm4844, %v4837, %v4841
    %v4846 = vand.u32 2147483647, %v4835
    %vm4847 = vcmp.eq.f32.partialorder %v4846, 8.507059e+37
    %v4848 = vand.u32 %v4835, 2147483648
    %v4849 = vor.u32 1.1754944e-38, %v4848
    %v4850 = vsel %vm4847, %v4849, %v4845
    %v4851 = vmul.f32 1.0, %v4850
    %v4852 = vrcp.pop %v4836
    %v4853 = vmul.f32 %v4836, %v4852
    %v4854 = vsub.f32 1.0, %v4853
    %v4855 = vmul.f32 %v4852, %v4854
    %v4856 = vadd.f32 %v4852, %v4855
    %vm4857 = vweird.f32 %v4836
    %vm4858 = vweird.f32 %v4852
    %vm4859 = vmor %vm4857, %vm4858
    %v4860 = vsel %vm4859, %v4852, %v4856
    %v4861 = vand.u32 2147483647, %v4836
    %vm4862 = vcmp.eq.f32.partialorder %v4861, 8.507059e+37
    %v4863 = vand.u32 %v4836, 2147483648
    %v4864 = vor.u32 1.1754944e-38, %v4863
    %v4865 = vsel %vm4862, %v4864, %v4860
    %v4866 = vmul.f32 1.0, %v4865
    %v4867 = vtanh.pop %v4787
    %v4868 = vtanh.pop %v4788
    %v4869 = vxor.u32 %v4789, 2147483648
    %v4870 = vxor.u32 %v4790, 2147483648
    %v4871 = vmul.f32 %v4869, 1.442695
    %v4872 = vpow.pop %v4871
    %v4873 = vmul.f32 %v4870, 1.442695
    %v4874 = vpow.pop %v4873
    %v4875 = vadd.f32 %v4872, 1.0
    %v4876 = vadd.f32 %v4874, 1.0
    %v4877 = vrcp.pop %v4875
    %v4878 = vmul.f32 %v4875, %v4877
    %v4879 = vsub.f32 1.0, %v4878
    %v4880 = vmul.f32 %v4877, %v4879
    %v4881 = vadd.f32 %v4877, %v4880
    %vm4882 = vweird.f32 %v4875
    %vm4883 = vweird.f32 %v4877
    %vm4884 = vmor %vm4882, %vm4883
    %v4885 = vsel %vm4884, %v4877, %v4881
    %v4886 = vand.u32 2147483647, %v4875
    %vm4887 = vcmp.eq.f32.partialorder %v4886, 8.507059e+37
    %v4888 = vand.u32 %v4875, 2147483648
    %v4889 = vor.u32 1.1754944e-38, %v4888
    %v4890 = vsel %vm4887, %v4889, %v4885
    %v4891 = vmul.f32 1.0, %v4890
    %v4892 = vrcp.pop %v4876
    %v4893 = vmul.f32 %v4876, %v4892
    %v4894 = vsub.f32 1.0, %v4893
    %v4895 = vmul.f32 %v4892, %v4894
    %v4896 = vadd.f32 %v4892, %v4895
    %vm4897 = vweird.f32 %v4876
    %vm4898 = vweird.f32 %v4892
    %vm4899 = vmor %vm4897, %vm4898
    %v4900 = vsel %vm4899, %v4892, %v4896
    %v4901 = vand.u32 2147483647, %v4876
    %vm4902 = vcmp.eq.f32.partialorder %v4901, 8.507059e+37
    %v4903 = vand.u32 %v4876, 2147483648
    %v4904 = vor.u32 1.1754944e-38, %v4903
    %v4905 = vsel %vm4902, %v4904, %v4900
    %v4906 = vmul.f32 1.0, %v4905
    %v4907 = vmul.f32 %v4851, %v4559
    %v4908 = vmul.f32 %v4866, %v4560
    %v4909 = vmul.f32 %v4813, %v4867
    %v4910 = vmul.f32 %v4828, %v4868
    %v4911 = vadd.f32 %v4907, %v4909
    %v4912 = vadd.f32 %v4908, %v4910
    %v4913 = vtanh.pop %v4911
    %v4914 = vtanh.pop %v4912
    %v4915 = vmul.f32 %v4891, %v4913
    %v4916 = vmul.f32 %v4906, %v4914
    %v4917 = vld [vmem:[#allocation2 + $0x100] sm:$0xff]
    %v4918 = vld [vmem:[#allocation2 + $0x108] sm:$0xff]
    %v4919 = vld [vmem:[#allocation2 + $0x110] sm:$0xff]
    %v4920 = vld [vmem:[#allocation2 + $0x118] sm:$0xff]
    %v4921 = vld [vmem:[#allocation2 + $0x120] sm:$0xff]
    %v4922 = vld [vmem:[#allocation2 + $0x128] sm:$0xff]
    %v4923 = vld [vmem:[#allocation2 + $0x130] sm:$0xff]
    %v4924 = vld [vmem:[#allocation2 + $0x138] sm:$0xff]
    %v4925 = vpack.c.bf16 %v4915, %v4915
    %v4926 = vpack.c.bf16 %v4916, %v4916
    %4927 = vmatpush.bf16.msra.mxu0 %v3319
    %4928 = vmatpush.bf16.msra.mxu0 %v3311
    %4929 = vmatpush.bf16.msra.mxu0 %v3303
    %4930 = vmatpush.bf16.msra.mxu0 %v3295
    %4931 = vmatpush.bf16.msra.mxu0 %v3287
    %4932 = vmatpush.bf16.msra.mxu0 %v3279
    %4933 = vmatpush.bf16.msra.mxu0 %v3271
    %4934 = vmatpush.bf16.msra.mxu0 %v3263
    %4935 = vmatmul.bf16.gmra.mxu0 %v4925
    %v4936 = vpop.f32.mrf.mxu0
    %v4937 = vadd.f32 0.0, %v4936
    %v4938 = vpop.f32.mrf.mxu0
    %4939 = vdwg.mxu0
    %4940 = vmatpush.bf16.msra.mxu0 %v3383
    %4941 = vmatpush.bf16.msra.mxu0 %v3375
    %4942 = vmatpush.bf16.msra.mxu0 %v3367
    %4943 = vmatpush.bf16.msra.mxu0 %v3359
    %4944 = vmatpush.bf16.msra.mxu0 %v3351
    %4945 = vmatpush.bf16.msra.mxu0 %v3343
    %4946 = vmatpush.bf16.msra.mxu0 %v3335
    %4947 = vmatpush.bf16.msra.mxu0 %v3327
    %4948 = vmatmul.bf16.gmra.mxu0 %v4926
    %v4949 = vpop.f32.mrf.mxu0
    %v4950 = vadd.f32 %v4937, %v4949
    %v4951 = vpop.f32.mrf.mxu0
    %4952 = vdwg.mxu0
    %4953 = vmatpush.bf16.msra.mxu0 %v3320
    %4954 = vmatpush.bf16.msra.mxu0 %v3312
    %4955 = vmatpush.bf16.msra.mxu0 %v3304
    %4956 = vmatpush.bf16.msra.mxu0 %v3296
    %4957 = vmatpush.bf16.msra.mxu0 %v3288
    %4958 = vmatpush.bf16.msra.mxu0 %v3280
    %4959 = vmatpush.bf16.msra.mxu0 %v3272
    %4960 = vmatpush.bf16.msra.mxu0 %v3264
    %4961 = vmatmul.bf16.gmra.mxu0 %v4925
    %v4962 = vpop.f32.mrf.mxu0
    %v4963 = vadd.f32 0.0, %v4962
    %v4964 = vpop.f32.mrf.mxu0
    %4965 = vdwg.mxu0
    %4966 = vmatpush.bf16.msra.mxu0 %v3384
    %4967 = vmatpush.bf16.msra.mxu0 %v3376
    %4968 = vmatpush.bf16.msra.mxu0 %v3368
    %4969 = vmatpush.bf16.msra.mxu0 %v3360
    %4970 = vmatpush.bf16.msra.mxu0 %v3352
    %4971 = vmatpush.bf16.msra.mxu0 %v3344
    %4972 = vmatpush.bf16.msra.mxu0 %v3336
    %4973 = vmatpush.bf16.msra.mxu0 %v3328
    %4974 = vmatmul.bf16.gmra.mxu0 %v4926
    %v4975 = vpop.f32.mrf.mxu0
    %v4976 = vadd.f32 %v4963, %v4975
    %v4977 = vpop.f32.mrf.mxu0
    %4978 = vdwg.mxu0
    %4979 = vmatpush.bf16.msra.mxu0 %v3321
    %4980 = vmatpush.bf16.msra.mxu0 %v3313
    %4981 = vmatpush.bf16.msra.mxu0 %v3305
    %4982 = vmatpush.bf16.msra.mxu0 %v3297
    %4983 = vmatpush.bf16.msra.mxu0 %v3289
    %4984 = vmatpush.bf16.msra.mxu0 %v3281
    %4985 = vmatpush.bf16.msra.mxu0 %v3273
    %4986 = vmatpush.bf16.msra.mxu0 %v3265
    %4987 = vmatmul.bf16.gmra.mxu0 %v4925
    %v4988 = vpop.f32.mrf.mxu0
    %v4989 = vadd.f32 0.0, %v4988
    %v4990 = vpop.f32.mrf.mxu0
    %4991 = vdwg.mxu0
    %4992 = vmatpush.bf16.msra.mxu0 %v3385
    %4993 = vmatpush.bf16.msra.mxu0 %v3377
    %4994 = vmatpush.bf16.msra.mxu0 %v3369
    %4995 = vmatpush.bf16.msra.mxu0 %v3361
    %4996 = vmatpush.bf16.msra.mxu0 %v3353
    %4997 = vmatpush.bf16.msra.mxu0 %v3345
    %4998 = vmatpush.bf16.msra.mxu0 %v3337
    %4999 = vmatpush.bf16.msra.mxu0 %v3329
    %5000 = vmatmul.bf16.gmra.mxu0 %v4926
    %v5001 = vpop.f32.mrf.mxu0
    %v5002 = vadd.f32 %v4989, %v5001
    %v5003 = vpop.f32.mrf.mxu0
    %5004 = vdwg.mxu0
    %5005 = vmatpush.bf16.msra.mxu0 %v3322
    %5006 = vmatpush.bf16.msra.mxu0 %v3314
    %5007 = vmatpush.bf16.msra.mxu0 %v3306
    %5008 = vmatpush.bf16.msra.mxu0 %v3298
    %5009 = vmatpush.bf16.msra.mxu0 %v3290
    %5010 = vmatpush.bf16.msra.mxu0 %v3282
    %5011 = vmatpush.bf16.msra.mxu0 %v3274
    %5012 = vmatpush.bf16.msra.mxu0 %v3266
    %5013 = vmatmul.bf16.gmra.mxu0 %v4925
    %v5014 = vpop.f32.mrf.mxu0
    %v5015 = vadd.f32 0.0, %v5014
    %v5016 = vpop.f32.mrf.mxu0
    %5017 = vdwg.mxu0
    %5018 = vmatpush.bf16.msra.mxu0 %v3386
    %5019 = vmatpush.bf16.msra.mxu0 %v3378
    %5020 = vmatpush.bf16.msra.mxu0 %v3370
    %5021 = vmatpush.bf16.msra.mxu0 %v3362
    %5022 = vmatpush.bf16.msra.mxu0 %v3354
    %5023 = vmatpush.bf16.msra.mxu0 %v3346
    %5024 = vmatpush.bf16.msra.mxu0 %v3338
    %5025 = vmatpush.bf16.msra.mxu0 %v3330
    %5026 = vmatmul.bf16.gmra.mxu0 %v4926
    %v5027 = vpop.f32.mrf.mxu0
    %v5028 = vadd.f32 %v5015, %v5027
    %v5029 = vpop.f32.mrf.mxu0
    %5030 = vdwg.mxu0
    %5031 = vmatpush.bf16.msra.mxu0 %v3323
    %5032 = vmatpush.bf16.msra.mxu0 %v3315
    %5033 = vmatpush.bf16.msra.mxu0 %v3307
    %5034 = vmatpush.bf16.msra.mxu0 %v3299
    %5035 = vmatpush.bf16.msra.mxu0 %v3291
    %5036 = vmatpush.bf16.msra.mxu0 %v3283
    %5037 = vmatpush.bf16.msra.mxu0 %v3275
    %5038 = vmatpush.bf16.msra.mxu0 %v3267
    %5039 = vmatmul.bf16.gmra.mxu0 %v4925
    %v5040 = vpop.f32.mrf.mxu0
    %v5041 = vadd.f32 0.0, %v5040
    %v5042 = vpop.f32.mrf.mxu0
    %5043 = vdwg.mxu0
    %5044 = vmatpush.bf16.msra.mxu0 %v3387
    %5045 = vmatpush.bf16.msra.mxu0 %v3379
    %5046 = vmatpush.bf16.msra.mxu0 %v3371
    %5047 = vmatpush.bf16.msra.mxu0 %v3363
    %5048 = vmatpush.bf16.msra.mxu0 %v3355
    %5049 = vmatpush.bf16.msra.mxu0 %v3347
    %5050 = vmatpush.bf16.msra.mxu0 %v3339
    %5051 = vmatpush.bf16.msra.mxu0 %v3331
    %5052 = vmatmul.bf16.gmra.mxu0 %v4926
    %v5053 = vpop.f32.mrf.mxu0
    %v5054 = vadd.f32 %v5041, %v5053
    %v5055 = vpop.f32.mrf.mxu0
    %5056 = vdwg.mxu0
    %5057 = vmatpush.bf16.msra.mxu0 %v3324
    %5058 = vmatpush.bf16.msra.mxu0 %v3316
    %5059 = vmatpush.bf16.msra.mxu0 %v3308
    %5060 = vmatpush.bf16.msra.mxu0 %v3300
    %5061 = vmatpush.bf16.msra.mxu0 %v3292
    %5062 = vmatpush.bf16.msra.mxu0 %v3284
    %5063 = vmatpush.bf16.msra.mxu0 %v3276
    %5064 = vmatpush.bf16.msra.mxu0 %v3268
    %5065 = vmatmul.bf16.gmra.mxu0 %v4925
    %v5066 = vpop.f32.mrf.mxu0
    %v5067 = vadd.f32 0.0, %v5066
    %v5068 = vpop.f32.mrf.mxu0
    %5069 = vdwg.mxu0
    %5070 = vmatpush.bf16.msra.mxu0 %v3388
    %5071 = vmatpush.bf16.msra.mxu0 %v3380
    %5072 = vmatpush.bf16.msra.mxu0 %v3372
    %5073 = vmatpush.bf16.msra.mxu0 %v3364
    %5074 = vmatpush.bf16.msra.mxu0 %v3356
    %5075 = vmatpush.bf16.msra.mxu0 %v3348
    %5076 = vmatpush.bf16.msra.mxu0 %v3340
    %5077 = vmatpush.bf16.msra.mxu0 %v3332
    %5078 = vmatmul.bf16.gmra.mxu0 %v4926
    %v5079 = vpop.f32.mrf.mxu0
    %v5080 = vadd.f32 %v5067, %v5079
    %v5081 = vpop.f32.mrf.mxu0
    %5082 = vdwg.mxu0
    %5083 = vmatpush.bf16.msra.mxu0 %v3325
    %5084 = vmatpush.bf16.msra.mxu0 %v3317
    %5085 = vmatpush.bf16.msra.mxu0 %v3309
    %5086 = vmatpush.bf16.msra.mxu0 %v3301
    %5087 = vmatpush.bf16.msra.mxu0 %v3293
    %5088 = vmatpush.bf16.msra.mxu0 %v3285
    %5089 = vmatpush.bf16.msra.mxu0 %v3277
    %5090 = vmatpush.bf16.msra.mxu0 %v3269
    %5091 = vmatmul.bf16.gmra.mxu0 %v4925
    %v5092 = vpop.f32.mrf.mxu0
    %v5093 = vadd.f32 0.0, %v5092
    %v5094 = vpop.f32.mrf.mxu0
    %5095 = vdwg.mxu0
    %5096 = vmatpush.bf16.msra.mxu0 %v3389
    %5097 = vmatpush.bf16.msra.mxu0 %v3381
    %5098 = vmatpush.bf16.msra.mxu0 %v3373
    %5099 = vmatpush.bf16.msra.mxu0 %v3365
    %5100 = vmatpush.bf16.msra.mxu0 %v3357
    %5101 = vmatpush.bf16.msra.mxu0 %v3349
    %5102 = vmatpush.bf16.msra.mxu0 %v3341
    %5103 = vmatpush.bf16.msra.mxu0 %v3333
    %5104 = vmatmul.bf16.gmra.mxu0 %v4926
    %v5105 = vpop.f32.mrf.mxu0
    %v5106 = vadd.f32 %v5093, %v5105
    %v5107 = vpop.f32.mrf.mxu0
    %5108 = vdwg.mxu0
    %5109 = vmatpush.bf16.msra.mxu0 %v3326
    %5110 = vmatpush.bf16.msra.mxu0 %v3318
    %5111 = vmatpush.bf16.msra.mxu0 %v3310
    %5112 = vmatpush.bf16.msra.mxu0 %v3302
    %5113 = vmatpush.bf16.msra.mxu0 %v3294
    %5114 = vmatpush.bf16.msra.mxu0 %v3286
    %5115 = vmatpush.bf16.msra.mxu0 %v3278
    %5116 = vmatpush.bf16.msra.mxu0 %v3270
    %5117 = vmatmul.bf16.gmra.mxu0 %v4925
    %v5118 = vpop.f32.mrf.mxu0
    %v5119 = vadd.f32 0.0, %v5118
    %v5120 = vpop.f32.mrf.mxu0
    %5121 = vdwg.mxu0
    %5122 = vmatpush.bf16.msra.mxu0 %v3390
    %5123 = vmatpush.bf16.msra.mxu0 %v3382
    %5124 = vmatpush.bf16.msra.mxu0 %v3374
    %5125 = vmatpush.bf16.msra.mxu0 %v3366
    %5126 = vmatpush.bf16.msra.mxu0 %v3358
    %5127 = vmatpush.bf16.msra.mxu0 %v3350
    %5128 = vmatpush.bf16.msra.mxu0 %v3342
    %5129 = vmatpush.bf16.msra.mxu0 %v3334
    %5130 = vmatmul.bf16.gmra.mxu0 %v4926
    %v5131 = vpop.f32.mrf.mxu0
    %v5132 = vadd.f32 %v5119, %v5131
    %v5133 = vpop.f32.mrf.mxu0
    %5134 = vdwg.mxu0
    %v5135 = vadd.f32 %v4917, %v4950
    %v5136 = vadd.f32 %v4918, %v4976
    %v5137 = vadd.f32 %v4919, %v5002
    %v5138 = vadd.f32 %v4920, %v5028
    %v5139 = vadd.f32 %v4921, %v5054
    %v5140 = vadd.f32 %v4922, %v5080
    %v5141 = vadd.f32 %v4923, %v5106
    %v5142 = vadd.f32 %v4924, %v5132
    %v5143 = vxor.u32 %v5135, 2147483648
    %v5144 = vxor.u32 %v5136, 2147483648
    %v5145 = vmul.f32 %v5143, 1.442695
    %v5146 = vpow.pop %v5145
    %v5147 = vmul.f32 %v5144, 1.442695
    %v5148 = vpow.pop %v5147
    %v5149 = vadd.f32 %v5146, 1.0
    %v5150 = vadd.f32 %v5148, 1.0
    %v5151 = vrcp.pop %v5149
    %v5152 = vmul.f32 %v5149, %v5151
    %v5153 = vsub.f32 1.0, %v5152
    %v5154 = vmul.f32 %v5151, %v5153
    %v5155 = vadd.f32 %v5151, %v5154
    %vm5156 = vweird.f32 %v5149
    %vm5157 = vweird.f32 %v5151
    %vm5158 = vmor %vm5156, %vm5157
    %v5159 = vsel %vm5158, %v5151, %v5155
    %v5160 = vand.u32 2147483647, %v5149
    %vm5161 = vcmp.eq.f32.partialorder %v5160, 8.507059e+37
    %v5162 = vand.u32 %v5149, 2147483648
    %v5163 = vor.u32 1.1754944e-38, %v5162
    %v5164 = vsel %vm5161, %v5163, %v5159
    %v5165 = vmul.f32 1.0, %v5164
    %v5166 = vrcp.pop %v5150
    %v5167 = vmul.f32 %v5150, %v5166
    %v5168 = vsub.f32 1.0, %v5167
    %v5169 = vmul.f32 %v5166, %v5168
    %v5170 = vadd.f32 %v5166, %v5169
    %vm5171 = vweird.f32 %v5150
    %vm5172 = vweird.f32 %v5166
    %vm5173 = vmor %vm5171, %vm5172
    %v5174 = vsel %vm5173, %v5166, %v5170
    %v5175 = vand.u32 2147483647, %v5150
    %vm5176 = vcmp.eq.f32.partialorder %v5175, 8.507059e+37
    %v5177 = vand.u32 %v5150, 2147483648
    %v5178 = vor.u32 1.1754944e-38, %v5177
    %v5179 = vsel %vm5176, %v5178, %v5174
    %v5180 = vmul.f32 1.0, %v5179
    %v5181 = vxor.u32 %v5137, 2147483648
    %v5182 = vxor.u32 %v5138, 2147483648
    %v5183 = vmul.f32 %v5181, 1.442695
    %v5184 = vpow.pop %v5183
    %v5185 = vmul.f32 %v5182, 1.442695
    %v5186 = vpow.pop %v5185
    %v5187 = vadd.f32 %v5184, 1.0
    %v5188 = vadd.f32 %v5186, 1.0
    %v5189 = vrcp.pop %v5187
    %v5190 = vmul.f32 %v5187, %v5189
    %v5191 = vsub.f32 1.0, %v5190
    %v5192 = vmul.f32 %v5189, %v5191
    %v5193 = vadd.f32 %v5189, %v5192
    %vm5194 = vweird.f32 %v5187
    %vm5195 = vweird.f32 %v5189
    %vm5196 = vmor %vm5194, %vm5195
    %v5197 = vsel %vm5196, %v5189, %v5193
    %v5198 = vand.u32 2147483647, %v5187
    %vm5199 = vcmp.eq.f32.partialorder %v5198, 8.507059e+37
    %v5200 = vand.u32 %v5187, 2147483648
    %v5201 = vor.u32 1.1754944e-38, %v5200
    %v5202 = vsel %vm5199, %v5201, %v5197
    %v5203 = vmul.f32 1.0, %v5202
    %v5204 = vrcp.pop %v5188
    %v5205 = vmul.f32 %v5188, %v5204
    %v5206 = vsub.f32 1.0, %v5205
    %v5207 = vmul.f32 %v5204, %v5206
    %v5208 = vadd.f32 %v5204, %v5207
    %vm5209 = vweird.f32 %v5188
    %vm5210 = vweird.f32 %v5204
    %vm5211 = vmor %vm5209, %vm5210
    %v5212 = vsel %vm5211, %v5204, %v5208
    %v5213 = vand.u32 2147483647, %v5188
    %vm5214 = vcmp.eq.f32.partialorder %v5213, 8.507059e+37
    %v5215 = vand.u32 %v5188, 2147483648
    %v5216 = vor.u32 1.1754944e-38, %v5215
    %v5217 = vsel %vm5214, %v5216, %v5212
    %v5218 = vmul.f32 1.0, %v5217
    %v5219 = vtanh.pop %v5139
    %v5220 = vtanh.pop %v5140
    %v5221 = vxor.u32 %v5141, 2147483648
    %v5222 = vxor.u32 %v5142, 2147483648
    %v5223 = vmul.f32 %v5221, 1.442695
    %v5224 = vpow.pop %v5223
    %v5225 = vmul.f32 %v5222, 1.442695
    %v5226 = vpow.pop %v5225
    %v5227 = vadd.f32 %v5224, 1.0
    %v5228 = vadd.f32 %v5226, 1.0
    %v5229 = vrcp.pop %v5227
    %v5230 = vmul.f32 %v5227, %v5229
    %v5231 = vsub.f32 1.0, %v5230
    %v5232 = vmul.f32 %v5229, %v5231
    %v5233 = vadd.f32 %v5229, %v5232
    %vm5234 = vweird.f32 %v5227
    %vm5235 = vweird.f32 %v5229
    %vm5236 = vmor %vm5234, %vm5235
    %v5237 = vsel %vm5236, %v5229, %v5233
    %v5238 = vand.u32 2147483647, %v5227
    %vm5239 = vcmp.eq.f32.partialorder %v5238, 8.507059e+37
    %v5240 = vand.u32 %v5227, 2147483648
    %v5241 = vor.u32 1.1754944e-38, %v5240
    %v5242 = vsel %vm5239, %v5241, %v5237
    %v5243 = vmul.f32 1.0, %v5242
    %v5244 = vrcp.pop %v5228
    %v5245 = vmul.f32 %v5228, %v5244
    %v5246 = vsub.f32 1.0, %v5245
    %v5247 = vmul.f32 %v5244, %v5246
    %v5248 = vadd.f32 %v5244, %v5247
    %vm5249 = vweird.f32 %v5228
    %vm5250 = vweird.f32 %v5244
    %vm5251 = vmor %vm5249, %vm5250
    %v5252 = vsel %vm5251, %v5244, %v5248
    %v5253 = vand.u32 2147483647, %v5228
    %vm5254 = vcmp.eq.f32.partialorder %v5253, 8.507059e+37
    %v5255 = vand.u32 %v5228, 2147483648
    %v5256 = vor.u32 1.1754944e-38, %v5255
    %v5257 = vsel %vm5254, %v5256, %v5252
    %v5258 = vmul.f32 1.0, %v5257
    %v5259 = vmul.f32 %v5203, %v4911
    %v5260 = vmul.f32 %v5218, %v4912
    %v5261 = vmul.f32 %v5165, %v5219
    %v5262 = vmul.f32 %v5180, %v5220
    %v5263 = vadd.f32 %v5259, %v5261
    %v5264 = vadd.f32 %v5260, %v5262
    %v5265 = vtanh.pop %v5263
    %v5266 = vtanh.pop %v5264
    %v5267 = vmul.f32 %v5243, %v5265
    %v5268 = vmul.f32 %v5258, %v5266
    %v5269 = vld [vmem:[#allocation2 + $0x140] sm:$0xff]
    %v5270 = vld [vmem:[#allocation2 + $0x148] sm:$0xff]
    %v5271 = vld [vmem:[#allocation2 + $0x150] sm:$0xff]
    %v5272 = vld [vmem:[#allocation2 + $0x158] sm:$0xff]
    %v5273 = vld [vmem:[#allocation2 + $0x160] sm:$0xff]
    %v5274 = vld [vmem:[#allocation2 + $0x168] sm:$0xff]
    %v5275 = vld [vmem:[#allocation2 + $0x170] sm:$0xff]
    %v5276 = vld [vmem:[#allocation2 + $0x178] sm:$0xff]
    %v5277 = vpack.c.bf16 %v5267, %v5267
    %v5278 = vpack.c.bf16 %v5268, %v5268
    %5279 = vmatpush.bf16.msra.mxu0 %v3319
    %5280 = vmatpush.bf16.msra.mxu0 %v3311
    %5281 = vmatpush.bf16.msra.mxu0 %v3303
    %5282 = vmatpush.bf16.msra.mxu0 %v3295
    %5283 = vmatpush.bf16.msra.mxu0 %v3287
    %5284 = vmatpush.bf16.msra.mxu0 %v3279
    %5285 = vmatpush.bf16.msra.mxu0 %v3271
    %5286 = vmatpush.bf16.msra.mxu0 %v3263
    %5287 = vmatmul.bf16.gmra.mxu0 %v5277
    %v5288 = vpop.f32.mrf.mxu0
    %v5289 = vadd.f32 0.0, %v5288
    %v5290 = vpop.f32.mrf.mxu0
    %5291 = vdwg.mxu0
    %5292 = vmatpush.bf16.msra.mxu0 %v3383
    %5293 = vmatpush.bf16.msra.mxu0 %v3375
    %5294 = vmatpush.bf16.msra.mxu0 %v3367
    %5295 = vmatpush.bf16.msra.mxu0 %v3359
    %5296 = vmatpush.bf16.msra.mxu0 %v3351
    %5297 = vmatpush.bf16.msra.mxu0 %v3343
    %5298 = vmatpush.bf16.msra.mxu0 %v3335
    %5299 = vmatpush.bf16.msra.mxu0 %v3327
    %5300 = vmatmul.bf16.gmra.mxu0 %v5278
    %v5301 = vpop.f32.mrf.mxu0
    %v5302 = vadd.f32 %v5289, %v5301
    %v5303 = vpop.f32.mrf.mxu0
    %5304 = vdwg.mxu0
    %5305 = vmatpush.bf16.msra.mxu0 %v3320
    %5306 = vmatpush.bf16.msra.mxu0 %v3312
    %5307 = vmatpush.bf16.msra.mxu0 %v3304
    %5308 = vmatpush.bf16.msra.mxu0 %v3296
    %5309 = vmatpush.bf16.msra.mxu0 %v3288
    %5310 = vmatpush.bf16.msra.mxu0 %v3280
    %5311 = vmatpush.bf16.msra.mxu0 %v3272
    %5312 = vmatpush.bf16.msra.mxu0 %v3264
    %5313 = vmatmul.bf16.gmra.mxu0 %v5277
    %v5314 = vpop.f32.mrf.mxu0
    %v5315 = vadd.f32 0.0, %v5314
    %v5316 = vpop.f32.mrf.mxu0
    %5317 = vdwg.mxu0
    %5318 = vmatpush.bf16.msra.mxu0 %v3384
    %5319 = vmatpush.bf16.msra.mxu0 %v3376
    %5320 = vmatpush.bf16.msra.mxu0 %v3368
    %5321 = vmatpush.bf16.msra.mxu0 %v3360
    %5322 = vmatpush.bf16.msra.mxu0 %v3352
    %5323 = vmatpush.bf16.msra.mxu0 %v3344
    %5324 = vmatpush.bf16.msra.mxu0 %v3336
    %5325 = vmatpush.bf16.msra.mxu0 %v3328
    %5326 = vmatmul.bf16.gmra.mxu0 %v5278
    %v5327 = vpop.f32.mrf.mxu0
    %v5328 = vadd.f32 %v5315, %v5327
    %v5329 = vpop.f32.mrf.mxu0
    %5330 = vdwg.mxu0
    %5331 = vmatpush.bf16.msra.mxu0 %v3321
    %5332 = vmatpush.bf16.msra.mxu0 %v3313
    %5333 = vmatpush.bf16.msra.mxu0 %v3305
    %5334 = vmatpush.bf16.msra.mxu0 %v3297
    %5335 = vmatpush.bf16.msra.mxu0 %v3289
    %5336 = vmatpush.bf16.msra.mxu0 %v3281
    %5337 = vmatpush.bf16.msra.mxu0 %v3273
    %5338 = vmatpush.bf16.msra.mxu0 %v3265
    %5339 = vmatmul.bf16.gmra.mxu0 %v5277
    %v5340 = vpop.f32.mrf.mxu0
    %v5341 = vadd.f32 0.0, %v5340
    %v5342 = vpop.f32.mrf.mxu0
    %5343 = vdwg.mxu0
    %5344 = vmatpush.bf16.msra.mxu0 %v3385
    %5345 = vmatpush.bf16.msra.mxu0 %v3377
    %5346 = vmatpush.bf16.msra.mxu0 %v3369
    %5347 = vmatpush.bf16.msra.mxu0 %v3361
    %5348 = vmatpush.bf16.msra.mxu0 %v3353
    %5349 = vmatpush.bf16.msra.mxu0 %v3345
    %5350 = vmatpush.bf16.msra.mxu0 %v3337
    %5351 = vmatpush.bf16.msra.mxu0 %v3329
    %5352 = vmatmul.bf16.gmra.mxu0 %v5278
    %v5353 = vpop.f32.mrf.mxu0
    %v5354 = vadd.f32 %v5341, %v5353
    %v5355 = vpop.f32.mrf.mxu0
    %5356 = vdwg.mxu0
    %5357 = vmatpush.bf16.msra.mxu0 %v3322
    %5358 = vmatpush.bf16.msra.mxu0 %v3314
    %5359 = vmatpush.bf16.msra.mxu0 %v3306
    %5360 = vmatpush.bf16.msra.mxu0 %v3298
    %5361 = vmatpush.bf16.msra.mxu0 %v3290
    %5362 = vmatpush.bf16.msra.mxu0 %v3282
    %5363 = vmatpush.bf16.msra.mxu0 %v3274
    %5364 = vmatpush.bf16.msra.mxu0 %v3266
    %5365 = vmatmul.bf16.gmra.mxu0 %v5277
    %v5366 = vpop.f32.mrf.mxu0
    %v5367 = vadd.f32 0.0, %v5366
    %v5368 = vpop.f32.mrf.mxu0
    %5369 = vdwg.mxu0
    %5370 = vmatpush.bf16.msra.mxu0 %v3386
    %5371 = vmatpush.bf16.msra.mxu0 %v3378
    %5372 = vmatpush.bf16.msra.mxu0 %v3370
    %5373 = vmatpush.bf16.msra.mxu0 %v3362
    %5374 = vmatpush.bf16.msra.mxu0 %v3354
    %5375 = vmatpush.bf16.msra.mxu0 %v3346
    %5376 = vmatpush.bf16.msra.mxu0 %v3338
    %5377 = vmatpush.bf16.msra.mxu0 %v3330
    %5378 = vmatmul.bf16.gmra.mxu0 %v5278
    %v5379 = vpop.f32.mrf.mxu0
    %v5380 = vadd.f32 %v5367, %v5379
    %v5381 = vpop.f32.mrf.mxu0
    %5382 = vdwg.mxu0
    %5383 = vmatpush.bf16.msra.mxu0 %v3323
    %5384 = vmatpush.bf16.msra.mxu0 %v3315
    %5385 = vmatpush.bf16.msra.mxu0 %v3307
    %5386 = vmatpush.bf16.msra.mxu0 %v3299
    %5387 = vmatpush.bf16.msra.mxu0 %v3291
    %5388 = vmatpush.bf16.msra.mxu0 %v3283
    %5389 = vmatpush.bf16.msra.mxu0 %v3275
    %5390 = vmatpush.bf16.msra.mxu0 %v3267
    %5391 = vmatmul.bf16.gmra.mxu0 %v5277
    %v5392 = vpop.f32.mrf.mxu0
    %v5393 = vadd.f32 0.0, %v5392
    %v5394 = vpop.f32.mrf.mxu0
    %5395 = vdwg.mxu0
    %5396 = vmatpush.bf16.msra.mxu0 %v3387
    %5397 = vmatpush.bf16.msra.mxu0 %v3379
    %5398 = vmatpush.bf16.msra.mxu0 %v3371
    %5399 = vmatpush.bf16.msra.mxu0 %v3363
    %5400 = vmatpush.bf16.msra.mxu0 %v3355
    %5401 = vmatpush.bf16.msra.mxu0 %v3347
    %5402 = vmatpush.bf16.msra.mxu0 %v3339
    %5403 = vmatpush.bf16.msra.mxu0 %v3331
    %5404 = vmatmul.bf16.gmra.mxu0 %v5278
    %v5405 = vpop.f32.mrf.mxu0
    %v5406 = vadd.f32 %v5393, %v5405
    %v5407 = vpop.f32.mrf.mxu0
    %5408 = vdwg.mxu0
    %5409 = vmatpush.bf16.msra.mxu0 %v3324
    %5410 = vmatpush.bf16.msra.mxu0 %v3316
    %5411 = vmatpush.bf16.msra.mxu0 %v3308
    %5412 = vmatpush.bf16.msra.mxu0 %v3300
    %5413 = vmatpush.bf16.msra.mxu0 %v3292
    %5414 = vmatpush.bf16.msra.mxu0 %v3284
    %5415 = vmatpush.bf16.msra.mxu0 %v3276
    %5416 = vmatpush.bf16.msra.mxu0 %v3268
    %5417 = vmatmul.bf16.gmra.mxu0 %v5277
    %v5418 = vpop.f32.mrf.mxu0
    %v5419 = vadd.f32 0.0, %v5418
    %v5420 = vpop.f32.mrf.mxu0
    %5421 = vdwg.mxu0
    %5422 = vmatpush.bf16.msra.mxu0 %v3388
    %5423 = vmatpush.bf16.msra.mxu0 %v3380
    %5424 = vmatpush.bf16.msra.mxu0 %v3372
    %5425 = vmatpush.bf16.msra.mxu0 %v3364
    %5426 = vmatpush.bf16.msra.mxu0 %v3356
    %5427 = vmatpush.bf16.msra.mxu0 %v3348
    %5428 = vmatpush.bf16.msra.mxu0 %v3340
    %5429 = vmatpush.bf16.msra.mxu0 %v3332
    %5430 = vmatmul.bf16.gmra.mxu0 %v5278
    %v5431 = vpop.f32.mrf.mxu0
    %v5432 = vadd.f32 %v5419, %v5431
    %v5433 = vpop.f32.mrf.mxu0
    %5434 = vdwg.mxu0
    %5435 = vmatpush.bf16.msra.mxu0 %v3325
    %5436 = vmatpush.bf16.msra.mxu0 %v3317
    %5437 = vmatpush.bf16.msra.mxu0 %v3309
    %5438 = vmatpush.bf16.msra.mxu0 %v3301
    %5439 = vmatpush.bf16.msra.mxu0 %v3293
    %5440 = vmatpush.bf16.msra.mxu0 %v3285
    %5441 = vmatpush.bf16.msra.mxu0 %v3277
    %5442 = vmatpush.bf16.msra.mxu0 %v3269
    %5443 = vmatmul.bf16.gmra.mxu0 %v5277
    %v5444 = vpop.f32.mrf.mxu0
    %v5445 = vadd.f32 0.0, %v5444
    %v5446 = vpop.f32.mrf.mxu0
    %5447 = vdwg.mxu0
    %5448 = vmatpush.bf16.msra.mxu0 %v3389
    %5449 = vmatpush.bf16.msra.mxu0 %v3381
    %5450 = vmatpush.bf16.msra.mxu0 %v3373
    %5451 = vmatpush.bf16.msra.mxu0 %v3365
    %5452 = vmatpush.bf16.msra.mxu0 %v3357
    %5453 = vmatpush.bf16.msra.mxu0 %v3349
    %5454 = vmatpush.bf16.msra.mxu0 %v3341
    %5455 = vmatpush.bf16.msra.mxu0 %v3333
    %5456 = vmatmul.bf16.gmra.mxu0 %v5278
    %v5457 = vpop.f32.mrf.mxu0
    %v5458 = vadd.f32 %v5445, %v5457
    %v5459 = vpop.f32.mrf.mxu0
    %5460 = vdwg.mxu0
    %5461 = vmatpush.bf16.msra.mxu0 %v3326
    %5462 = vmatpush.bf16.msra.mxu0 %v3318
    %5463 = vmatpush.bf16.msra.mxu0 %v3310
    %5464 = vmatpush.bf16.msra.mxu0 %v3302
    %5465 = vmatpush.bf16.msra.mxu0 %v3294
    %5466 = vmatpush.bf16.msra.mxu0 %v3286
    %5467 = vmatpush.bf16.msra.mxu0 %v3278
    %5468 = vmatpush.bf16.msra.mxu0 %v3270
    %5469 = vmatmul.bf16.gmra.mxu0 %v5277
    %v5470 = vpop.f32.mrf.mxu0
    %v5471 = vadd.f32 0.0, %v5470
    %v5472 = vpop.f32.mrf.mxu0
    %5473 = vdwg.mxu0
    %5474 = vmatpush.bf16.msra.mxu0 %v3390
    %5475 = vmatpush.bf16.msra.mxu0 %v3382
    %5476 = vmatpush.bf16.msra.mxu0 %v3374
    %5477 = vmatpush.bf16.msra.mxu0 %v3366
    %5478 = vmatpush.bf16.msra.mxu0 %v3358
    %5479 = vmatpush.bf16.msra.mxu0 %v3350
    %5480 = vmatpush.bf16.msra.mxu0 %v3342
    %5481 = vmatpush.bf16.msra.mxu0 %v3334
    %5482 = vmatmul.bf16.gmra.mxu0 %v5278
    %v5483 = vpop.f32.mrf.mxu0
    %v5484 = vadd.f32 %v5471, %v5483
    %v5485 = vpop.f32.mrf.mxu0
    %5486 = vdwg.mxu0
    %v5487 = vadd.f32 %v5269, %v5302
    %v5488 = vadd.f32 %v5270, %v5328
    %v5489 = vadd.f32 %v5271, %v5354
    %v5490 = vadd.f32 %v5272, %v5380
    %v5491 = vadd.f32 %v5273, %v5406
    %v5492 = vadd.f32 %v5274, %v5432
    %v5493 = vadd.f32 %v5275, %v5458
    %v5494 = vadd.f32 %v5276, %v5484
    %v5495 = vxor.u32 %v5487, 2147483648
    %v5496 = vxor.u32 %v5488, 2147483648
    %v5497 = vmul.f32 %v5495, 1.442695
    %v5498 = vpow.pop %v5497
    %v5499 = vmul.f32 %v5496, 1.442695
    %v5500 = vpow.pop %v5499
    %v5501 = vadd.f32 %v5498, 1.0
    %v5502 = vadd.f32 %v5500, 1.0
    %v5503 = vrcp.pop %v5501
    %v5504 = vmul.f32 %v5501, %v5503
    %v5505 = vsub.f32 1.0, %v5504
    %v5506 = vmul.f32 %v5503, %v5505
    %v5507 = vadd.f32 %v5503, %v5506
    %vm5508 = vweird.f32 %v5501
    %vm5509 = vweird.f32 %v5503
    %vm5510 = vmor %vm5508, %vm5509
    %v5511 = vsel %vm5510, %v5503, %v5507
    %v5512 = vand.u32 2147483647, %v5501
    %vm5513 = vcmp.eq.f32.partialorder %v5512, 8.507059e+37
    %v5514 = vand.u32 %v5501, 2147483648
    %v5515 = vor.u32 1.1754944e-38, %v5514
    %v5516 = vsel %vm5513, %v5515, %v5511
    %v5517 = vmul.f32 1.0, %v5516
    %v5518 = vrcp.pop %v5502
    %v5519 = vmul.f32 %v5502, %v5518
    %v5520 = vsub.f32 1.0, %v5519
    %v5521 = vmul.f32 %v5518, %v5520
    %v5522 = vadd.f32 %v5518, %v5521
    %vm5523 = vweird.f32 %v5502
    %vm5524 = vweird.f32 %v5518
    %vm5525 = vmor %vm5523, %vm5524
    %v5526 = vsel %vm5525, %v5518, %v5522
    %v5527 = vand.u32 2147483647, %v5502
    %vm5528 = vcmp.eq.f32.partialorder %v5527, 8.507059e+37
    %v5529 = vand.u32 %v5502, 2147483648
    %v5530 = vor.u32 1.1754944e-38, %v5529
    %v5531 = vsel %vm5528, %v5530, %v5526
    %v5532 = vmul.f32 1.0, %v5531
    %v5533 = vxor.u32 %v5489, 2147483648
    %v5534 = vxor.u32 %v5490, 2147483648
    %v5535 = vmul.f32 %v5533, 1.442695
    %v5536 = vpow.pop %v5535
    %v5537 = vmul.f32 %v5534, 1.442695
    %v5538 = vpow.pop %v5537
    %v5539 = vadd.f32 %v5536, 1.0
    %v5540 = vadd.f32 %v5538, 1.0
    %v5541 = vrcp.pop %v5539
    %v5542 = vmul.f32 %v5539, %v5541
    %v5543 = vsub.f32 1.0, %v5542
    %v5544 = vmul.f32 %v5541, %v5543
    %v5545 = vadd.f32 %v5541, %v5544
    %vm5546 = vweird.f32 %v5539
    %vm5547 = vweird.f32 %v5541
    %vm5548 = vmor %vm5546, %vm5547
    %v5549 = vsel %vm5548, %v5541, %v5545
    %v5550 = vand.u32 2147483647, %v5539
    %vm5551 = vcmp.eq.f32.partialorder %v5550, 8.507059e+37
    %v5552 = vand.u32 %v5539, 2147483648
    %v5553 = vor.u32 1.1754944e-38, %v5552
    %v5554 = vsel %vm5551, %v5553, %v5549
    %v5555 = vmul.f32 1.0, %v5554
    %v5556 = vrcp.pop %v5540
    %v5557 = vmul.f32 %v5540, %v5556
    %v5558 = vsub.f32 1.0, %v5557
    %v5559 = vmul.f32 %v5556, %v5558
    %v5560 = vadd.f32 %v5556, %v5559
    %vm5561 = vweird.f32 %v5540
    %vm5562 = vweird.f32 %v5556
    %vm5563 = vmor %vm5561, %vm5562
    %v5564 = vsel %vm5563, %v5556, %v5560
    %v5565 = vand.u32 2147483647, %v5540
    %vm5566 = vcmp.eq.f32.partialorder %v5565, 8.507059e+37
    %v5567 = vand.u32 %v5540, 2147483648
    %v5568 = vor.u32 1.1754944e-38, %v5567
    %v5569 = vsel %vm5566, %v5568, %v5564
    %v5570 = vmul.f32 1.0, %v5569
    %v5571 = vtanh.pop %v5491
    %v5572 = vtanh.pop %v5492
    %v5573 = vxor.u32 %v5493, 2147483648
    %v5574 = vxor.u32 %v5494, 2147483648
    %v5575 = vmul.f32 %v5573, 1.442695
    %v5576 = vpow.pop %v5575
    %v5577 = vmul.f32 %v5574, 1.442695
    %v5578 = vpow.pop %v5577
    %v5579 = vadd.f32 %v5576, 1.0
    %v5580 = vadd.f32 %v5578, 1.0
    %v5581 = vrcp.pop %v5579
    %v5582 = vmul.f32 %v5579, %v5581
    %v5583 = vsub.f32 1.0, %v5582
    %v5584 = vmul.f32 %v5581, %v5583
    %v5585 = vadd.f32 %v5581, %v5584
    %vm5586 = vweird.f32 %v5579
    %vm5587 = vweird.f32 %v5581
    %vm5588 = vmor %vm5586, %vm5587
    %v5589 = vsel %vm5588, %v5581, %v5585
    %v5590 = vand.u32 2147483647, %v5579
    %vm5591 = vcmp.eq.f32.partialorder %v5590, 8.507059e+37
    %v5592 = vand.u32 %v5579, 2147483648
    %v5593 = vor.u32 1.1754944e-38, %v5592
    %v5594 = vsel %vm5591, %v5593, %v5589
    %v5595 = vmul.f32 1.0, %v5594
    %v5596 = vrcp.pop %v5580
    %v5597 = vmul.f32 %v5580, %v5596
    %v5598 = vsub.f32 1.0, %v5597
    %v5599 = vmul.f32 %v5596, %v5598
    %v5600 = vadd.f32 %v5596, %v5599
    %vm5601 = vweird.f32 %v5580
    %vm5602 = vweird.f32 %v5596
    %vm5603 = vmor %vm5601, %vm5602
    %v5604 = vsel %vm5603, %v5596, %v5600
    %v5605 = vand.u32 2147483647, %v5580
    %vm5606 = vcmp.eq.f32.partialorder %v5605, 8.507059e+37
    %v5607 = vand.u32 %v5580, 2147483648
    %v5608 = vor.u32 1.1754944e-38, %v5607
    %v5609 = vsel %vm5606, %v5608, %v5604
    %v5610 = vmul.f32 1.0, %v5609
    %v5611 = vmul.f32 %v5555, %v5263
    %v5612 = vmul.f32 %v5570, %v5264
    %v5613 = vmul.f32 %v5517, %v5571
    %v5614 = vmul.f32 %v5532, %v5572
    %v5615 = vadd.f32 %v5611, %v5613
    %v5616 = vadd.f32 %v5612, %v5614
    %v5617 = vtanh.pop %v5615
    %v5618 = vtanh.pop %v5616
    %v5619 = vmul.f32 %v5595, %v5617
    %v5620 = vmul.f32 %v5610, %v5618
    %v5621 = vld [vmem:[#allocation2 + $0x180] sm:$0xff]
    %v5622 = vld [vmem:[#allocation2 + $0x188] sm:$0xff]
    %v5623 = vld [vmem:[#allocation2 + $0x190] sm:$0xff]
    %v5624 = vld [vmem:[#allocation2 + $0x198] sm:$0xff]
    %v5625 = vld [vmem:[#allocation2 + $0x1a0] sm:$0xff]
    %v5626 = vld [vmem:[#allocation2 + $0x1a8] sm:$0xff]
    %v5627 = vld [vmem:[#allocation2 + $0x1b0] sm:$0xff]
    %v5628 = vld [vmem:[#allocation2 + $0x1b8] sm:$0xff]
    %v5629 = vpack.c.bf16 %v5619, %v5619
    %v5630 = vpack.c.bf16 %v5620, %v5620
    %5631 = vmatpush.bf16.msra.mxu0 %v3319
    %5632 = vmatpush.bf16.msra.mxu0 %v3311
    %5633 = vmatpush.bf16.msra.mxu0 %v3303
    %5634 = vmatpush.bf16.msra.mxu0 %v3295
    %5635 = vmatpush.bf16.msra.mxu0 %v3287
    %5636 = vmatpush.bf16.msra.mxu0 %v3279
    %5637 = vmatpush.bf16.msra.mxu0 %v3271
    %5638 = vmatpush.bf16.msra.mxu0 %v3263
    %5639 = vmatmul.bf16.gmra.mxu0 %v5629
    %v5640 = vpop.f32.mrf.mxu0
    %v5641 = vadd.f32 0.0, %v5640
    %v5642 = vpop.f32.mrf.mxu0
    %5643 = vdwg.mxu0
    %5644 = vmatpush.bf16.msra.mxu0 %v3383
    %5645 = vmatpush.bf16.msra.mxu0 %v3375
    %5646 = vmatpush.bf16.msra.mxu0 %v3367
    %5647 = vmatpush.bf16.msra.mxu0 %v3359
    %5648 = vmatpush.bf16.msra.mxu0 %v3351
    %5649 = vmatpush.bf16.msra.mxu0 %v3343
    %5650 = vmatpush.bf16.msra.mxu0 %v3335
    %5651 = vmatpush.bf16.msra.mxu0 %v3327
    %5652 = vmatmul.bf16.gmra.mxu0 %v5630
    %v5653 = vpop.f32.mrf.mxu0
    %v5654 = vadd.f32 %v5641, %v5653
    %v5655 = vpop.f32.mrf.mxu0
    %5656 = vdwg.mxu0
    %5657 = vmatpush.bf16.msra.mxu0 %v3320
    %5658 = vmatpush.bf16.msra.mxu0 %v3312
    %5659 = vmatpush.bf16.msra.mxu0 %v3304
    %5660 = vmatpush.bf16.msra.mxu0 %v3296
    %5661 = vmatpush.bf16.msra.mxu0 %v3288
    %5662 = vmatpush.bf16.msra.mxu0 %v3280
    %5663 = vmatpush.bf16.msra.mxu0 %v3272
    %5664 = vmatpush.bf16.msra.mxu0 %v3264
    %5665 = vmatmul.bf16.gmra.mxu0 %v5629
    %v5666 = vpop.f32.mrf.mxu0
    %v5667 = vadd.f32 0.0, %v5666
    %v5668 = vpop.f32.mrf.mxu0
    %5669 = vdwg.mxu0
    %5670 = vmatpush.bf16.msra.mxu0 %v3384
    %5671 = vmatpush.bf16.msra.mxu0 %v3376
    %5672 = vmatpush.bf16.msra.mxu0 %v3368
    %5673 = vmatpush.bf16.msra.mxu0 %v3360
    %5674 = vmatpush.bf16.msra.mxu0 %v3352
    %5675 = vmatpush.bf16.msra.mxu0 %v3344
    %5676 = vmatpush.bf16.msra.mxu0 %v3336
    %5677 = vmatpush.bf16.msra.mxu0 %v3328
    %5678 = vmatmul.bf16.gmra.mxu0 %v5630
    %v5679 = vpop.f32.mrf.mxu0
    %v5680 = vadd.f32 %v5667, %v5679
    %v5681 = vpop.f32.mrf.mxu0
    %5682 = vdwg.mxu0
    %5683 = vmatpush.bf16.msra.mxu0 %v3321
    %5684 = vmatpush.bf16.msra.mxu0 %v3313
    %5685 = vmatpush.bf16.msra.mxu0 %v3305
    %5686 = vmatpush.bf16.msra.mxu0 %v3297
    %5687 = vmatpush.bf16.msra.mxu0 %v3289
    %5688 = vmatpush.bf16.msra.mxu0 %v3281
    %5689 = vmatpush.bf16.msra.mxu0 %v3273
    %5690 = vmatpush.bf16.msra.mxu0 %v3265
    %5691 = vmatmul.bf16.gmra.mxu0 %v5629
    %v5692 = vpop.f32.mrf.mxu0
    %v5693 = vadd.f32 0.0, %v5692
    %v5694 = vpop.f32.mrf.mxu0
    %5695 = vdwg.mxu0
    %5696 = vmatpush.bf16.msra.mxu0 %v3385
    %5697 = vmatpush.bf16.msra.mxu0 %v3377
    %5698 = vmatpush.bf16.msra.mxu0 %v3369
    %5699 = vmatpush.bf16.msra.mxu0 %v3361
    %5700 = vmatpush.bf16.msra.mxu0 %v3353
    %5701 = vmatpush.bf16.msra.mxu0 %v3345
    %5702 = vmatpush.bf16.msra.mxu0 %v3337
    %5703 = vmatpush.bf16.msra.mxu0 %v3329
    %5704 = vmatmul.bf16.gmra.mxu0 %v5630
    %v5705 = vpop.f32.mrf.mxu0
    %v5706 = vadd.f32 %v5693, %v5705
    %v5707 = vpop.f32.mrf.mxu0
    %5708 = vdwg.mxu0
    %5709 = vmatpush.bf16.msra.mxu0 %v3322
    %5710 = vmatpush.bf16.msra.mxu0 %v3314
    %5711 = vmatpush.bf16.msra.mxu0 %v3306
    %5712 = vmatpush.bf16.msra.mxu0 %v3298
    %5713 = vmatpush.bf16.msra.mxu0 %v3290
    %5714 = vmatpush.bf16.msra.mxu0 %v3282
    %5715 = vmatpush.bf16.msra.mxu0 %v3274
    %5716 = vmatpush.bf16.msra.mxu0 %v3266
    %5717 = vmatmul.bf16.gmra.mxu0 %v5629
    %v5718 = vpop.f32.mrf.mxu0
    %v5719 = vadd.f32 0.0, %v5718
    %v5720 = vpop.f32.mrf.mxu0
    %5721 = vdwg.mxu0
    %5722 = vmatpush.bf16.msra.mxu0 %v3386
    %5723 = vmatpush.bf16.msra.mxu0 %v3378
    %5724 = vmatpush.bf16.msra.mxu0 %v3370
    %5725 = vmatpush.bf16.msra.mxu0 %v3362
    %5726 = vmatpush.bf16.msra.mxu0 %v3354
    %5727 = vmatpush.bf16.msra.mxu0 %v3346
    %5728 = vmatpush.bf16.msra.mxu0 %v3338
    %5729 = vmatpush.bf16.msra.mxu0 %v3330
    %5730 = vmatmul.bf16.gmra.mxu0 %v5630
    %v5731 = vpop.f32.mrf.mxu0
    %v5732 = vadd.f32 %v5719, %v5731
    %v5733 = vpop.f32.mrf.mxu0
    %5734 = vdwg.mxu0
    %5735 = vmatpush.bf16.msra.mxu0 %v3323
    %5736 = vmatpush.bf16.msra.mxu0 %v3315
    %5737 = vmatpush.bf16.msra.mxu0 %v3307
    %5738 = vmatpush.bf16.msra.mxu0 %v3299
    %5739 = vmatpush.bf16.msra.mxu0 %v3291
    %5740 = vmatpush.bf16.msra.mxu0 %v3283
    %5741 = vmatpush.bf16.msra.mxu0 %v3275
    %5742 = vmatpush.bf16.msra.mxu0 %v3267
    %5743 = vmatmul.bf16.gmra.mxu0 %v5629
    %v5744 = vpop.f32.mrf.mxu0
    %v5745 = vadd.f32 0.0, %v5744
    %v5746 = vpop.f32.mrf.mxu0
    %5747 = vdwg.mxu0
    %5748 = vmatpush.bf16.msra.mxu0 %v3387
    %5749 = vmatpush.bf16.msra.mxu0 %v3379
    %5750 = vmatpush.bf16.msra.mxu0 %v3371
    %5751 = vmatpush.bf16.msra.mxu0 %v3363
    %5752 = vmatpush.bf16.msra.mxu0 %v3355
    %5753 = vmatpush.bf16.msra.mxu0 %v3347
    %5754 = vmatpush.bf16.msra.mxu0 %v3339
    %5755 = vmatpush.bf16.msra.mxu0 %v3331
    %5756 = vmatmul.bf16.gmra.mxu0 %v5630
    %v5757 = vpop.f32.mrf.mxu0
    %v5758 = vadd.f32 %v5745, %v5757
    %v5759 = vpop.f32.mrf.mxu0
    %5760 = vdwg.mxu0
    %5761 = vmatpush.bf16.msra.mxu0 %v3324
    %5762 = vmatpush.bf16.msra.mxu0 %v3316
    %5763 = vmatpush.bf16.msra.mxu0 %v3308
    %5764 = vmatpush.bf16.msra.mxu0 %v3300
    %5765 = vmatpush.bf16.msra.mxu0 %v3292
    %5766 = vmatpush.bf16.msra.mxu0 %v3284
    %5767 = vmatpush.bf16.msra.mxu0 %v3276
    %5768 = vmatpush.bf16.msra.mxu0 %v3268
    %5769 = vmatmul.bf16.gmra.mxu0 %v5629
    %v5770 = vpop.f32.mrf.mxu0
    %v5771 = vadd.f32 0.0, %v5770
    %v5772 = vpop.f32.mrf.mxu0
    %5773 = vdwg.mxu0
    %5774 = vmatpush.bf16.msra.mxu0 %v3388
    %5775 = vmatpush.bf16.msra.mxu0 %v3380
    %5776 = vmatpush.bf16.msra.mxu0 %v3372
    %5777 = vmatpush.bf16.msra.mxu0 %v3364
    %5778 = vmatpush.bf16.msra.mxu0 %v3356
    %5779 = vmatpush.bf16.msra.mxu0 %v3348
    %5780 = vmatpush.bf16.msra.mxu0 %v3340
    %5781 = vmatpush.bf16.msra.mxu0 %v3332
    %5782 = vmatmul.bf16.gmra.mxu0 %v5630
    %v5783 = vpop.f32.mrf.mxu0
    %v5784 = vadd.f32 %v5771, %v5783
    %v5785 = vpop.f32.mrf.mxu0
    %5786 = vdwg.mxu0
    %5787 = vmatpush.bf16.msra.mxu0 %v3325
    %5788 = vmatpush.bf16.msra.mxu0 %v3317
    %5789 = vmatpush.bf16.msra.mxu0 %v3309
    %5790 = vmatpush.bf16.msra.mxu0 %v3301
    %5791 = vmatpush.bf16.msra.mxu0 %v3293
    %5792 = vmatpush.bf16.msra.mxu0 %v3285
    %5793 = vmatpush.bf16.msra.mxu0 %v3277
    %5794 = vmatpush.bf16.msra.mxu0 %v3269
    %5795 = vmatmul.bf16.gmra.mxu0 %v5629
    %v5796 = vpop.f32.mrf.mxu0
    %v5797 = vadd.f32 0.0, %v5796
    %v5798 = vpop.f32.mrf.mxu0
    %5799 = vdwg.mxu0
    %5800 = vmatpush.bf16.msra.mxu0 %v3389
    %5801 = vmatpush.bf16.msra.mxu0 %v3381
    %5802 = vmatpush.bf16.msra.mxu0 %v3373
    %5803 = vmatpush.bf16.msra.mxu0 %v3365
    %5804 = vmatpush.bf16.msra.mxu0 %v3357
    %5805 = vmatpush.bf16.msra.mxu0 %v3349
    %5806 = vmatpush.bf16.msra.mxu0 %v3341
    %5807 = vmatpush.bf16.msra.mxu0 %v3333
    %5808 = vmatmul.bf16.gmra.mxu0 %v5630
    %v5809 = vpop.f32.mrf.mxu0
    %v5810 = vadd.f32 %v5797, %v5809
    %v5811 = vpop.f32.mrf.mxu0
    %5812 = vdwg.mxu0
    %5813 = vmatpush.bf16.msra.mxu0 %v3326
    %5814 = vmatpush.bf16.msra.mxu0 %v3318
    %5815 = vmatpush.bf16.msra.mxu0 %v3310
    %5816 = vmatpush.bf16.msra.mxu0 %v3302
    %5817 = vmatpush.bf16.msra.mxu0 %v3294
    %5818 = vmatpush.bf16.msra.mxu0 %v3286
    %5819 = vmatpush.bf16.msra.mxu0 %v3278
    %5820 = vmatpush.bf16.msra.mxu0 %v3270
    %5821 = vmatmul.bf16.gmra.mxu0 %v5629
    %v5822 = vpop.f32.mrf.mxu0
    %v5823 = vadd.f32 0.0, %v5822
    %v5824 = vpop.f32.mrf.mxu0
    %5825 = vdwg.mxu0
    %5826 = vmatpush.bf16.msra.mxu0 %v3390
    %5827 = vmatpush.bf16.msra.mxu0 %v3382
    %5828 = vmatpush.bf16.msra.mxu0 %v3374
    %5829 = vmatpush.bf16.msra.mxu0 %v3366
    %5830 = vmatpush.bf16.msra.mxu0 %v3358
    %5831 = vmatpush.bf16.msra.mxu0 %v3350
    %5832 = vmatpush.bf16.msra.mxu0 %v3342
    %5833 = vmatpush.bf16.msra.mxu0 %v3334
    %5834 = vmatmul.bf16.gmra.mxu0 %v5630
    %v5835 = vpop.f32.mrf.mxu0
    %v5836 = vadd.f32 %v5823, %v5835
    %v5837 = vpop.f32.mrf.mxu0
    %5838 = vdwg.mxu0
    %v5839 = vadd.f32 %v5621, %v5654
    %v5840 = vadd.f32 %v5622, %v5680
    %v5841 = vadd.f32 %v5623, %v5706
    %v5842 = vadd.f32 %v5624, %v5732
    %v5843 = vadd.f32 %v5625, %v5758
    %v5844 = vadd.f32 %v5626, %v5784
    %v5845 = vadd.f32 %v5627, %v5810
    %v5846 = vadd.f32 %v5628, %v5836
    %v5847 = vxor.u32 %v5839, 2147483648
    %v5848 = vxor.u32 %v5840, 2147483648
    %v5849 = vmul.f32 %v5847, 1.442695
    %v5850 = vpow.pop %v5849
    %v5851 = vmul.f32 %v5848, 1.442695
    %v5852 = vpow.pop %v5851
    %v5853 = vadd.f32 %v5850, 1.0
    %v5854 = vadd.f32 %v5852, 1.0
    %v5855 = vrcp.pop %v5853
    %v5856 = vmul.f32 %v5853, %v5855
    %v5857 = vsub.f32 1.0, %v5856
    %v5858 = vmul.f32 %v5855, %v5857
    %v5859 = vadd.f32 %v5855, %v5858
    %vm5860 = vweird.f32 %v5853
    %vm5861 = vweird.f32 %v5855
    %vm5862 = vmor %vm5860, %vm5861
    %v5863 = vsel %vm5862, %v5855, %v5859
    %v5864 = vand.u32 2147483647, %v5853
    %vm5865 = vcmp.eq.f32.partialorder %v5864, 8.507059e+37
    %v5866 = vand.u32 %v5853, 2147483648
    %v5867 = vor.u32 1.1754944e-38, %v5866
    %v5868 = vsel %vm5865, %v5867, %v5863
    %v5869 = vmul.f32 1.0, %v5868
    %v5870 = vrcp.pop %v5854
    %v5871 = vmul.f32 %v5854, %v5870
    %v5872 = vsub.f32 1.0, %v5871
    %v5873 = vmul.f32 %v5870, %v5872
    %v5874 = vadd.f32 %v5870, %v5873
    %vm5875 = vweird.f32 %v5854
    %vm5876 = vweird.f32 %v5870
    %vm5877 = vmor %vm5875, %vm5876
    %v5878 = vsel %vm5877, %v5870, %v5874
    %v5879 = vand.u32 2147483647, %v5854
    %vm5880 = vcmp.eq.f32.partialorder %v5879, 8.507059e+37
    %v5881 = vand.u32 %v5854, 2147483648
    %v5882 = vor.u32 1.1754944e-38, %v5881
    %v5883 = vsel %vm5880, %v5882, %v5878
    %v5884 = vmul.f32 1.0, %v5883
    %v5885 = vxor.u32 %v5841, 2147483648
    %v5886 = vxor.u32 %v5842, 2147483648
    %v5887 = vmul.f32 %v5885, 1.442695
    %v5888 = vpow.pop %v5887
    %v5889 = vmul.f32 %v5886, 1.442695
    %v5890 = vpow.pop %v5889
    %v5891 = vadd.f32 %v5888, 1.0
    %v5892 = vadd.f32 %v5890, 1.0
    %v5893 = vrcp.pop %v5891
    %v5894 = vmul.f32 %v5891, %v5893
    %v5895 = vsub.f32 1.0, %v5894
    %v5896 = vmul.f32 %v5893, %v5895
    %v5897 = vadd.f32 %v5893, %v5896
    %vm5898 = vweird.f32 %v5891
    %vm5899 = vweird.f32 %v5893
    %vm5900 = vmor %vm5898, %vm5899
    %v5901 = vsel %vm5900, %v5893, %v5897
    %v5902 = vand.u32 2147483647, %v5891
    %vm5903 = vcmp.eq.f32.partialorder %v5902, 8.507059e+37
    %v5904 = vand.u32 %v5891, 2147483648
    %v5905 = vor.u32 1.1754944e-38, %v5904
    %v5906 = vsel %vm5903, %v5905, %v5901
    %v5907 = vmul.f32 1.0, %v5906
    %v5908 = vrcp.pop %v5892
    %v5909 = vmul.f32 %v5892, %v5908
    %v5910 = vsub.f32 1.0, %v5909
    %v5911 = vmul.f32 %v5908, %v5910
    %v5912 = vadd.f32 %v5908, %v5911
    %vm5913 = vweird.f32 %v5892
    %vm5914 = vweird.f32 %v5908
    %vm5915 = vmor %vm5913, %vm5914
    %v5916 = vsel %vm5915, %v5908, %v5912
    %v5917 = vand.u32 2147483647, %v5892
    %vm5918 = vcmp.eq.f32.partialorder %v5917, 8.507059e+37
    %v5919 = vand.u32 %v5892, 2147483648
    %v5920 = vor.u32 1.1754944e-38, %v5919
    %v5921 = vsel %vm5918, %v5920, %v5916
    %v5922 = vmul.f32 1.0, %v5921
    %v5923 = vtanh.pop %v5843
    %v5924 = vtanh.pop %v5844
    %v5925 = vxor.u32 %v5845, 2147483648
    %v5926 = vxor.u32 %v5846, 2147483648
    %v5927 = vmul.f32 %v5925, 1.442695
    %v5928 = vpow.pop %v5927
    %v5929 = vmul.f32 %v5926, 1.442695
    %v5930 = vpow.pop %v5929
    %v5931 = vadd.f32 %v5928, 1.0
    %v5932 = vadd.f32 %v5930, 1.0
    %v5933 = vrcp.pop %v5931
    %v5934 = vmul.f32 %v5931, %v5933
    %v5935 = vsub.f32 1.0, %v5934
    %v5936 = vmul.f32 %v5933, %v5935
    %v5937 = vadd.f32 %v5933, %v5936
    %vm5938 = vweird.f32 %v5931
    %vm5939 = vweird.f32 %v5933
    %vm5940 = vmor %vm5938, %vm5939
    %v5941 = vsel %vm5940, %v5933, %v5937
    %v5942 = vand.u32 2147483647, %v5931
    %vm5943 = vcmp.eq.f32.partialorder %v5942, 8.507059e+37
    %v5944 = vand.u32 %v5931, 2147483648
    %v5945 = vor.u32 1.1754944e-38, %v5944
    %v5946 = vsel %vm5943, %v5945, %v5941
    %v5947 = vmul.f32 1.0, %v5946
    %v5948 = vrcp.pop %v5932
    %v5949 = vmul.f32 %v5932, %v5948
    %v5950 = vsub.f32 1.0, %v5949
    %v5951 = vmul.f32 %v5948, %v5950
    %v5952 = vadd.f32 %v5948, %v5951
    %vm5953 = vweird.f32 %v5932
    %vm5954 = vweird.f32 %v5948
    %vm5955 = vmor %vm5953, %vm5954
    %v5956 = vsel %vm5955, %v5948, %v5952
    %v5957 = vand.u32 2147483647, %v5932
    %vm5958 = vcmp.eq.f32.partialorder %v5957, 8.507059e+37
    %v5959 = vand.u32 %v5932, 2147483648
    %v5960 = vor.u32 1.1754944e-38, %v5959
    %v5961 = vsel %vm5958, %v5960, %v5956
    %v5962 = vmul.f32 1.0, %v5961
    %v5963 = vmul.f32 %v5907, %v5615
    %v5964 = vmul.f32 %v5922, %v5616
    %v5965 = vmul.f32 %v5869, %v5923
    %v5966 = vmul.f32 %v5884, %v5924
    %v5967 = vadd.f32 %v5963, %v5965
    %v5968 = vadd.f32 %v5964, %v5966
    %v5969 = vtanh.pop %v5967
    %v5970 = vtanh.pop %v5968
    %v5971 = vmul.f32 %v5947, %v5969
    %v5972 = vmul.f32 %v5962, %v5970
    %v5973 = vld [vmem:[#allocation2 + $0x1c0] sm:$0xff]
    %v5974 = vld [vmem:[#allocation2 + $0x1c8] sm:$0xff]
    %v5975 = vld [vmem:[#allocation2 + $0x1d0] sm:$0xff]
    %v5976 = vld [vmem:[#allocation2 + $0x1d8] sm:$0xff]
    %v5977 = vld [vmem:[#allocation2 + $0x1e0] sm:$0xff]
    %v5978 = vld [vmem:[#allocation2 + $0x1e8] sm:$0xff]
    %v5979 = vld [vmem:[#allocation2 + $0x1f0] sm:$0xff]
    %v5980 = vld [vmem:[#allocation2 + $0x1f8] sm:$0xff]
    %v5981 = vpack.c.bf16 %v5971, %v5971
    %v5982 = vpack.c.bf16 %v5972, %v5972
    %5983 = vmatpush.bf16.msra.mxu0 %v3319
    %5984 = vmatpush.bf16.msra.mxu0 %v3311
    %5985 = vmatpush.bf16.msra.mxu0 %v3303
    %5986 = vmatpush.bf16.msra.mxu0 %v3295
    %5987 = vmatpush.bf16.msra.mxu0 %v3287
    %5988 = vmatpush.bf16.msra.mxu0 %v3279
    %5989 = vmatpush.bf16.msra.mxu0 %v3271
    %5990 = vmatpush.bf16.msra.mxu0 %v3263
    %5991 = vmatmul.bf16.gmra.mxu0 %v5981
    %v5992 = vpop.f32.mrf.mxu0
    %v5993 = vadd.f32 0.0, %v5992
    %v5994 = vpop.f32.mrf.mxu0
    %5995 = vdwg.mxu0
    %5996 = vmatpush.bf16.msra.mxu0 %v3383
    %5997 = vmatpush.bf16.msra.mxu0 %v3375
    %5998 = vmatpush.bf16.msra.mxu0 %v3367
    %5999 = vmatpush.bf16.msra.mxu0 %v3359
    %6000 = vmatpush.bf16.msra.mxu0 %v3351
    %6001 = vmatpush.bf16.msra.mxu0 %v3343
    %6002 = vmatpush.bf16.msra.mxu0 %v3335
    %6003 = vmatpush.bf16.msra.mxu0 %v3327
    %6004 = vmatmul.bf16.gmra.mxu0 %v5982
    %v6005 = vpop.f32.mrf.mxu0
    %v6006 = vadd.f32 %v5993, %v6005
    %v6007 = vpop.f32.mrf.mxu0
    %6008 = vdwg.mxu0
    %6009 = vmatpush.bf16.msra.mxu0 %v3320
    %6010 = vmatpush.bf16.msra.mxu0 %v3312
    %6011 = vmatpush.bf16.msra.mxu0 %v3304
    %6012 = vmatpush.bf16.msra.mxu0 %v3296
    %6013 = vmatpush.bf16.msra.mxu0 %v3288
    %6014 = vmatpush.bf16.msra.mxu0 %v3280
    %6015 = vmatpush.bf16.msra.mxu0 %v3272
    %6016 = vmatpush.bf16.msra.mxu0 %v3264
    %6017 = vmatmul.bf16.gmra.mxu0 %v5981
    %v6018 = vpop.f32.mrf.mxu0
    %v6019 = vadd.f32 0.0, %v6018
    %v6020 = vpop.f32.mrf.mxu0
    %6021 = vdwg.mxu0
    %6022 = vmatpush.bf16.msra.mxu0 %v3384
    %6023 = vmatpush.bf16.msra.mxu0 %v3376
    %6024 = vmatpush.bf16.msra.mxu0 %v3368
    %6025 = vmatpush.bf16.msra.mxu0 %v3360
    %6026 = vmatpush.bf16.msra.mxu0 %v3352
    %6027 = vmatpush.bf16.msra.mxu0 %v3344
    %6028 = vmatpush.bf16.msra.mxu0 %v3336
    %6029 = vmatpush.bf16.msra.mxu0 %v3328
    %6030 = vmatmul.bf16.gmra.mxu0 %v5982
    %v6031 = vpop.f32.mrf.mxu0
    %v6032 = vadd.f32 %v6019, %v6031
    %v6033 = vpop.f32.mrf.mxu0
    %6034 = vdwg.mxu0
    %6035 = vmatpush.bf16.msra.mxu0 %v3321
    %6036 = vmatpush.bf16.msra.mxu0 %v3313
    %6037 = vmatpush.bf16.msra.mxu0 %v3305
    %6038 = vmatpush.bf16.msra.mxu0 %v3297
    %6039 = vmatpush.bf16.msra.mxu0 %v3289
    %6040 = vmatpush.bf16.msra.mxu0 %v3281
    %6041 = vmatpush.bf16.msra.mxu0 %v3273
    %6042 = vmatpush.bf16.msra.mxu0 %v3265
    %6043 = vmatmul.bf16.gmra.mxu0 %v5981
    %v6044 = vpop.f32.mrf.mxu0
    %v6045 = vadd.f32 0.0, %v6044
    %v6046 = vpop.f32.mrf.mxu0
    %6047 = vdwg.mxu0
    %6048 = vmatpush.bf16.msra.mxu0 %v3385
    %6049 = vmatpush.bf16.msra.mxu0 %v3377
    %6050 = vmatpush.bf16.msra.mxu0 %v3369
    %6051 = vmatpush.bf16.msra.mxu0 %v3361
    %6052 = vmatpush.bf16.msra.mxu0 %v3353
    %6053 = vmatpush.bf16.msra.mxu0 %v3345
    %6054 = vmatpush.bf16.msra.mxu0 %v3337
    %6055 = vmatpush.bf16.msra.mxu0 %v3329
    %6056 = vmatmul.bf16.gmra.mxu0 %v5982
    %v6057 = vpop.f32.mrf.mxu0
    %v6058 = vadd.f32 %v6045, %v6057
    %v6059 = vpop.f32.mrf.mxu0
    %6060 = vdwg.mxu0
    %6061 = vmatpush.bf16.msra.mxu0 %v3322
    %6062 = vmatpush.bf16.msra.mxu0 %v3314
    %6063 = vmatpush.bf16.msra.mxu0 %v3306
    %6064 = vmatpush.bf16.msra.mxu0 %v3298
    %6065 = vmatpush.bf16.msra.mxu0 %v3290
    %6066 = vmatpush.bf16.msra.mxu0 %v3282
    %6067 = vmatpush.bf16.msra.mxu0 %v3274
    %6068 = vmatpush.bf16.msra.mxu0 %v3266
    %6069 = vmatmul.bf16.gmra.mxu0 %v5981
    %v6070 = vpop.f32.mrf.mxu0
    %v6071 = vadd.f32 0.0, %v6070
    %v6072 = vpop.f32.mrf.mxu0
    %6073 = vdwg.mxu0
    %6074 = vmatpush.bf16.msra.mxu0 %v3386
    %6075 = vmatpush.bf16.msra.mxu0 %v3378
    %6076 = vmatpush.bf16.msra.mxu0 %v3370
    %6077 = vmatpush.bf16.msra.mxu0 %v3362
    %6078 = vmatpush.bf16.msra.mxu0 %v3354
    %6079 = vmatpush.bf16.msra.mxu0 %v3346
    %6080 = vmatpush.bf16.msra.mxu0 %v3338
    %6081 = vmatpush.bf16.msra.mxu0 %v3330
    %6082 = vmatmul.bf16.gmra.mxu0 %v5982
    %v6083 = vpop.f32.mrf.mxu0
    %v6084 = vadd.f32 %v6071, %v6083
    %v6085 = vpop.f32.mrf.mxu0
    %6086 = vdwg.mxu0
    %6087 = vmatpush.bf16.msra.mxu0 %v3323
    %6088 = vmatpush.bf16.msra.mxu0 %v3315
    %6089 = vmatpush.bf16.msra.mxu0 %v3307
    %6090 = vmatpush.bf16.msra.mxu0 %v3299
    %6091 = vmatpush.bf16.msra.mxu0 %v3291
    %6092 = vmatpush.bf16.msra.mxu0 %v3283
    %6093 = vmatpush.bf16.msra.mxu0 %v3275
    %6094 = vmatpush.bf16.msra.mxu0 %v3267
    %6095 = vmatmul.bf16.gmra.mxu0 %v5981
    %v6096 = vpop.f32.mrf.mxu0
    %v6097 = vadd.f32 0.0, %v6096
    %v6098 = vpop.f32.mrf.mxu0
    %6099 = vdwg.mxu0
    %6100 = vmatpush.bf16.msra.mxu0 %v3387
    %6101 = vmatpush.bf16.msra.mxu0 %v3379
    %6102 = vmatpush.bf16.msra.mxu0 %v3371
    %6103 = vmatpush.bf16.msra.mxu0 %v3363
    %6104 = vmatpush.bf16.msra.mxu0 %v3355
    %6105 = vmatpush.bf16.msra.mxu0 %v3347
    %6106 = vmatpush.bf16.msra.mxu0 %v3339
    %6107 = vmatpush.bf16.msra.mxu0 %v3331
    %6108 = vmatmul.bf16.gmra.mxu0 %v5982
    %v6109 = vpop.f32.mrf.mxu0
    %v6110 = vadd.f32 %v6097, %v6109
    %v6111 = vpop.f32.mrf.mxu0
    %6112 = vdwg.mxu0
    %6113 = vmatpush.bf16.msra.mxu0 %v3324
    %6114 = vmatpush.bf16.msra.mxu0 %v3316
    %6115 = vmatpush.bf16.msra.mxu0 %v3308
    %6116 = vmatpush.bf16.msra.mxu0 %v3300
    %6117 = vmatpush.bf16.msra.mxu0 %v3292
    %6118 = vmatpush.bf16.msra.mxu0 %v3284
    %6119 = vmatpush.bf16.msra.mxu0 %v3276
    %6120 = vmatpush.bf16.msra.mxu0 %v3268
    %6121 = vmatmul.bf16.gmra.mxu0 %v5981
    %v6122 = vpop.f32.mrf.mxu0
    %v6123 = vadd.f32 0.0, %v6122
    %v6124 = vpop.f32.mrf.mxu0
    %6125 = vdwg.mxu0
    %6126 = vmatpush.bf16.msra.mxu0 %v3388
    %6127 = vmatpush.bf16.msra.mxu0 %v3380
    %6128 = vmatpush.bf16.msra.mxu0 %v3372
    %6129 = vmatpush.bf16.msra.mxu0 %v3364
    %6130 = vmatpush.bf16.msra.mxu0 %v3356
    %6131 = vmatpush.bf16.msra.mxu0 %v3348
    %6132 = vmatpush.bf16.msra.mxu0 %v3340
    %6133 = vmatpush.bf16.msra.mxu0 %v3332
    %6134 = vmatmul.bf16.gmra.mxu0 %v5982
    %v6135 = vpop.f32.mrf.mxu0
    %v6136 = vadd.f32 %v6123, %v6135
    %v6137 = vpop.f32.mrf.mxu0
    %6138 = vdwg.mxu0
    %6139 = vmatpush.bf16.msra.mxu0 %v3325
    %6140 = vmatpush.bf16.msra.mxu0 %v3317
    %6141 = vmatpush.bf16.msra.mxu0 %v3309
    %6142 = vmatpush.bf16.msra.mxu0 %v3301
    %6143 = vmatpush.bf16.msra.mxu0 %v3293
    %6144 = vmatpush.bf16.msra.mxu0 %v3285
    %6145 = vmatpush.bf16.msra.mxu0 %v3277
    %6146 = vmatpush.bf16.msra.mxu0 %v3269
    %6147 = vmatmul.bf16.gmra.mxu0 %v5981
    %v6148 = vpop.f32.mrf.mxu0
    %v6149 = vadd.f32 0.0, %v6148
    %v6150 = vpop.f32.mrf.mxu0
    %6151 = vdwg.mxu0
    %6152 = vmatpush.bf16.msra.mxu0 %v3389
    %6153 = vmatpush.bf16.msra.mxu0 %v3381
    %6154 = vmatpush.bf16.msra.mxu0 %v3373
    %6155 = vmatpush.bf16.msra.mxu0 %v3365
    %6156 = vmatpush.bf16.msra.mxu0 %v3357
    %6157 = vmatpush.bf16.msra.mxu0 %v3349
    %6158 = vmatpush.bf16.msra.mxu0 %v3341
    %6159 = vmatpush.bf16.msra.mxu0 %v3333
    %6160 = vmatmul.bf16.gmra.mxu0 %v5982
    %v6161 = vpop.f32.mrf.mxu0
    %v6162 = vadd.f32 %v6149, %v6161
    %v6163 = vpop.f32.mrf.mxu0
    %6164 = vdwg.mxu0
    %6165 = vmatpush.bf16.msra.mxu0 %v3326
    %6166 = vmatpush.bf16.msra.mxu0 %v3318
    %6167 = vmatpush.bf16.msra.mxu0 %v3310
    %6168 = vmatpush.bf16.msra.mxu0 %v3302
    %6169 = vmatpush.bf16.msra.mxu0 %v3294
    %6170 = vmatpush.bf16.msra.mxu0 %v3286
    %6171 = vmatpush.bf16.msra.mxu0 %v3278
    %6172 = vmatpush.bf16.msra.mxu0 %v3270
    %6173 = vmatmul.bf16.gmra.mxu0 %v5981
    %v6174 = vpop.f32.mrf.mxu0
    %v6175 = vadd.f32 0.0, %v6174
    %v6176 = vpop.f32.mrf.mxu0
    %6177 = vdwg.mxu0
    %6178 = vmatpush.bf16.msra.mxu0 %v3390
    %6179 = vmatpush.bf16.msra.mxu0 %v3382
    %6180 = vmatpush.bf16.msra.mxu0 %v3374
    %6181 = vmatpush.bf16.msra.mxu0 %v3366
    %6182 = vmatpush.bf16.msra.mxu0 %v3358
    %6183 = vmatpush.bf16.msra.mxu0 %v3350
    %6184 = vmatpush.bf16.msra.mxu0 %v3342
    %6185 = vmatpush.bf16.msra.mxu0 %v3334
    %6186 = vmatmul.bf16.gmra.mxu0 %v5982
    %v6187 = vpop.f32.mrf.mxu0
    %v6188 = vadd.f32 %v6175, %v6187
    %v6189 = vpop.f32.mrf.mxu0
    %6190 = vdwg.mxu0
    %v6191 = vadd.f32 %v5973, %v6006
    %v6192 = vadd.f32 %v5974, %v6032
    %v6193 = vadd.f32 %v5975, %v6058
    %v6194 = vadd.f32 %v5976, %v6084
    %v6195 = vadd.f32 %v5977, %v6110
    %v6196 = vadd.f32 %v5978, %v6136
    %v6197 = vadd.f32 %v5979, %v6162
    %v6198 = vadd.f32 %v5980, %v6188
    %v6199 = vxor.u32 %v6191, 2147483648
    %v6200 = vxor.u32 %v6192, 2147483648
    %v6201 = vmul.f32 %v6199, 1.442695
    %v6202 = vpow.pop %v6201
    %v6203 = vmul.f32 %v6200, 1.442695
    %v6204 = vpow.pop %v6203
    %v6205 = vadd.f32 %v6202, 1.0
    %v6206 = vadd.f32 %v6204, 1.0
    %v6207 = vrcp.pop %v6205
    %v6208 = vmul.f32 %v6205, %v6207
    %v6209 = vsub.f32 1.0, %v6208
    %v6210 = vmul.f32 %v6207, %v6209
    %v6211 = vadd.f32 %v6207, %v6210
    %vm6212 = vweird.f32 %v6205
    %vm6213 = vweird.f32 %v6207
    %vm6214 = vmor %vm6212, %vm6213
    %v6215 = vsel %vm6214, %v6207, %v6211
    %v6216 = vand.u32 2147483647, %v6205
    %vm6217 = vcmp.eq.f32.partialorder %v6216, 8.507059e+37
    %v6218 = vand.u32 %v6205, 2147483648
    %v6219 = vor.u32 1.1754944e-38, %v6218
    %v6220 = vsel %vm6217, %v6219, %v6215
    %v6221 = vmul.f32 1.0, %v6220
    %v6222 = vrcp.pop %v6206
    %v6223 = vmul.f32 %v6206, %v6222
    %v6224 = vsub.f32 1.0, %v6223
    %v6225 = vmul.f32 %v6222, %v6224
    %v6226 = vadd.f32 %v6222, %v6225
    %vm6227 = vweird.f32 %v6206
    %vm6228 = vweird.f32 %v6222
    %vm6229 = vmor %vm6227, %vm6228
    %v6230 = vsel %vm6229, %v6222, %v6226
    %v6231 = vand.u32 2147483647, %v6206
    %vm6232 = vcmp.eq.f32.partialorder %v6231, 8.507059e+37
    %v6233 = vand.u32 %v6206, 2147483648
    %v6234 = vor.u32 1.1754944e-38, %v6233
    %v6235 = vsel %vm6232, %v6234, %v6230
    %v6236 = vmul.f32 1.0, %v6235
    %v6237 = vxor.u32 %v6193, 2147483648
    %v6238 = vxor.u32 %v6194, 2147483648
    %v6239 = vmul.f32 %v6237, 1.442695
    %v6240 = vpow.pop %v6239
    %v6241 = vmul.f32 %v6238, 1.442695
    %v6242 = vpow.pop %v6241
    %v6243 = vadd.f32 %v6240, 1.0
    %v6244 = vadd.f32 %v6242, 1.0
    %v6245 = vrcp.pop %v6243
    %v6246 = vmul.f32 %v6243, %v6245
    %v6247 = vsub.f32 1.0, %v6246
    %v6248 = vmul.f32 %v6245, %v6247
    %v6249 = vadd.f32 %v6245, %v6248
    %vm6250 = vweird.f32 %v6243
    %vm6251 = vweird.f32 %v6245
    %vm6252 = vmor %vm6250, %vm6251
    %v6253 = vsel %vm6252, %v6245, %v6249
    %v6254 = vand.u32 2147483647, %v6243
    %vm6255 = vcmp.eq.f32.partialorder %v6254, 8.507059e+37
    %v6256 = vand.u32 %v6243, 2147483648
    %v6257 = vor.u32 1.1754944e-38, %v6256
    %v6258 = vsel %vm6255, %v6257, %v6253
    %v6259 = vmul.f32 1.0, %v6258
    %v6260 = vrcp.pop %v6244
    %v6261 = vmul.f32 %v6244, %v6260
    %v6262 = vsub.f32 1.0, %v6261
    %v6263 = vmul.f32 %v6260, %v6262
    %v6264 = vadd.f32 %v6260, %v6263
    %vm6265 = vweird.f32 %v6244
    %vm6266 = vweird.f32 %v6260
    %vm6267 = vmor %vm6265, %vm6266
    %v6268 = vsel %vm6267, %v6260, %v6264
    %v6269 = vand.u32 2147483647, %v6244
    %vm6270 = vcmp.eq.f32.partialorder %v6269, 8.507059e+37
    %v6271 = vand.u32 %v6244, 2147483648
    %v6272 = vor.u32 1.1754944e-38, %v6271
    %v6273 = vsel %vm6270, %v6272, %v6268
    %v6274 = vmul.f32 1.0, %v6273
    %v6275 = vtanh.pop %v6195
    %v6276 = vtanh.pop %v6196
    %v6277 = vxor.u32 %v6197, 2147483648
    %v6278 = vxor.u32 %v6198, 2147483648
    %v6279 = vmul.f32 %v6277, 1.442695
    %v6280 = vpow.pop %v6279
    %v6281 = vmul.f32 %v6278, 1.442695
    %v6282 = vpow.pop %v6281
    %v6283 = vadd.f32 %v6280, 1.0
    %v6284 = vadd.f32 %v6282, 1.0
    %v6285 = vrcp.pop %v6283
    %v6286 = vmul.f32 %v6283, %v6285
    %v6287 = vsub.f32 1.0, %v6286
    %v6288 = vmul.f32 %v6285, %v6287
    %v6289 = vadd.f32 %v6285, %v6288
    %vm6290 = vweird.f32 %v6283
    %vm6291 = vweird.f32 %v6285
    %vm6292 = vmor %vm6290, %vm6291
    %v6293 = vsel %vm6292, %v6285, %v6289
    %v6294 = vand.u32 2147483647, %v6283
    %vm6295 = vcmp.eq.f32.partialorder %v6294, 8.507059e+37
    %v6296 = vand.u32 %v6283, 2147483648
    %v6297 = vor.u32 1.1754944e-38, %v6296
    %v6298 = vsel %vm6295, %v6297, %v6293
    %v6299 = vmul.f32 1.0, %v6298
    %v6300 = vrcp.pop %v6284
    %v6301 = vmul.f32 %v6284, %v6300
    %v6302 = vsub.f32 1.0, %v6301
    %v6303 = vmul.f32 %v6300, %v6302
    %v6304 = vadd.f32 %v6300, %v6303
    %vm6305 = vweird.f32 %v6284
    %vm6306 = vweird.f32 %v6300
    %vm6307 = vmor %vm6305, %vm6306
    %v6308 = vsel %vm6307, %v6300, %v6304
    %v6309 = vand.u32 2147483647, %v6284
    %vm6310 = vcmp.eq.f32.partialorder %v6309, 8.507059e+37
    %v6311 = vand.u32 %v6284, 2147483648
    %v6312 = vor.u32 1.1754944e-38, %v6311
    %v6313 = vsel %vm6310, %v6312, %v6308
    %v6314 = vmul.f32 1.0, %v6313
    %v6315 = vmul.f32 %v6259, %v5967
    %v6316 = vmul.f32 %v6274, %v5968
    %v6317 = vmul.f32 %v6221, %v6275
    %v6318 = vmul.f32 %v6236, %v6276
    %v6319 = vadd.f32 %v6315, %v6317
    %v6320 = vadd.f32 %v6316, %v6318
    %v6321 = vtanh.pop %v6319
    %v6322 = vtanh.pop %v6320
    %v6323 = vmul.f32 %v6299, %v6321
    %v6324 = vmul.f32 %v6314, %v6322
    %v6325 = vld [vmem:[#allocation11] sm:$0xff]
    %v6326 = vld [vmem:[#allocation11 + $0x8] sm:$0xff]
    %v6327 = vld [vmem:[#allocation11 + $0x10] sm:$0xff]
    %v6328 = vld [vmem:[#allocation11 + $0x18] sm:$0xff]
    %v6329 = vld [vmem:[#allocation11 + $0x20] sm:$0xff]
    %v6330 = vld [vmem:[#allocation11 + $0x28] sm:$0xff]
    %v6331 = vld [vmem:[#allocation11 + $0x30] sm:$0xff]
    %v6332 = vld [vmem:[#allocation11 + $0x38] sm:$0xff]
    %v6333 = vld [vmem:[#allocation11 + $0x40] sm:$0xff]
    %v6334 = vld [vmem:[#allocation11 + $0x48] sm:$0xff]
    %v6335 = vld [vmem:[#allocation11 + $0x50] sm:$0xff]
    %v6336 = vld [vmem:[#allocation11 + $0x58] sm:$0xff]
    %v6337 = vld [vmem:[#allocation11 + $0x60] sm:$0xff]
    %v6338 = vld [vmem:[#allocation11 + $0x68] sm:$0xff]
    %v6339 = vld [vmem:[#allocation11 + $0x70] sm:$0xff]
    %v6340 = vld [vmem:[#allocation11 + $0x78] sm:$0xff]
    %v6341 = vld [vmem:[#allocation11 + $0x80] sm:$0xff]
    %v6342 = vld [vmem:[#allocation11 + $0x88] sm:$0xff]
    %v6343 = vld [vmem:[#allocation11 + $0x90] sm:$0xff]
    %v6344 = vld [vmem:[#allocation11 + $0x98] sm:$0xff]
    %v6345 = vld [vmem:[#allocation11 + $0xa0] sm:$0xff]
    %v6346 = vld [vmem:[#allocation11 + $0xa8] sm:$0xff]
    %v6347 = vld [vmem:[#allocation11 + $0xb0] sm:$0xff]
    %v6348 = vld [vmem:[#allocation11 + $0xb8] sm:$0xff]
    %v6349 = vld [vmem:[#allocation11 + $0xc0] sm:$0xff]
    %v6350 = vld [vmem:[#allocation11 + $0xc8] sm:$0xff]
    %v6351 = vld [vmem:[#allocation11 + $0xd0] sm:$0xff]
    %v6352 = vld [vmem:[#allocation11 + $0xd8] sm:$0xff]
    %v6353 = vld [vmem:[#allocation11 + $0xe0] sm:$0xff]
    %v6354 = vld [vmem:[#allocation11 + $0xe8] sm:$0xff]
    %v6355 = vld [vmem:[#allocation11 + $0xf0] sm:$0xff]
    %v6356 = vld [vmem:[#allocation11 + $0xf8] sm:$0xff]
    %v6357 = vld [vmem:[%s5] sm:$0x1]
    %v6359 = vperm.slane %v6357, 0
    %6361 = vmatpush.msra.mxu0 %v6340
    %6362 = vmatpush.msra.mxu0 %v6339
    %6363 = vmatpush.msra.mxu0 %v6338
    %6364 = vmatpush.msra.mxu0 %v6337
    %6365 = vmatpush.msra.mxu0 %v6336
    %6366 = vmatpush.msra.mxu0 %v6335
    %6367 = vmatpush.msra.mxu0 %v6334
    %6368 = vmatpush.msra.mxu0 %v6333
    %6369 = vmatpush.msra.mxu0 %v6332
    %6370 = vmatpush.msra.mxu0 %v6331
    %6371 = vmatpush.msra.mxu0 %v6330
    %6372 = vmatpush.msra.mxu0 %v6329
    %6373 = vmatpush.msra.mxu0 %v6328
    %6374 = vmatpush.msra.mxu0 %v6327
    %6375 = vmatpush.msra.mxu0 %v6326
    %6376 = vmatpush.msra.mxu0 %v6325
    %6377 = vmatmul.f32.gmra.mxu0 %v6323
    %v6378 = vpop.f32.mrf.mxu0
    %v6379 = vadd.f32 %v6359, %v6378
    %6380 = vdwg.mxu0
    %6381 = vmatpush.msra.mxu0 %v6356
    %6382 = vmatpush.msra.mxu0 %v6355
    %6383 = vmatpush.msra.mxu0 %v6354
    %6384 = vmatpush.msra.mxu0 %v6353
    %6385 = vmatpush.msra.mxu0 %v6352
    %6386 = vmatpush.msra.mxu0 %v6351
    %6387 = vmatpush.msra.mxu0 %v6350
    %6388 = vmatpush.msra.mxu0 %v6349
    %6389 = vmatpush.msra.mxu0 %v6348
    %6390 = vmatpush.msra.mxu0 %v6347
    %6391 = vmatpush.msra.mxu0 %v6346
    %6392 = vmatpush.msra.mxu0 %v6345
    %6393 = vmatpush.msra.mxu0 %v6344
    %6394 = vmatpush.msra.mxu0 %v6343
    %6395 = vmatpush.msra.mxu0 %v6342
    %6396 = vmatpush.msra.mxu0 %v6341
    %6397 = vmatmul.f32.gmra.mxu0 %v6324
    %v6398 = vpop.f32.mrf.mxu0
    %v6399 = vadd.f32 %v6379, %v6398
    %6400 = vdwg.mxu0
    %6401 = vst [vmem:[#allocation13] sm:$0xff] %v6399
    // Predicated region
    $region42: #{tpu_custom_call.1} parent=1 // pred_check
      _
    $region43: #{tpu_custom_call.1} parent=1 // pred_check_branch
      %6403 = sbr.rel (0) target = $region45
    $region44: #{tpu_custom_call.1} parent=1 // pred_region
      %6405 = vsyncadd [#allocation7], 0
      %s6407 = sshll.u32 [#allocation13], 4
      %s6408 = int_to_ptr.vmem [resolvable:$true] %s6407
      %s6409 = sshll.u32 %s6, 4
      %s6410 = int_to_ptr.hbm [resolvable:$true] %s6409
      %6412 = dma.vmem_to_hbm [thread:$0]  %s6408, 128, %s6410, [#allocation7]
    $region45: #{tpu_custom_call.1} parent=1 // pred_fallthru
      _
    // Predicated region
    $region46: #{tpu_custom_call.1} parent=1 // pred_check
      _
    $region47: #{tpu_custom_call.1} parent=1 // pred_check_branch
      %6414 = sbr.rel (0) target = $region49
    $region48: #{tpu_custom_call.1} parent=1 // pred_region
      %6416 = dma.done [#allocation7], 128
    $region49: #{tpu_custom_call.1} parent=1 // pred_fallthru
      _
    %6417 = vsyncpa [#allocation6], 1
    %6418 = vsyncpa [#allocation9], 1
    %6419 = vsyncpa [#allocation12], 1
    %6420 = vsyncpa [#allocation7], 1
  %6421 = vsyncmov [#allocation4]
  %s6422 = vpop.sfrf %6421
  %p6423 = scmp.eq.s32.totalorder %s6422, 0
  %p6424 = pneg %p6423
  %6426 = shalt.err (%p6424)

</llo_original>
